<compile_context>
chip_gen: v6e
topology: v6e:2x2x1
jax: 0.10.0
libtpu: 0.0.40
codegen_flags: <defaults>
</compile_context>

<pallas_src>
import functools

import jax
import jax.numpy as jnp
from jax import lax
from jax.experimental import pallas as pl
from jax.experimental.pallas import tpu as pltpu

MAX_DECODING_TIME = 100    # hard-coded in myDecoder_ver_3.__init__
STEPS_PER_PROGRAM = 2      # decode steps per grid program (cross-step overlap)
NEG_INF = -1e30


def _round_up(x, m):
    return (x + m - 1) // m * m


def decoder_kernel(
    max_time,
    # inputs
    h0_ref, c0_ref, enc_ref, att_bias_ref, eos_ref, first_init_ref,
    wx_ref, wh_ref, b_ref, w_att_ref, w_ch_ref, w_cc_ref, w_vocab_ref,
    vocab_bias_ref,
    # outputs
    logp_ref, tgt_len_ref,
    # scratch (persists across the time grid)
    keys_sc, prev_sc, h_sc, c_sc, first_sc,
):
    pid = pl.program_id(0)
    nprog = pl.num_programs(0)
    Bp, S, He = enc_ref.shape
    Hd = h0_ref.shape[1]
    steps = logp_ref.shape[0]

    @pl.when(pid == 0)
    def _init():
        prev_sc[...] = jnp.zeros_like(prev_sc)         # prevOut = zeros(B, E)
        h_sc[...] = h0_ref[...]
        c_sc[...] = c0_ref[...]
        first_sc[...] = first_init_ref[...]
        # keys = self.att_projection(enc_hiddens), computed once and cached.
        keys = jnp.dot(enc_ref[...].reshape(Bp * S, He), w_att_ref[...],
                       preferred_element_type=jnp.float32)
        keys_sc[...] = keys.reshape(Bp, S, Hd).astype(jnp.bfloat16)

    eos = eos_ref[...]                       # [1, E]    f32
    att_bias = att_bias_ref[...]             # [Bp,1,S]  f32 (0 valid / -1e30 pad)
    enc = enc_ref[...]                       # [Bp,S,He] bf16 (attention values)
    keys = keys_sc[...]                      # [Bp,S,Hd] bf16
    vocab_bias = vocab_bias_ref[...]         # [1, Vp]   f32 (0 real / -1e30 pad)
    wx_i, wx_f, wx_g, wx_o = wx_ref[0], wx_ref[1], wx_ref[2], wx_ref[3]
    wh_i, wh_f, wh_g, wh_o = wh_ref[0], wh_ref[1], wh_ref[2], wh_ref[3]
    b_i, b_f, b_g, b_o = b_ref[0], b_ref[1], b_ref[2], b_ref[3]
    w_ch = w_ch_ref[...]
    w_cc = w_cc_ref[...]
    w_v = w_vocab_ref[...]

    # Statically unrolled so step s+1's gate matmuls can overlap step s's vocab
    # matmul / log_softmax (the loop is otherwise a serial latency chain).
    for s in range(steps):
        t = pid * steps + s

        prev = prev_sc[...].astype(jnp.bfloat16)     # [Bp, E]
        hb = h_sc[...].astype(jnp.bfloat16)          # [Bp, Hd]
        c_prev = c_sc[...]                           # [Bp, Hd] f32

        # ---- nn.LSTMCell, PyTorch gate order (i, f, g, o); per-gate matmuls
        #      keep every result lane-aligned (no [:, k*Hd:(k+1)*Hd] slicing).
        def gate(wx, wh, b):
            return (jnp.dot(prev, wx, preferred_element_type=jnp.float32)
                    + jnp.dot(hb, wh, preferred_element_type=jnp.float32) + b)

        i_g = jax.nn.sigmoid(gate(wx_i, wh_i, b_i))
        f_g = jax.nn.sigmoid(gate(wx_f, wh_f, b_f))
        g_g = jnp.tanh(gate(wx_g, wh_g, b_g))
        o_g = jax.nn.sigmoid(gate(wx_o, wh_o, b_o))
        c_new = f_g * c_prev + i_g * g_g
        h_new = o_g * jnp.tanh(c_new)

        # ---- masked dot-product attention (myAttention_ver_1) on the MXU.
        hb_new = h_new.astype(jnp.bfloat16)                           # [Bp, Hd]
        e = jnp.einsum("bqh,bsh->bqs", hb_new[:, None, :], keys,
                       preferred_element_type=jnp.float32) + att_bias  # [Bp,1,S]
        m = jnp.max(e, axis=-1, keepdims=True)
        p = jnp.exp(e - m)
        alpha = p * pl.reciprocal(jnp.sum(p, axis=-1, keepdims=True), approx=True)
        c_t = jnp.einsum("bqs,bse->bqe", alpha.astype(jnp.bfloat16), enc,
                         preferred_element_type=jnp.float32)           # [Bp,1,He]
        c_t = jnp.sum(c_t, axis=1).astype(jnp.bfloat16)                # [Bp, He]

        # ---- combined-output projection (concat-free; w_comb split in the
        #      wrapper) + tanh; dropout == identity in eval mode.
        dec_out = jnp.tanh(
            jnp.dot(hb_new, w_ch, preferred_element_type=jnp.float32)
            + jnp.dot(c_t, w_cc, preferred_element_type=jnp.float32))  # [Bp,E] f32

        # ---- vocab projection + log_softmax for this step.  Padded vocab lanes
        #      are pushed to -inf via vocab_bias and sliced off in the wrapper.
        logits = jnp.dot(dec_out.astype(jnp.bfloat16), w_v,
                         preferred_element_type=jnp.float32) + vocab_bias
        lm = jnp.max(logits, axis=-1, keepdims=True)
        lse = lm + jnp.log(jnp.sum(jnp.exp(logits - lm), axis=-1, keepdims=True))
        logp_ref[s] = logits - lse

        # ---- EOS bookkeeping: torch.isclose(decOut, EOS, rtol=0.001) (the
        #      module passes rtol=0.001 explicitly; atol keeps torch's 1e-8).
        close = jnp.abs(dec_out - eos) <= (1e-8 + 1e-3 * jnp.abs(eos))     # [Bp,E]
        ix_eos = jnp.min(close.astype(jnp.int32), axis=1, keepdims=True)   # [Bp,1]
        first_sc[...] = jnp.where((first_sc[...] == 0) & (ix_eos != 0),
                                  t + 1, first_sc[...])

        prev_sc[...] = dec_out
        h_sc[...] = h_new
        c_sc[...] = c_new

    # tgt_len, faithful to the PyTorch loop including its final
    # `tgt_len[~ixEOS] = decoding_time`: the returned value is uniformly the
    # stop time = first step at which *all* rows have emitted EOS (the `break`
    # point), or maxDecodingTime if some row never does.
    @pl.when(pid == nprog - 1)
    def _finalize():
        first_f = first_sc[...].astype(jnp.float32)                 # [Bp, 1]
        all_hit = jnp.min(first_f, axis=0, keepdims=True) > 0.0     # [1, 1]
        stop_t = jnp.max(first_f, axis=0, keepdims=True)            # [1, 1]
        tl = jnp.where(all_hit, stop_t, jnp.float32(max_time))      # [1, 1]
        tgt_len_ref[...] = (jnp.zeros_like(first_f) + tl).astype(jnp.int32)


def my_decoder_ver_3_forward(params, dec_initial_state, enc_hiddens, enc_len):
    """Eval-mode forward of myDecoder_ver_3 -> (logP [B,T,V] f32, tgt_len [B] i32)."""
    h0 = dec_initial_state[0][0].astype(jnp.float32)    # squeeze(0): [B, Hd]
    c0 = dec_initial_state[1][0].astype(jnp.float32)
    B, S, He = enc_hiddens.shape
    Hd = h0.shape[1]
    E = params["eos"].shape[0]
    V = params["w_vocab"].shape[0]
    T = MAX_DECODING_TIME
    steps = STEPS_PER_PROGRAM if T % STEPS_PER_PROGRAM == 0 else 1
    Bp = _round_up(B, 8)          # sublane-dense batch
    Vp = _round_up(V, 128)        # lane-dense vocab path (unmasked vst on logP)
    bf16 = jnp.bfloat16

    # ---- parameter layout glue (wrapper-side only; no per-step compute) ----
    w_ih = params["w_ih"].astype(jnp.float32)            # [4*Hd, E], gates i,f,g,o
    w_hh = params["w_hh"].astype(jnp.float32)            # [4*Hd, Hd]
    bias = (params["b_ih"] + params["b_hh"]).astype(jnp.float32)        # [4*Hd]
    wx_g = jnp.stack([w_ih[g * Hd:(g + 1) * Hd, :].T for g in range(4)]).astype(bf16)
    wh_g = jnp.stack([w_hh[g * Hd:(g + 1) * Hd, :].T for g in range(4)]).astype(bf16)
    b_g = jnp.stack([bias[g * Hd:(g + 1) * Hd][None, :] for g in range(4)])
    w_att_t = params["w_att"].T.astype(bf16)                            # [He, Hd]
    w_comb = params["w_comb"].astype(jnp.float32)                       # [E, 2*He]
    w_ch = w_comb[:, :Hd].T.astype(bf16)                                # [Hd, E]
    w_cc = w_comb[:, Hd:].T.astype(bf16)                                # [He, E]
    w_vocab_t = jnp.zeros((E, Vp), bf16).at[:, :V].set(
        params["w_vocab"].T.astype(bf16))                               # [E, Vp]
    vocab_bias = jnp.where(jnp.arange(Vp)[None, :] < V, 0.0,
                           NEG_INF).astype(jnp.float32)                 # [1, Vp]
    eos = params["eos"].reshape(1, E).astype(jnp.float32)

    # ---- batch padding to a multiple of 8 sublanes ----
    def pad_b(x, fill=0):
        if Bp == B:
            return x
        pad = [(0, Bp - B)] + [(0, 0)] * (x.ndim - 1)
        return jnp.pad(x, pad, constant_values=fill)

    h0_p = pad_b(h0)
    c0_p = pad_b(c0)
    enc_p = pad_b(enc_hiddens.astype(jnp.float32)).astype(bf16)
    enc_len_p = pad_b(enc_len.astype(jnp.int32).reshape(B), fill=S)
    att_bias = jnp.where(jnp.arange(S)[None, :] < enc_len_p[:, None],
                         0.0, NEG_INF).astype(jnp.float32).reshape(Bp, 1, S)
    # Padded batch rows pretend they emitted EOS at t=1 so they never block the
    # "all rows done" stop-time computation.
    first_init = (jnp.arange(Bp) >= B).astype(jnp.int32).reshape(Bp, 1)

    inputs = (h0_p, c0_p, enc_p, att_bias, eos, first_init,
              wx_g, wh_g, b_g, w_att_t, w_ch, w_cc, w_vocab_t, vocab_bias)

    def full_spec(a):
        nd = a.ndim
        return pl.BlockSpec(a.shape, lambda t, _n=nd: (0,) * _n)

    in_specs = [full_spec(a) for a in inputs]
    out_specs = (
        pl.BlockSpec((steps, Bp, Vp), lambda t: (t, 0, 0)),  # pipelined logP slab
        pl.BlockSpec((Bp, 1), lambda t: (0, 0)),             # resident tgt_len
    )
    out_shape = (
        jax.ShapeDtypeStruct((T, Bp, Vp), jnp.float32),
        jax.ShapeDtypeStruct((Bp, 1), jnp.int32),
    )
    scratch_shapes = [
        pltpu.VMEM((Bp, S, Hd), bf16),         # cached attention keys
        pltpu.VMEM((Bp, E), jnp.float32),      # prevOut carry
        pltpu.VMEM((Bp, Hd), jnp.float32),     # h carry
        pltpu.VMEM((Bp, Hd), jnp.float32),     # c carry
        pltpu.VMEM((Bp, 1), jnp.int32),        # per-row first-EOS step (0 = never)
    ]

    # VMEM budget sized to the actual resident set (inputs worst-case double
    # buffered) with headroom; default scoped limit is 16 MiB (v5e) / 32 MiB.
    in_bytes = sum(a.size * a.dtype.itemsize for a in inputs)
    out_bytes = steps * Bp * Vp * 4 + Bp * 4
    scr_bytes = Bp * S * Hd * 2 + Bp * E * 4 + 2 * Bp * Hd * 4 + Bp * 4
    vmem_limit = int(2 * in_bytes + 2 * out_bytes + scr_bytes + (8 << 20))
    vmem_limit = min(max(vmem_limit, 32 << 20), 100 << 20)

    logp_tbv, tgt_len_2d = pl.pallas_call(
        functools.partial(decoder_kernel, T),
        out_shape=out_shape,
        grid=(T // steps,),
        in_specs=in_specs,
        out_specs=out_specs,
        scratch_shapes=scratch_shapes,
        compiler_params=pltpu.CompilerParams(
            dimension_semantics=("arbitrary",),   # serial recurrence over time
            vmem_limit_bytes=vmem_limit),
    )(*inputs)

    # Kernel output is time-major [T, B, V]; PyTorch's contract is [B, T, V].
    # (A time-major consumer could skip this XLA-side transpose entirely.)
    logp = jnp.transpose(logp_tbv[:, :B, :V], (1, 0, 2))
    return logp, tgt_len_2d[:B, 0]


def reference_forward(params, dec_initial_state, enc_hiddens, enc_len,
                      max_time=MAX_DECODING_TIME):
    """Pure-JAX reference with the same bf16 matmul casts as the kernel."""
    bf16 = jnp.bfloat16
    h0 = dec_initial_state[0][0].astype(jnp.float32)
    c0 = dec_initial_state[1][0].astype(jnp.float32)
    B, S, He = enc_hiddens.shape
    Hd = h0.shape[1]
    E = params["eos"].shape[0]

    w_ih_t = params["w_ih"].T.astype(bf16)               # [E, 4*Hd]
    w_hh_t = params["w_hh"].T.astype(bf16)               # [Hd, 4*Hd]
    bias = (params["b_ih"] + params["b_hh"]).astype(jnp.float32)[None, :]
    w_att_t = params["w_att"].T.astype(bf16)
    w_ch = params["w_comb"][:, :Hd].T.astype(bf16)
    w_cc = params["w_comb"][:, Hd:].T.astype(bf16)
    w_v = params["w_vocab"].T.astype(bf16)
    eos = params["eos"].reshape(1, E).astype(jnp.float32)

    enc_b = enc_hiddens.astype(bf16)
    keys = jnp.dot(enc_b.reshape(B * S, He), w_att_t,
                   preferred_element_type=jnp.float32)
    keys = keys.reshape(B, S, Hd).astype(bf16)
    att_bias = jnp.where(
        jnp.arange(S)[None, :] < enc_len.astype(jnp.int32)[:, None],
        0.0, NEG_INF).astype(jnp.float32)

    def step(carry, t):
        prev, h, c, first = carry
        gates = (jnp.dot(prev.astype(bf16), w_ih_t, preferred_element_type=jnp.float32)
                 + jnp.dot(h.astype(bf16), w_hh_t, preferred_element_type=jnp.float32)
                 + bias)
        i_g = jax.nn.sigmoid(gates[:, 0 * Hd:1 * Hd])
        f_g = jax.nn.sigmoid(gates[:, 1 * Hd:2 * Hd])
        g_g = jnp.tanh(gates[:, 2 * Hd:3 * Hd])
        o_g = jax.nn.sigmoid(gates[:, 3 * Hd:4 * Hd])
        c_new = f_g * c + i_g * g_g
        h_new = o_g * jnp.tanh(c_new)

        e = jnp.einsum("bh,bsh->bs", h_new.astype(bf16), keys,
                       preferred_element_type=jnp.float32) + att_bias
        alpha = jax.nn.softmax(e, axis=-1)
        c_t = jnp.einsum("bs,bse->be", alpha.astype(bf16), enc_b,
                         preferred_element_type=jnp.float32)
        dec_out = jnp.tanh(
            jnp.dot(h_new.astype(bf16), w_ch, preferred_element_type=jnp.float32)
            + jnp.dot(c_t.astype(bf16), w_cc, preferred_element_type=jnp.float32))
        logits = jnp.dot(dec_out.astype(bf16), w_v,
                         preferred_element_type=jnp.float32)
        logp = jax.nn.log_softmax(logits, axis=-1)

        close = jnp.abs(dec_out - eos) <= (1e-8 + 1e-3 * jnp.abs(eos))
        ix = jnp.all(close, axis=1)
        first = jnp.where((first == 0) & ix, t + 1, first)
        return (dec_out, h_new, c_new, first), logp

    carry0 = (jnp.zeros((B, E), jnp.float32), h0, c0, jnp.zeros((B,), jnp.int32))
    (_, _, _, first), logps = lax.scan(step, carry0, jnp.arange(max_time))
    stop = jnp.where(jnp.all(first > 0), jnp.max(first), max_time)
    tgt_len = jnp.zeros((B,), jnp.int32) + stop
    return jnp.transpose(logps, (1, 0, 2)), tgt_len


if __name__ == "__main__":
    key = jax.random.PRNGKey(0)
    B, S = 4, 8
    He = Hd = 32      # enc_hidden == dec_hidden (required by combOutput's 2*He input)
    E = 32            # embed_size
    V = 64            # output_size; not a multiple of 128 to exercise lane padding

    ks = jax.random.split(key, 12)

    def init(k, shape, scale=0.1):
        return (scale * jax.random.normal(k, shape)).astype(jnp.float32)

    params = dict(
        w_ih=init(ks[0], (4 * Hd, E)),        # LSTMCell weight_ih
        b_ih=init(ks[1], (4 * Hd,)),
        w_hh=init(ks[2], (4 * Hd, Hd)),       # LSTMCell weight_hh
        b_hh=init(ks[3], (4 * Hd,)),
        w_att=init(ks[4], (Hd, He)),          # att_projection (no bias)
        w_comb=init(ks[5], (E, 2 * He)),      # combOutput (no bias)
        w_vocab=init(ks[6], (V, E)),          # vocab_projection (no bias)
        eos=init(ks[7], (E,)),                # seqEmb(endToken) embedding row
    )

    h0 = init(ks[8], (1, B, Hd), 1.0)         # dec_initial_state[0]: [1, B, Hd]
    c0 = init(ks[9], (1, B, Hd), 1.0)
    enc_hiddens = init(ks[10], (B, S, He), 1.0)
    enc_len = jnp.array([8, 5, 8, 3], dtype=jnp.int32)

    fwd = jax.jit(my_decoder_ver_3_forward)
    logp, tgt_len = fwd(params, (h0, c0), enc_hiddens, enc_len)
    jax.block_until_ready((logp, tgt_len))

    assert logp.shape == (B, MAX_DECODING_TIME, V), logp.shape
    assert tgt_len.shape == (B,), tgt_len.shape
    assert bool(jnp.all(jnp.isfinite(logp)))
    # log_softmax rows should (log-)normalize to ~0.
    assert bool(jnp.all(jnp.abs(jax.nn.logsumexp(logp, axis=-1)) < 1e-3))

    # Pure-JAX reference (same bf16 casts) for numerical validation.
    ref_logp, ref_tgt = jax.jit(reference_forward)(params, (h0, c0),
                                                   enc_hiddens, enc_len)
    jax.block_until_ready((ref_logp, ref_tgt))
    assert bool(jnp.all(tgt_len == ref_tgt)), (tgt_len, ref_tgt)
    assert float(jnp.max(jnp.abs(logp - ref_logp))) < 5e-2

    print("KERNEL_OK")
</pallas_src>

<mosaic_0001>
module attributes {stable_mosaic.version = 11 : i64} {
  func.func @decoder_kernel(%arg0: i32, %arg1: memref<8x32xf32, #tpu.memory_space<vmem>>, %arg2: memref<8x32xf32, #tpu.memory_space<vmem>>, %arg3: memref<8x8x32xbf16, #tpu.memory_space<vmem>>, %arg4: memref<8x1x8xf32, #tpu.memory_space<vmem>>, %arg5: memref<1x32xf32, #tpu.memory_space<vmem>>, %arg6: memref<8x1xi32, #tpu.memory_space<vmem>>, %arg7: memref<4x32x32xbf16, #tpu.memory_space<vmem>>, %arg8: memref<4x32x32xbf16, #tpu.memory_space<vmem>>, %arg9: memref<4x1x32xf32, #tpu.memory_space<vmem>>, %arg10: memref<32x32xbf16, #tpu.memory_space<vmem>>, %arg11: memref<32x32xbf16, #tpu.memory_space<vmem>>, %arg12: memref<32x32xbf16, #tpu.memory_space<vmem>>, %arg13: memref<32x128xbf16, #tpu.memory_space<vmem>>, %arg14: memref<1x128xf32, #tpu.memory_space<vmem>>, %arg15: memref<2x8x128xf32, #tpu.memory_space<vmem>>, %arg16: memref<8x1xi32, #tpu.memory_space<vmem>>, %arg17: memref<8x8x32xbf16, #tpu.memory_space<vmem>>, %arg18: memref<8x32xf32, #tpu.memory_space<vmem>>, %arg19: memref<8x32xf32, #tpu.memory_space<vmem>>, %arg20: memref<8x32xf32, #tpu.memory_space<vmem>>, %arg21: memref<8x1xi32, #tpu.memory_space<vmem>>) attributes {dimension_semantics = [#tpu.dimension_semantics<arbitrary>], iteration_bounds = array<i64: 50>, scalar_prefetch = 0 : i64, scratch_operands = 5 : i64, tpu.core_type = #tpu.core_type<tc>, window_params = [{pipeline_mode = #tpu.pipeline_mode<synchronous>, transform_indices = @transform_0, window_bounds = array<i64: 8, 32>}, {pipeline_mode = #tpu.pipeline_mode<synchronous>, transform_indices = @transform_1, window_bounds = array<i64: 8, 32>}, {pipeline_mode = #tpu.pipeline_mode<synchronous>, transform_indices = @transform_2, window_bounds = array<i64: 8, 8, 32>}, {pipeline_mode = #tpu.pipeline_mode<synchronous>, transform_indices = @transform_3, window_bounds = array<i64: 8, 1, 8>}, {pipeline_mode = #tpu.pipeline_mode<synchronous>, transform_indices = @transform_4, window_bounds = array<i64: 1, 32>}, {pipeline_mode = #tpu.pipeline_mode<synchronous>, transform_indices = @transform_5, window_bounds = array<i64: 8, 1>}, {pipeline_mode = #tpu.pipeline_mode<synchronous>, transform_indices = @transform_6, window_bounds = array<i64: 4, 32, 32>}, {pipeline_mode = #tpu.pipeline_mode<synchronous>, transform_indices = @transform_7, window_bounds = array<i64: 4, 32, 32>}, {pipeline_mode = #tpu.pipeline_mode<synchronous>, transform_indices = @transform_8, window_bounds = array<i64: 4, 1, 32>}, {pipeline_mode = #tpu.pipeline_mode<synchronous>, transform_indices = @transform_9, window_bounds = array<i64: 32, 32>}, {pipeline_mode = #tpu.pipeline_mode<synchronous>, transform_indices = @transform_10, window_bounds = array<i64: 32, 32>}, {pipeline_mode = #tpu.pipeline_mode<synchronous>, transform_indices = @transform_11, window_bounds = array<i64: 32, 32>}, {pipeline_mode = #tpu.pipeline_mode<synchronous>, transform_indices = @transform_12, window_bounds = array<i64: 32, 128>}, {pipeline_mode = #tpu.pipeline_mode<synchronous>, transform_indices = @transform_13, window_bounds = array<i64: 1, 128>}, {transform_indices = @transform_14, window_bounds = array<i64: 2, 8, 128>}, {pipeline_mode = #tpu.pipeline_mode<synchronous>, transform_indices = @transform_15, window_bounds = array<i64: 8, 1>}]} {
    %c0_i32 = arith.constant 0 : i32
    %0 = arith.cmpi eq, %arg0, %c0_i32 : i32
    %1 = arith.extui %0 : i1 to i32
    %c0_i32_0 = arith.constant 0 : i32
    %2 = arith.cmpi ne, %1, %c0_i32_0 : i32
    scf.if %2 {
      %cst_150 = arith.constant 0.000000e+00 : f32
      %268 = vector.broadcast %cst_150 : f32 to vector<8x32xf32>
      %c0_151 = arith.constant 0 : index
      %c0_152 = arith.constant 0 : index
      %269 = vector.load %arg18[%c0_151, %c0_152] : memref<8x32xf32, #tpu.memory_space<vmem>>, vector<8x32xf32>
      tpu.vector_store %arg18[%c0_151, %c0_152], %268 {strides = array<i32>} : memref<8x32xf32, #tpu.memory_space<vmem>>, vector<8x32xf32>,
      %c0_153 = arith.constant 0 : index
      %c0_154 = arith.constant 0 : index
      %270 = vector.load %arg1[%c0_153, %c0_154] : memref<8x32xf32, #tpu.memory_space<vmem>>, vector<8x32xf32>
      %c0_155 = arith.constant 0 : index
      %c0_156 = arith.constant 0 : index
      %271 = vector.load %arg19[%c0_155, %c0_156] : memref<8x32xf32, #tpu.memory_space<vmem>>, vector<8x32xf32>
      tpu.vector_store %arg19[%c0_155, %c0_156], %270 {strides = array<i32>} : memref<8x32xf32, #tpu.memory_space<vmem>>, vector<8x32xf32>,
      %c0_157 = arith.constant 0 : index
      %c0_158 = arith.constant 0 : index
      %272 = vector.load %arg2[%c0_157, %c0_158] : memref<8x32xf32, #tpu.memory_space<vmem>>, vector<8x32xf32>
      %c0_159 = arith.constant 0 : index
      %c0_160 = arith.constant 0 : index
      %273 = vector.load %arg20[%c0_159, %c0_160] : memref<8x32xf32, #tpu.memory_space<vmem>>, vector<8x32xf32>
      tpu.vector_store %arg20[%c0_159, %c0_160], %272 {strides = array<i32>} : memref<8x32xf32, #tpu.memory_space<vmem>>, vector<8x32xf32>,
      %c0_161 = arith.constant 0 : index
      %c0_162 = arith.constant 0 : index
      %274 = vector.load %arg6[%c0_161, %c0_162] : memref<8x1xi32, #tpu.memory_space<vmem>>, vector<8x1xi32>
      %c0_163 = arith.constant 0 : index
      %c0_164 = arith.constant 0 : index
      %275 = vector.load %arg21[%c0_163, %c0_164] : memref<8x1xi32, #tpu.memory_space<vmem>>, vector<8x1xi32>
      tpu.vector_store %arg21[%c0_163, %c0_164], %274 {strides = array<i32>} : memref<8x1xi32, #tpu.memory_space<vmem>>, vector<8x1xi32>,
      %c0_165 = arith.constant 0 : index
      %c0_166 = arith.constant 0 : index
      %c0_167 = arith.constant 0 : index
      %276 = vector.load %arg3[%c0_165, %c0_166, %c0_167] : memref<8x8x32xbf16, #tpu.memory_space<vmem>>, vector<8x8x32xbf16>
      %277 = vector.shape_cast %276 : vector<8x8x32xbf16> to vector<64x32xbf16>
      %c0_168 = arith.constant 0 : index
      %c0_169 = arith.constant 0 : index
      %278 = vector.load %arg10[%c0_168, %c0_169] : memref<32x32xbf16, #tpu.memory_space<vmem>>, vector<32x32xbf16>
      %cst_170 = arith.constant dense<0.000000e+00> : vector<64x32xf32>
      %279 = tpu.matmul %277, %278, %cst_170 {dimension_numbers = #tpu.dot_dimension_numbers<[1], [0], [0], [1], [0, 0, 1, 1], [], []>} : vector<64x32xbf16>, vector<32x32xbf16>, vector<64x32xf32> -> vector<64x32xf32>
      %280 = vector.shape_cast %279 : vector<64x32xf32> to vector<8x8x32xf32>
      %281 = arith.truncf %280 : vector<8x8x32xf32> to vector<8x8x32xbf16>
      %c0_171 = arith.constant 0 : index
      %c0_172 = arith.constant 0 : index
      %c0_173 = arith.constant 0 : index
      %282 = vector.load %arg17[%c0_171, %c0_172, %c0_173] : memref<8x8x32xbf16, #tpu.memory_space<vmem>>, vector<8x8x32xbf16>
      tpu.vector_store %arg17[%c0_171, %c0_172, %c0_173], %281 {strides = array<i32>} : memref<8x8x32xbf16, #tpu.memory_space<vmem>>, vector<8x8x32xbf16>,
    } else {
    }
    %c0 = arith.constant 0 : index
    %c0_1 = arith.constant 0 : index
    %3 = vector.load %arg5[%c0, %c0_1] : memref<1x32xf32, #tpu.memory_space<vmem>>, vector<1x32xf32>
    %c0_2 = arith.constant 0 : index
    %c0_3 = arith.constant 0 : index
    %c0_4 = arith.constant 0 : index
    %4 = vector.load %arg4[%c0_2, %c0_3, %c0_4] : memref<8x1x8xf32, #tpu.memory_space<vmem>>, vector<8x1x8xf32>
    %c0_5 = arith.constant 0 : index
    %c0_6 = arith.constant 0 : index
    %c0_7 = arith.constant 0 : index
    %5 = vector.load %arg3[%c0_5, %c0_6, %c0_7] : memref<8x8x32xbf16, #tpu.memory_space<vmem>>, vector<8x8x32xbf16>
    %c0_8 = arith.constant 0 : index
    %c0_9 = arith.constant 0 : index
    %c0_10 = arith.constant 0 : index
    %6 = vector.load %arg17[%c0_8, %c0_9, %c0_10] : memref<8x8x32xbf16, #tpu.memory_space<vmem>>, vector<8x8x32xbf16>
    %c0_11 = arith.constant 0 : index
    %c0_12 = arith.constant 0 : index
    %7 = vector.load %arg14[%c0_11, %c0_12] : memref<1x128xf32, #tpu.memory_space<vmem>>, vector<1x128xf32>
    %c0_13 = arith.constant 0 : index
    %c0_14 = arith.constant 0 : index
    %c0_15 = arith.constant 0 : index
    %8 = vector.load %arg7[%c0_13, %c0_14, %c0_15] : memref<4x32x32xbf16, #tpu.memory_space<vmem>>, vector<1x32x32xbf16>
    %9 = vector.shape_cast %8 : vector<1x32x32xbf16> to vector<32x32xbf16>
    %c1 = arith.constant 1 : index
    %c0_16 = arith.constant 0 : index
    %c0_17 = arith.constant 0 : index
    %10 = vector.load %arg7[%c1, %c0_16, %c0_17] : memref<4x32x32xbf16, #tpu.memory_space<vmem>>, vector<1x32x32xbf16>
    %11 = vector.shape_cast %10 : vector<1x32x32xbf16> to vector<32x32xbf16>
    %c2 = arith.constant 2 : index
    %c0_18 = arith.constant 0 : index
    %c0_19 = arith.constant 0 : index
    %12 = vector.load %arg7[%c2, %c0_18, %c0_19] : memref<4x32x32xbf16, #tpu.memory_space<vmem>>, vector<1x32x32xbf16>
    %13 = vector.shape_cast %12 : vector<1x32x32xbf16> to vector<32x32xbf16>
    %c3 = arith.constant 3 : index
    %c0_20 = arith.constant 0 : index
    %c0_21 = arith.constant 0 : index
    %14 = vector.load %arg7[%c3, %c0_20, %c0_21] : memref<4x32x32xbf16, #tpu.memory_space<vmem>>, vector<1x32x32xbf16>
    %15 = vector.shape_cast %14 : vector<1x32x32xbf16> to vector<32x32xbf16>
    %c0_22 = arith.constant 0 : index
    %c0_23 = arith.constant 0 : index
    %c0_24 = arith.constant 0 : index
    %16 = vector.load %arg8[%c0_22, %c0_23, %c0_24] : memref<4x32x32xbf16, #tpu.memory_space<vmem>>, vector<1x32x32xbf16>
    %17 = vector.shape_cast %16 : vector<1x32x32xbf16> to vector<32x32xbf16>
    %c1_25 = arith.constant 1 : index
    %c0_26 = arith.constant 0 : index
    %c0_27 = arith.constant 0 : index
    %18 = vector.load %arg8[%c1_25, %c0_26, %c0_27] : memref<4x32x32xbf16, #tpu.memory_space<vmem>>, vector<1x32x32xbf16>
    %19 = vector.shape_cast %18 : vector<1x32x32xbf16> to vector<32x32xbf16>
    %c2_28 = arith.constant 2 : index
    %c0_29 = arith.constant 0 : index
    %c0_30 = arith.constant 0 : index
    %20 = vector.load %arg8[%c2_28, %c0_29, %c0_30] : memref<4x32x32xbf16, #tpu.memory_space<vmem>>, vector<1x32x32xbf16>
    %21 = vector.shape_cast %20 : vector<1x32x32xbf16> to vector<32x32xbf16>
    %c3_31 = arith.constant 3 : index
    %c0_32 = arith.constant 0 : index
    %c0_33 = arith.constant 0 : index
    %22 = vector.load %arg8[%c3_31, %c0_32, %c0_33] : memref<4x32x32xbf16, #tpu.memory_space<vmem>>, vector<1x32x32xbf16>
    %23 = vector.shape_cast %22 : vector<1x32x32xbf16> to vector<32x32xbf16>
    %c0_34 = arith.constant 0 : index
    %c0_35 = arith.constant 0 : index
    %c0_36 = arith.constant 0 : index
    %24 = vector.load %arg9[%c0_34, %c0_35, %c0_36] : memref<4x1x32xf32, #tpu.memory_space<vmem>>, vector<1x1x32xf32>
    %25 = vector.shape_cast %24 : vector<1x1x32xf32> to vector<1x32xf32>
    %c1_37 = arith.constant 1 : index
    %c0_38 = arith.constant 0 : index
    %c0_39 = arith.constant 0 : index
    %26 = vector.load %arg9[%c1_37, %c0_38, %c0_39] : memref<4x1x32xf32, #tpu.memory_space<vmem>>, vector<1x1x32xf32>
    %27 = vector.shape_cast %26 : vector<1x1x32xf32> to vector<1x32xf32>
    %c2_40 = arith.constant 2 : index
    %c0_41 = arith.constant 0 : index
    %c0_42 = arith.constant 0 : index
    %28 = vector.load %arg9[%c2_40, %c0_41, %c0_42] : memref<4x1x32xf32, #tpu.memory_space<vmem>>, vector<1x1x32xf32>
    %29 = vector.shape_cast %28 : vector<1x1x32xf32> to vector<1x32xf32>
    %c3_43 = arith.constant 3 : index
    %c0_44 = arith.constant 0 : index
    %c0_45 = arith.constant 0 : index
    %30 = vector.load %arg9[%c3_43, %c0_44, %c0_45] : memref<4x1x32xf32, #tpu.memory_space<vmem>>, vector<1x1x32xf32>
    %31 = vector.shape_cast %30 : vector<1x1x32xf32> to vector<1x32xf32>
    %c0_46 = arith.constant 0 : index
    %c0_47 = arith.constant 0 : index
    %32 = vector.load %arg11[%c0_46, %c0_47] : memref<32x32xbf16, #tpu.memory_space<vmem>>, vector<32x32xbf16>
    %c0_48 = arith.constant 0 : index
    %c0_49 = arith.constant 0 : index
    %33 = vector.load %arg12[%c0_48, %c0_49] : memref<32x32xbf16, #tpu.memory_space<vmem>>, vector<32x32xbf16>
    %c0_50 = arith.constant 0 : index
    %c0_51 = arith.constant 0 : index
    %34 = vector.load %arg13[%c0_50, %c0_51] : memref<32x128xbf16, #tpu.memory_space<vmem>>, vector<32x128xbf16>
    %c2_i32 = arith.constant 2 : i32
    %35 = arith.muli %arg0, %c2_i32 : i32
    %c0_i32_52 = arith.constant 0 : i32
    %36 = arith.addi %35, %c0_i32_52 : i32
    %c0_53 = arith.constant 0 : index
    %c0_54 = arith.constant 0 : index
    %37 = vector.load %arg18[%c0_53, %c0_54] : memref<8x32xf32, #tpu.memory_space<vmem>>, vector<8x32xf32>
    %38 = arith.truncf %37 : vector<8x32xf32> to vector<8x32xbf16>
    %c0_55 = arith.constant 0 : index
    %c0_56 = arith.constant 0 : index
    %39 = vector.load %arg19[%c0_55, %c0_56] : memref<8x32xf32, #tpu.memory_space<vmem>>, vector<8x32xf32>
    %40 = arith.truncf %39 : vector<8x32xf32> to vector<8x32xbf16>
    %c0_57 = arith.constant 0 : index
    %c0_58 = arith.constant 0 : index
    %41 = vector.load %arg20[%c0_57, %c0_58] : memref<8x32xf32, #tpu.memory_space<vmem>>, vector<8x32xf32>
    %cst = arith.constant dense<0.000000e+00> : vector<8x32xf32>
    %42 = tpu.matmul %38, %9, %cst {dimension_numbers = #tpu.dot_dimension_numbers<[1], [0], [0], [1], [0, 0, 1, 1], [], []>} : vector<8x32xbf16>, vector<32x32xbf16>, vector<8x32xf32> -> vector<8x32xf32>
    %cst_59 = arith.constant dense<0.000000e+00> : vector<8x32xf32>
    %43 = tpu.matmul %40, %17, %cst_59 {dimension_numbers = #tpu.dot_dimension_numbers<[1], [0], [0], [1], [0, 0, 1, 1], [], []>} : vector<8x32xbf16>, vector<32x32xbf16>, vector<8x32xf32> -> vector<8x32xf32>
    %44 = arith.addf %42, %43 : vector<8x32xf32>
    %45 = vector.broadcast %25 : vector<1x32xf32> to vector<8x32xf32>
    %46 = arith.addf %44, %45 : vector<8x32xf32>
    %47 = arith.negf %46 : vector<8x32xf32>
    %48 = math.exp %47 : vector<8x32xf32>
    %cst_60 = arith.constant 1.000000e+00 : f32
    %49 = vector.broadcast %cst_60 : f32 to vector<8x32xf32>
    %50 = arith.addf %49, %48 : vector<8x32xf32>
    %51 = arith.divf %49, %50 : vector<8x32xf32>
    %cst_61 = arith.constant dense<0.000000e+00> : vector<8x32xf32>
    %52 = tpu.matmul %38, %11, %cst_61 {dimension_numbers = #tpu.dot_dimension_numbers<[1], [0], [0], [1], [0, 0, 1, 1], [], []>} : vector<8x32xbf16>, vector<32x32xbf16>, vector<8x32xf32> -> vector<8x32xf32>
    %cst_62 = arith.constant dense<0.000000e+00> : vector<8x32xf32>
    %53 = tpu.matmul %40, %19, %cst_62 {dimension_numbers = #tpu.dot_dimension_numbers<[1], [0], [0], [1], [0, 0, 1, 1], [], []>} : vector<8x32xbf16>, vector<32x32xbf16>, vector<8x32xf32> -> vector<8x32xf32>
    %54 = arith.addf %52, %53 : vector<8x32xf32>
    %55 = vector.broadcast %27 : vector<1x32xf32> to vector<8x32xf32>
    %56 = arith.addf %54, %55 : vector<8x32xf32>
    %57 = arith.negf %56 : vector<8x32xf32>
    %58 = math.exp %57 : vector<8x32xf32>
    %cst_63 = arith.constant 1.000000e+00 : f32
    %59 = vector.broadcast %cst_63 : f32 to vector<8x32xf32>
    %60 = arith.addf %59, %58 : vector<8x32xf32>
    %61 = arith.divf %59, %60 : vector<8x32xf32>
    %cst_64 = arith.constant dense<0.000000e+00> : vector<8x32xf32>
    %62 = tpu.matmul %38, %13, %cst_64 {dimension_numbers = #tpu.dot_dimension_numbers<[1], [0], [0], [1], [0, 0, 1, 1], [], []>} : vector<8x32xbf16>, vector<32x32xbf16>, vector<8x32xf32> -> vector<8x32xf32>
    %cst_65 = arith.constant dense<0.000000e+00> : vector<8x32xf32>
    %63 = tpu.matmul %40, %21, %cst_65 {dimension_numbers = #tpu.dot_dimension_numbers<[1], [0], [0], [1], [0, 0, 1, 1], [], []>} : vector<8x32xbf16>, vector<32x32xbf16>, vector<8x32xf32> -> vector<8x32xf32>
    %64 = arith.addf %62, %63 : vector<8x32xf32>
    %65 = vector.broadcast %29 : vector<1x32xf32> to vector<8x32xf32>
    %66 = arith.addf %64, %65 : vector<8x32xf32>
    %67 = math.tanh %66 : vector<8x32xf32>
    %cst_66 = arith.constant dense<0.000000e+00> : vector<8x32xf32>
    %68 = tpu.matmul %38, %15, %cst_66 {dimension_numbers = #tpu.dot_dimension_numbers<[1], [0], [0], [1], [0, 0, 1, 1], [], []>} : vector<8x32xbf16>, vector<32x32xbf16>, vector<8x32xf32> -> vector<8x32xf32>
    %cst_67 = arith.constant dense<0.000000e+00> : vector<8x32xf32>
    %69 = tpu.matmul %40, %23, %cst_67 {dimension_numbers = #tpu.dot_dimension_numbers<[1], [0], [0], [1], [0, 0, 1, 1], [], []>} : vector<8x32xbf16>, vector<32x32xbf16>, vector<8x32xf32> -> vector<8x32xf32>
    %70 = arith.addf %68, %69 : vector<8x32xf32>
    %71 = vector.broadcast %31 : vector<1x32xf32> to vector<8x32xf32>
    %72 = arith.addf %70, %71 : vector<8x32xf32>
    %73 = arith.negf %72 : vector<8x32xf32>
    %74 = math.exp %73 : vector<8x32xf32>
    %cst_68 = arith.constant 1.000000e+00 : f32
    %75 = vector.broadcast %cst_68 : f32 to vector<8x32xf32>
    %76 = arith.addf %75, %74 : vector<8x32xf32>
    %77 = arith.divf %75, %76 : vector<8x32xf32>
    %78 = arith.mulf %61, %41 : vector<8x32xf32>
    %79 = arith.mulf %51, %67 : vector<8x32xf32>
    %80 = arith.addf %78, %79 : vector<8x32xf32>
    %81 = math.tanh %80 : vector<8x32xf32>
    %82 = arith.mulf %77, %81 : vector<8x32xf32>
    %83 = arith.truncf %82 : vector<8x32xf32> to vector<8x32xbf16>
    %84 = vector.shape_cast %83 : vector<8x32xbf16> to vector<8x1x32xbf16>
    "tpu.trace_start"() <{level = 10 : i32, message = "bqh,bsh->bqs"}> : () -> ()
    %cst_69 = arith.constant dense<0.000000e+00> : vector<8x1x8xf32>
    %85 = tpu.matmul %84, %6, %cst_69 {dimension_numbers = #tpu.dot_dimension_numbers<[2], [2], [1], [1], [0, 0, 0, 1, 1, 1], [0], [0]>} : vector<8x1x32xbf16>, vector<8x8x32xbf16>, vector<8x1x8xf32> -> vector<8x1x8xf32>
    "tpu.trace_stop"() : () -> ()
    %86 = arith.addf %85, %4 : vector<8x1x8xf32>
    %cst_70 = arith.constant dense<0xFF800000> : vector<8x1xf32>
    %87 = vector.multi_reduction <maximumf>, %86, %cst_70 [2] : vector<8x1x8xf32> to vector<8x1xf32>
    %88 = vector.shape_cast %87 : vector<8x1xf32> to vector<8x1x1xf32>
    %89 = vector.broadcast %88 : vector<8x1x1xf32> to vector<8x1x8xf32>
    %90 = arith.subf %86, %89 : vector<8x1x8xf32>
    %91 = math.exp %90 : vector<8x1x8xf32>
    %cst_71 = arith.constant dense<0.000000e+00> : vector<8x1xf32>
    %92 = vector.multi_reduction <add>, %91, %cst_71 [2] : vector<8x1x8xf32> to vector<8x1xf32>
    %93 = vector.shape_cast %92 : vector<8x1xf32> to vector<8x1x1xf32>
    %94 = tpu.reciprocal %93 {approx = true} : vector<8x1x1xf32> -> vector<8x1x1xf32>
    %95 = vector.broadcast %94 : vector<8x1x1xf32> to vector<8x1x8xf32>
    %96 = arith.mulf %91, %95 : vector<8x1x8xf32>
    %97 = arith.truncf %96 : vector<8x1x8xf32> to vector<8x1x8xbf16>
    "tpu.trace_start"() <{level = 10 : i32, message = "bqs,bse->bqe"}> : () -> ()
    %cst_72 = arith.constant dense<0.000000e+00> : vector<8x1x32xf32>
    %98 = tpu.matmul %97, %5, %cst_72 {dimension_numbers = #tpu.dot_dimension_numbers<[2], [1], [1], [2], [0, 0, 0, 1, 1, 2], [0], [0]>} : vector<8x1x8xbf16>, vector<8x8x32xbf16>, vector<8x1x32xf32> -> vector<8x1x32xf32>
    "tpu.trace_stop"() : () -> ()
    %cst_73 = arith.constant dense<0.000000e+00> : vector<8x32xf32>
    %99 = vector.multi_reduction <add>, %98, %cst_73 [1] : vector<8x1x32xf32> to vector<8x32xf32>
    %100 = arith.truncf %99 : vector<8x32xf32> to vector<8x32xbf16>
    %cst_74 = arith.constant dense<0.000000e+00> : vector<8x32xf32>
    %101 = tpu.matmul %83, %32, %cst_74 {dimension_numbers = #tpu.dot_dimension_numbers<[1], [0], [0], [1], [0, 0, 1, 1], [], []>} : vector<8x32xbf16>, vector<32x32xbf16>, vector<8x32xf32> -> vector<8x32xf32>
    %cst_75 = arith.constant dense<0.000000e+00> : vector<8x32xf32>
    %102 = tpu.matmul %100, %33, %cst_75 {dimension_numbers = #tpu.dot_dimension_numbers<[1], [0], [0], [1], [0, 0, 1, 1], [], []>} : vector<8x32xbf16>, vector<32x32xbf16>, vector<8x32xf32> -> vector<8x32xf32>
    %103 = arith.addf %101, %102 : vector<8x32xf32>
    %104 = math.tanh %103 : vector<8x32xf32>
    %105 = arith.truncf %104 : vector<8x32xf32> to vector<8x32xbf16>
    %cst_76 = arith.constant dense<0.000000e+00> : vector<8x128xf32>
    %106 = tpu.matmul %105, %34, %cst_76 {dimension_numbers = #tpu.dot_dimension_numbers<[1], [0], [0], [1], [0, 0, 1, 1], [], []>} : vector<8x32xbf16>, vector<32x128xbf16>, vector<8x128xf32> -> vector<8x128xf32>
    %107 = vector.broadcast %7 : vector<1x128xf32> to vector<8x128xf32>
    %108 = arith.addf %106, %107 : vector<8x128xf32>
    %cst_77 = arith.constant dense<0xFF800000> : vector<8xf32>
    %109 = vector.multi_reduction <maximumf>, %108, %cst_77 [1] : vector<8x128xf32> to vector<8xf32>
    %110 = vector.shape_cast %109 : vector<8xf32> to vector<8x1xf32>
    %111 = vector.broadcast %110 : vector<8x1xf32> to vector<8x128xf32>
    %112 = arith.subf %108, %111 : vector<8x128xf32>
    %113 = math.exp %112 : vector<8x128xf32>
    %cst_78 = arith.constant dense<0.000000e+00> : vector<8xf32>
    %114 = vector.multi_reduction <add>, %113, %cst_78 [1] : vector<8x128xf32> to vector<8xf32>
    %115 = vector.shape_cast %114 : vector<8xf32> to vector<8x1xf32>
    %116 = math.log %115 : vector<8x1xf32>
    %117 = arith.addf %110, %116 : vector<8x1xf32>
    %118 = vector.broadcast %117 : vector<8x1xf32> to vector<8x128xf32>
    %119 = arith.subf %108, %118 : vector<8x128xf32>
    %c0_79 = arith.constant 0 : index
    %c0_80 = arith.constant 0 : index
    %c0_81 = arith.constant 0 : index
    %120 = vector.load %arg15[%c0_79, %c0_80, %c0_81] : memref<2x8x128xf32, #tpu.memory_space<vmem>>, vector<1x8x128xf32>
    %121 = vector.shape_cast %120 : vector<1x8x128xf32> to vector<8x128xf32>
    %122 = vector.shape_cast %119 : vector<8x128xf32> to vector<1x8x128xf32>
    tpu.vector_store %arg15[%c0_79, %c0_80, %c0_81], %122 {strides = array<i32>} : memref<2x8x128xf32, #tpu.memory_space<vmem>>, vector<1x8x128xf32>,
    %123 = vector.broadcast %3 : vector<1x32xf32> to vector<8x32xf32>
    %124 = arith.subf %104, %123 : vector<8x32xf32>
    %125 = math.absf %124 : vector<8x32xf32>
    %126 = math.absf %3 : vector<1x32xf32>
    %cst_82 = arith.constant 1.000000e-03 : f32
    %127 = vector.broadcast %cst_82 : f32 to vector<1x32xf32>
    %128 = arith.mulf %127, %126 : vector<1x32xf32>
    %cst_83 = arith.constant 9.99999993E-9 : f32
    %129 = vector.broadcast %cst_83 : f32 to vector<1x32xf32>
    %130 = arith.addf %129, %128 : vector<1x32xf32>
    %131 = vector.broadcast %130 : vector<1x32xf32> to vector<8x32xf32>
    %132 = arith.cmpf ole, %125, %131 : vector<8x32xf32>
    %133 = arith.extui %132 : vector<8x32xi1> to vector<8x32xi32>
    %cst_84 = arith.constant dense<2147483647> : vector<8xi32>
    %134 = vector.multi_reduction <minsi>, %133, %cst_84 [1] : vector<8x32xi32> to vector<8xi32>
    %135 = vector.shape_cast %134 : vector<8xi32> to vector<8x1xi32>
    %c0_85 = arith.constant 0 : index
    %c0_86 = arith.constant 0 : index
    %136 = vector.load %arg21[%c0_85, %c0_86] : memref<8x1xi32, #tpu.memory_space<vmem>>, vector<8x1xi32>
    %c0_i32_87 = arith.constant 0 : i32
    %137 = vector.broadcast %c0_i32_87 : i32 to vector<8x1xi32>
    %138 = arith.cmpi eq, %136, %137 : vector<8x1xi32>
    %c0_i32_88 = arith.constant 0 : i32
    %139 = vector.broadcast %c0_i32_88 : i32 to vector<8x1xi32>
    %140 = arith.cmpi ne, %135, %139 : vector<8x1xi32>
    %141 = arith.andi %138, %140 : vector<8x1xi1>
    %c1_i32 = arith.constant 1 : i32
    %142 = arith.addi %36, %c1_i32 : i32
    %c0_89 = arith.constant 0 : index
    %c0_90 = arith.constant 0 : index
    %143 = vector.load %arg21[%c0_89, %c0_90] : memref<8x1xi32, #tpu.memory_space<vmem>>, vector<8x1xi32>
    %144 = vector.broadcast %142 : i32 to vector<8x1xi32>
    %145 = arith.select %141, %144, %143 : vector<8x1xi1>, vector<8x1xi32>
    %c0_91 = arith.constant 0 : index
    %c0_92 = arith.constant 0 : index
    %146 = vector.load %arg21[%c0_91, %c0_92] : memref<8x1xi32, #tpu.memory_space<vmem>>, vector<8x1xi32>
    tpu.vector_store %arg21[%c0_91, %c0_92], %145 {strides = array<i32>} : memref<8x1xi32, #tpu.memory_space<vmem>>, vector<8x1xi32>,
    %c0_93 = arith.constant 0 : index
    %c0_94 = arith.constant 0 : index
    %147 = vector.load %arg18[%c0_93, %c0_94] : memref<8x32xf32, #tpu.memory_space<vmem>>, vector<8x32xf32>
    tpu.vector_store %arg18[%c0_93, %c0_94], %104 {strides = array<i32>} : memref<8x32xf32, #tpu.memory_space<vmem>>, vector<8x32xf32>,
    %c0_95 = arith.constant 0 : index
    %c0_96 = arith.constant 0 : index
    %148 = vector.load %arg19[%c0_95, %c0_96] : memref<8x32xf32, #tpu.memory_space<vmem>>, vector<8x32xf32>
    tpu.vector_store %arg19[%c0_95, %c0_96], %82 {strides = array<i32>} : memref<8x32xf32, #tpu.memory_space<vmem>>, vector<8x32xf32>,
    %c0_97 = arith.constant 0 : index
    %c0_98 = arith.constant 0 : index
    %149 = vector.load %arg20[%c0_97, %c0_98] : memref<8x32xf32, #tpu.memory_space<vmem>>, vector<8x32xf32>
    tpu.vector_store %arg20[%c0_97, %c0_98], %80 {strides = array<i32>} : memref<8x32xf32, #tpu.memory_space<vmem>>, vector<8x32xf32>,
    %c2_i32_99 = arith.constant 2 : i32
    %150 = arith.muli %arg0, %c2_i32_99 : i32
    %c1_i32_100 = arith.constant 1 : i32
    %151 = arith.addi %150, %c1_i32_100 : i32
    %c0_101 = arith.constant 0 : index
    %c0_102 = arith.constant 0 : index
    %152 = vector.load %arg18[%c0_101, %c0_102] : memref<8x32xf32, #tpu.memory_space<vmem>>, vector<8x32xf32>
    %153 = arith.truncf %152 : vector<8x32xf32> to vector<8x32xbf16>
    %c0_103 = arith.constant 0 : index
    %c0_104 = arith.constant 0 : index
    %154 = vector.load %arg19[%c0_103, %c0_104] : memref<8x32xf32, #tpu.memory_space<vmem>>, vector<8x32xf32>
    %155 = arith.truncf %154 : vector<8x32xf32> to vector<8x32xbf16>
    %c0_105 = arith.constant 0 : index
    %c0_106 = arith.constant 0 : index
    %156 = vector.load %arg20[%c0_105, %c0_106] : memref<8x32xf32, #tpu.memory_space<vmem>>, vector<8x32xf32>
    %cst_107 = arith.constant dense<0.000000e+00> : vector<8x32xf32>
    %157 = tpu.matmul %153, %9, %cst_107 {dimension_numbers = #tpu.dot_dimension_numbers<[1], [0], [0], [1], [0, 0, 1, 1], [], []>} : vector<8x32xbf16>, vector<32x32xbf16>, vector<8x32xf32> -> vector<8x32xf32>
    %cst_108 = arith.constant dense<0.000000e+00> : vector<8x32xf32>
    %158 = tpu.matmul %155, %17, %cst_108 {dimension_numbers = #tpu.dot_dimension_numbers<[1], [0], [0], [1], [0, 0, 1, 1], [], []>} : vector<8x32xbf16>, vector<32x32xbf16>, vector<8x32xf32> -> vector<8x32xf32>
    %159 = arith.addf %157, %158 : vector<8x32xf32>
    %160 = vector.broadcast %25 : vector<1x32xf32> to vector<8x32xf32>
    %161 = arith.addf %159, %160 : vector<8x32xf32>
    %162 = arith.negf %161 : vector<8x32xf32>
    %163 = math.exp %162 : vector<8x32xf32>
    %cst_109 = arith.constant 1.000000e+00 : f32
    %164 = vector.broadcast %cst_109 : f32 to vector<8x32xf32>
    %165 = arith.addf %164, %163 : vector<8x32xf32>
    %166 = arith.divf %164, %165 : vector<8x32xf32>
    %cst_110 = arith.constant dense<0.000000e+00> : vector<8x32xf32>
    %167 = tpu.matmul %153, %11, %cst_110 {dimension_numbers = #tpu.dot_dimension_numbers<[1], [0], [0], [1], [0, 0, 1, 1], [], []>} : vector<8x32xbf16>, vector<32x32xbf16>, vector<8x32xf32> -> vector<8x32xf32>
    %cst_111 = arith.constant dense<0.000000e+00> : vector<8x32xf32>
    %168 = tpu.matmul %155, %19, %cst_111 {dimension_numbers = #tpu.dot_dimension_numbers<[1], [0], [0], [1], [0, 0, 1, 1], [], []>} : vector<8x32xbf16>, vector<32x32xbf16>, vector<8x32xf32> -> vector<8x32xf32>
    %169 = arith.addf %167, %168 : vector<8x32xf32>
    %170 = vector.broadcast %27 : vector<1x32xf32> to vector<8x32xf32>
    %171 = arith.addf %169, %170 : vector<8x32xf32>
    %172 = arith.negf %171 : vector<8x32xf32>
    %173 = math.exp %172 : vector<8x32xf32>
    %cst_112 = arith.constant 1.000000e+00 : f32
    %174 = vector.broadcast %cst_112 : f32 to vector<8x32xf32>
    %175 = arith.addf %174, %173 : vector<8x32xf32>
    %176 = arith.divf %174, %175 : vector<8x32xf32>
    %cst_113 = arith.constant dense<0.000000e+00> : vector<8x32xf32>
    %177 = tpu.matmul %153, %13, %cst_113 {dimension_numbers = #tpu.dot_dimension_numbers<[1], [0], [0], [1], [0, 0, 1, 1], [], []>} : vector<8x32xbf16>, vector<32x32xbf16>, vector<8x32xf32> -> vector<8x32xf32>
    %cst_114 = arith.constant dense<0.000000e+00> : vector<8x32xf32>
    %178 = tpu.matmul %155, %21, %cst_114 {dimension_numbers = #tpu.dot_dimension_numbers<[1], [0], [0], [1], [0, 0, 1, 1], [], []>} : vector<8x32xbf16>, vector<32x32xbf16>, vector<8x32xf32> -> vector<8x32xf32>
    %179 = arith.addf %177, %178 : vector<8x32xf32>
    %180 = vector.broadcast %29 : vector<1x32xf32> to vector<8x32xf32>
    %181 = arith.addf %179, %180 : vector<8x32xf32>
    %182 = math.tanh %181 : vector<8x32xf32>
    %cst_115 = arith.constant dense<0.000000e+00> : vector<8x32xf32>
    %183 = tpu.matmul %153, %15, %cst_115 {dimension_numbers = #tpu.dot_dimension_numbers<[1], [0], [0], [1], [0, 0, 1, 1], [], []>} : vector<8x32xbf16>, vector<32x32xbf16>, vector<8x32xf32> -> vector<8x32xf32>
    %cst_116 = arith.constant dense<0.000000e+00> : vector<8x32xf32>
    %184 = tpu.matmul %155, %23, %cst_116 {dimension_numbers = #tpu.dot_dimension_numbers<[1], [0], [0], [1], [0, 0, 1, 1], [], []>} : vector<8x32xbf16>, vector<32x32xbf16>, vector<8x32xf32> -> vector<8x32xf32>
    %185 = arith.addf %183, %184 : vector<8x32xf32>
    %186 = vector.broadcast %31 : vector<1x32xf32> to vector<8x32xf32>
    %187 = arith.addf %185, %186 : vector<8x32xf32>
    %188 = arith.negf %187 : vector<8x32xf32>
    %189 = math.exp %188 : vector<8x32xf32>
    %cst_117 = arith.constant 1.000000e+00 : f32
    %190 = vector.broadcast %cst_117 : f32 to vector<8x32xf32>
    %191 = arith.addf %190, %189 : vector<8x32xf32>
    %192 = arith.divf %190, %191 : vector<8x32xf32>
    %193 = arith.mulf %176, %156 : vector<8x32xf32>
    %194 = arith.mulf %166, %182 : vector<8x32xf32>
    %195 = arith.addf %193, %194 : vector<8x32xf32>
    %196 = math.tanh %195 : vector<8x32xf32>
    %197 = arith.mulf %192, %196 : vector<8x32xf32>
    %198 = arith.truncf %197 : vector<8x32xf32> to vector<8x32xbf16>
    %199 = vector.shape_cast %198 : vector<8x32xbf16> to vector<8x1x32xbf16>
    "tpu.trace_start"() <{level = 10 : i32, message = "bqh,bsh->bqs"}> : () -> ()
    %cst_118 = arith.constant dense<0.000000e+00> : vector<8x1x8xf32>
    %200 = tpu.matmul %199, %6, %cst_118 {dimension_numbers = #tpu.dot_dimension_numbers<[2], [2], [1], [1], [0, 0, 0, 1, 1, 1], [0], [0]>} : vector<8x1x32xbf16>, vector<8x8x32xbf16>, vector<8x1x8xf32> -> vector<8x1x8xf32>
    "tpu.trace_stop"() : () -> ()
    %201 = arith.addf %200, %4 : vector<8x1x8xf32>
    %cst_119 = arith.constant dense<0xFF800000> : vector<8x1xf32>
    %202 = vector.multi_reduction <maximumf>, %201, %cst_119 [2] : vector<8x1x8xf32> to vector<8x1xf32>
    %203 = vector.shape_cast %202 : vector<8x1xf32> to vector<8x1x1xf32>
    %204 = vector.broadcast %203 : vector<8x1x1xf32> to vector<8x1x8xf32>
    %205 = arith.subf %201, %204 : vector<8x1x8xf32>
    %206 = math.exp %205 : vector<8x1x8xf32>
    %cst_120 = arith.constant dense<0.000000e+00> : vector<8x1xf32>
    %207 = vector.multi_reduction <add>, %206, %cst_120 [2] : vector<8x1x8xf32> to vector<8x1xf32>
    %208 = vector.shape_cast %207 : vector<8x1xf32> to vector<8x1x1xf32>
    %209 = tpu.reciprocal %208 {approx = true} : vector<8x1x1xf32> -> vector<8x1x1xf32>
    %210 = vector.broadcast %209 : vector<8x1x1xf32> to vector<8x1x8xf32>
    %211 = arith.mulf %206, %210 : vector<8x1x8xf32>
    %212 = arith.truncf %211 : vector<8x1x8xf32> to vector<8x1x8xbf16>
    "tpu.trace_start"() <{level = 10 : i32, message = "bqs,bse->bqe"}> : () -> ()
    %cst_121 = arith.constant dense<0.000000e+00> : vector<8x1x32xf32>
    %213 = tpu.matmul %212, %5, %cst_121 {dimension_numbers = #tpu.dot_dimension_numbers<[2], [1], [1], [2], [0, 0, 0, 1, 1, 2], [0], [0]>} : vector<8x1x8xbf16>, vector<8x8x32xbf16>, vector<8x1x32xf32> -> vector<8x1x32xf32>
    "tpu.trace_stop"() : () -> ()
    %cst_122 = arith.constant dense<0.000000e+00> : vector<8x32xf32>
    %214 = vector.multi_reduction <add>, %213, %cst_122 [1] : vector<8x1x32xf32> to vector<8x32xf32>
    %215 = arith.truncf %214 : vector<8x32xf32> to vector<8x32xbf16>
    %cst_123 = arith.constant dense<0.000000e+00> : vector<8x32xf32>
    %216 = tpu.matmul %198, %32, %cst_123 {dimension_numbers = #tpu.dot_dimension_numbers<[1], [0], [0], [1], [0, 0, 1, 1], [], []>} : vector<8x32xbf16>, vector<32x32xbf16>, vector<8x32xf32> -> vector<8x32xf32>
    %cst_124 = arith.constant dense<0.000000e+00> : vector<8x32xf32>
    %217 = tpu.matmul %215, %33, %cst_124 {dimension_numbers = #tpu.dot_dimension_numbers<[1], [0], [0], [1], [0, 0, 1, 1], [], []>} : vector<8x32xbf16>, vector<32x32xbf16>, vector<8x32xf32> -> vector<8x32xf32>
    %218 = arith.addf %216, %217 : vector<8x32xf32>
    %219 = math.tanh %218 : vector<8x32xf32>
    %220 = arith.truncf %219 : vector<8x32xf32> to vector<8x32xbf16>
    %cst_125 = arith.constant dense<0.000000e+00> : vector<8x128xf32>
    %221 = tpu.matmul %220, %34, %cst_125 {dimension_numbers = #tpu.dot_dimension_numbers<[1], [0], [0], [1], [0, 0, 1, 1], [], []>} : vector<8x32xbf16>, vector<32x128xbf16>, vector<8x128xf32> -> vector<8x128xf32>
    %222 = vector.broadcast %7 : vector<1x128xf32> to vector<8x128xf32>
    %223 = arith.addf %221, %222 : vector<8x128xf32>
    %cst_126 = arith.constant dense<0xFF800000> : vector<8xf32>
    %224 = vector.multi_reduction <maximumf>, %223, %cst_126 [1] : vector<8x128xf32> to vector<8xf32>
    %225 = vector.shape_cast %224 : vector<8xf32> to vector<8x1xf32>
    %226 = vector.broadcast %225 : vector<8x1xf32> to vector<8x128xf32>
    %227 = arith.subf %223, %226 : vector<8x128xf32>
    %228 = math.exp %227 : vector<8x128xf32>
    %cst_127 = arith.constant dense<0.000000e+00> : vector<8xf32>
    %229 = vector.multi_reduction <add>, %228, %cst_127 [1] : vector<8x128xf32> to vector<8xf32>
    %230 = vector.shape_cast %229 : vector<8xf32> to vector<8x1xf32>
    %231 = math.log %230 : vector<8x1xf32>
    %232 = arith.addf %225, %231 : vector<8x1xf32>
    %233 = vector.broadcast %232 : vector<8x1xf32> to vector<8x128xf32>
    %234 = arith.subf %223, %233 : vector<8x128xf32>
    %c1_128 = arith.constant 1 : index
    %c0_129 = arith.constant 0 : index
    %c0_130 = arith.constant 0 : index
    %235 = vector.load %arg15[%c1_128, %c0_129, %c0_130] : memref<2x8x128xf32, #tpu.memory_space<vmem>>, vector<1x8x128xf32>
    %236 = vector.shape_cast %235 : vector<1x8x128xf32> to vector<8x128xf32>
    %237 = vector.shape_cast %234 : vector<8x128xf32> to vector<1x8x128xf32>
    tpu.vector_store %arg15[%c1_128, %c0_129, %c0_130], %237 {strides = array<i32>} : memref<2x8x128xf32, #tpu.memory_space<vmem>>, vector<1x8x128xf32>,
    %238 = vector.broadcast %3 : vector<1x32xf32> to vector<8x32xf32>
    %239 = arith.subf %219, %238 : vector<8x32xf32>
    %240 = math.absf %239 : vector<8x32xf32>
    %241 = math.absf %3 : vector<1x32xf32>
    %cst_131 = arith.constant 1.000000e-03 : f32
    %242 = vector.broadcast %cst_131 : f32 to vector<1x32xf32>
    %243 = arith.mulf %242, %241 : vector<1x32xf32>
    %cst_132 = arith.constant 9.99999993E-9 : f32
    %244 = vector.broadcast %cst_132 : f32 to vector<1x32xf32>
    %245 = arith.addf %244, %243 : vector<1x32xf32>
    %246 = vector.broadcast %245 : vector<1x32xf32> to vector<8x32xf32>
    %247 = arith.cmpf ole, %240, %246 : vector<8x32xf32>
    %248 = arith.extui %247 : vector<8x32xi1> to vector<8x32xi32>
    %cst_133 = arith.constant dense<2147483647> : vector<8xi32>
    %249 = vector.multi_reduction <minsi>, %248, %cst_133 [1] : vector<8x32xi32> to vector<8xi32>
    %250 = vector.shape_cast %249 : vector<8xi32> to vector<8x1xi32>
    %c0_134 = arith.constant 0 : index
    %c0_135 = arith.constant 0 : index
    %251 = vector.load %arg21[%c0_134, %c0_135] : memref<8x1xi32, #tpu.memory_space<vmem>>, vector<8x1xi32>
    %c0_i32_136 = arith.constant 0 : i32
    %252 = vector.broadcast %c0_i32_136 : i32 to vector<8x1xi32>
    %253 = arith.cmpi eq, %251, %252 : vector<8x1xi32>
    %c0_i32_137 = arith.constant 0 : i32
    %254 = vector.broadcast %c0_i32_137 : i32 to vector<8x1xi32>
    %255 = arith.cmpi ne, %250, %254 : vector<8x1xi32>
    %256 = arith.andi %253, %255 : vector<8x1xi1>
    %c1_i32_138 = arith.constant 1 : i32
    %257 = arith.addi %151, %c1_i32_138 : i32
    %c0_139 = arith.constant 0 : index
    %c0_140 = arith.constant 0 : index
    %258 = vector.load %arg21[%c0_139, %c0_140] : memref<8x1xi32, #tpu.memory_space<vmem>>, vector<8x1xi32>
    %259 = vector.broadcast %257 : i32 to vector<8x1xi32>
    %260 = arith.select %256, %259, %258 : vector<8x1xi1>, vector<8x1xi32>
    %c0_141 = arith.constant 0 : index
    %c0_142 = arith.constant 0 : index
    %261 = vector.load %arg21[%c0_141, %c0_142] : memref<8x1xi32, #tpu.memory_space<vmem>>, vector<8x1xi32>
    tpu.vector_store %arg21[%c0_141, %c0_142], %260 {strides = array<i32>} : memref<8x1xi32, #tpu.memory_space<vmem>>, vector<8x1xi32>,
    %c0_143 = arith.constant 0 : index
    %c0_144 = arith.constant 0 : index
    %262 = vector.load %arg18[%c0_143, %c0_144] : memref<8x32xf32, #tpu.memory_space<vmem>>, vector<8x32xf32>
    tpu.vector_store %arg18[%c0_143, %c0_144], %219 {strides = array<i32>} : memref<8x32xf32, #tpu.memory_space<vmem>>, vector<8x32xf32>,
    %c0_145 = arith.constant 0 : index
    %c0_146 = arith.constant 0 : index
    %263 = vector.load %arg19[%c0_145, %c0_146] : memref<8x32xf32, #tpu.memory_space<vmem>>, vector<8x32xf32>
    tpu.vector_store %arg19[%c0_145, %c0_146], %197 {strides = array<i32>} : memref<8x32xf32, #tpu.memory_space<vmem>>, vector<8x32xf32>,
    %c0_147 = arith.constant 0 : index
    %c0_148 = arith.constant 0 : index
    %264 = vector.load %arg20[%c0_147, %c0_148] : memref<8x32xf32, #tpu.memory_space<vmem>>, vector<8x32xf32>
    tpu.vector_store %arg20[%c0_147, %c0_148], %195 {strides = array<i32>} : memref<8x32xf32, #tpu.memory_space<vmem>>, vector<8x32xf32>,
    %c49_i32 = arith.constant 49 : i32
    %265 = arith.cmpi eq, %arg0, %c49_i32 : i32
    %266 = arith.extui %265 : i1 to i32
    %c0_i32_149 = arith.constant 0 : i32
    %267 = arith.cmpi ne, %266, %c0_i32_149 : i32
    scf.if %267 {
      %c0_150 = arith.constant 0 : index
      %c0_151 = arith.constant 0 : index
      %268 = vector.load %arg21[%c0_150, %c0_151] : memref<8x1xi32, #tpu.memory_space<vmem>>, vector<8x1xi32>
      %269 = arith.sitofp %268 : vector<8x1xi32> to vector<8x1xf32>
      %cst_152 = arith.constant dense<0x7F800000> : vector<1xf32>
      %270 = vector.multi_reduction <minimumf>, %269, %cst_152 [0] : vector<8x1xf32> to vector<1xf32>
      %271 = vector.shape_cast %270 : vector<1xf32> to vector<1x1xf32>
      %cst_153 = arith.constant 0.000000e+00 : f32
      %272 = vector.broadcast %cst_153 : f32 to vector<1x1xf32>
      %273 = arith.cmpf ogt, %271, %272 : vector<1x1xf32>
      %cst_154 = arith.constant dense<0xFF800000> : vector<1xf32>
      %274 = vector.multi_reduction <maximumf>, %269, %cst_154 [0] : vector<8x1xf32> to vector<1xf32>
      %275 = vector.shape_cast %274 : vector<1xf32> to vector<1x1xf32>
      %cst_155 = arith.constant 1.000000e+02 : f32
      %276 = vector.broadcast %cst_155 : f32 to vector<1x1xf32>
      %277 = arith.select %273, %275, %276 : vector<1x1xi1>, vector<1x1xf32>
      %cst_156 = arith.constant 0.000000e+00 : f32
      %278 = vector.broadcast %cst_156 : f32 to vector<8x1xf32>
      %279 = vector.broadcast %277 : vector<1x1xf32> to vector<8x1xf32>
      %280 = arith.addf %278, %279 : vector<8x1xf32>
      %281 = arith.fptosi %280 : vector<8x1xf32> to vector<8x1xi32>
      %c0_157 = arith.constant 0 : index
      %c0_158 = arith.constant 0 : index
      %282 = vector.load %arg16[%c0_157, %c0_158] : memref<8x1xi32, #tpu.memory_space<vmem>>, vector<8x1xi32>
      tpu.vector_store %arg16[%c0_157, %c0_158], %281 {strides = array<i32>} : memref<8x1xi32, #tpu.memory_space<vmem>>, vector<8x1xi32>,
    } else {
    }
    return
  }
  func.func @transform_0(%arg0: i32) -> (i32, i32) {
    %c0_i32 = arith.constant 0 : i32
    %c0_i32_0 = arith.constant 0 : i32
    %c0_i32_1 = arith.constant 0 : i32
    return %c0_i32, %c0_i32_0 : i32, i32
  }
  func.func @transform_1(%arg0: i32) -> (i32, i32) {
    %c0_i32 = arith.constant 0 : i32
    %c0_i32_0 = arith.constant 0 : i32
    %c0_i32_1 = arith.constant 0 : i32
    return %c0_i32, %c0_i32_0 : i32, i32
  }
  func.func @transform_2(%arg0: i32) -> (i32, i32, i32) {
    %c0_i32 = arith.constant 0 : i32
    %c0_i32_0 = arith.constant 0 : i32
    %c0_i32_1 = arith.constant 0 : i32
    %c0_i32_2 = arith.constant 0 : i32
    return %c0_i32, %c0_i32_0, %c0_i32_1 : i32, i32, i32
  }
  func.func @transform_3(%arg0: i32) -> (i32, i32, i32) {
    %c0_i32 = arith.constant 0 : i32
    %c0_i32_0 = arith.constant 0 : i32
    %c0_i32_1 = arith.constant 0 : i32
    %c0_i32_2 = arith.constant 0 : i32
    return %c0_i32, %c0_i32_0, %c0_i32_1 : i32, i32, i32
  }
  func.func @transform_4(%arg0: i32) -> (i32, i32) {
    %c0_i32 = arith.constant 0 : i32
    %c0_i32_0 = arith.constant 0 : i32
    %c0_i32_1 = arith.constant 0 : i32
    return %c0_i32, %c0_i32_0 : i32, i32
  }
  func.func @transform_5(%arg0: i32) -> (i32, i32) {
    %c0_i32 = arith.constant 0 : i32
    %c0_i32_0 = arith.constant 0 : i32
    %c0_i32_1 = arith.constant 0 : i32
    return %c0_i32, %c0_i32_0 : i32, i32
  }
  func.func @transform_6(%arg0: i32) -> (i32, i32, i32) {
    %c0_i32 = arith.constant 0 : i32
    %c0_i32_0 = arith.constant 0 : i32
    %c0_i32_1 = arith.constant 0 : i32
    %c0_i32_2 = arith.constant 0 : i32
    return %c0_i32, %c0_i32_0, %c0_i32_1 : i32, i32, i32
  }
  func.func @transform_7(%arg0: i32) -> (i32, i32, i32) {
    %c0_i32 = arith.constant 0 : i32
    %c0_i32_0 = arith.constant 0 : i32
    %c0_i32_1 = arith.constant 0 : i32
    %c0_i32_2 = arith.constant 0 : i32
    return %c0_i32, %c0_i32_0, %c0_i32_1 : i32, i32, i32
  }
  func.func @transform_8(%arg0: i32) -> (i32, i32, i32) {
    %c0_i32 = arith.constant 0 : i32
    %c0_i32_0 = arith.constant 0 : i32
    %c0_i32_1 = arith.constant 0 : i32
    %c0_i32_2 = arith.constant 0 : i32
    return %c0_i32, %c0_i32_0, %c0_i32_1 : i32, i32, i32
  }
  func.func @transform_9(%arg0: i32) -> (i32, i32) {
    %c0_i32 = arith.constant 0 : i32
    %c0_i32_0 = arith.constant 0 : i32
    %c0_i32_1 = arith.constant 0 : i32
    return %c0_i32, %c0_i32_0 : i32, i32
  }
  func.func @transform_10(%arg0: i32) -> (i32, i32) {
    %c0_i32 = arith.constant 0 : i32
    %c0_i32_0 = arith.constant 0 : i32
    %c0_i32_1 = arith.constant 0 : i32
    return %c0_i32, %c0_i32_0 : i32, i32
  }
  func.func @transform_11(%arg0: i32) -> (i32, i32) {
    %c0_i32 = arith.constant 0 : i32
    %c0_i32_0 = arith.constant 0 : i32
    %c0_i32_1 = arith.constant 0 : i32
    return %c0_i32, %c0_i32_0 : i32, i32
  }
  func.func @transform_12(%arg0: i32) -> (i32, i32) {
    %c0_i32 = arith.constant 0 : i32
    %c0_i32_0 = arith.constant 0 : i32
    %c0_i32_1 = arith.constant 0 : i32
    return %c0_i32, %c0_i32_0 : i32, i32
  }
  func.func @transform_13(%arg0: i32) -> (i32, i32) {
    %c0_i32 = arith.constant 0 : i32
    %c0_i32_0 = arith.constant 0 : i32
    %c0_i32_1 = arith.constant 0 : i32
    return %c0_i32, %c0_i32_0 : i32, i32
  }
  func.func @transform_14(%arg0: i32) -> (i32, i32, i32) {
    %c0_i32 = arith.constant 0 : i32
    %c0_i32_0 = arith.constant 0 : i32
    %c0_i32_1 = arith.constant 0 : i32
    return %arg0, %c0_i32, %c0_i32_0 : i32, i32, i32
  }
  func.func @transform_15(%arg0: i32) -> (i32, i32) {
    %c0_i32 = arith.constant 0 : i32
    %c0_i32_0 = arith.constant 0 : i32
    %c0_i32_1 = arith.constant 0 : i32
    return %c0_i32, %c0_i32_0 : i32, i32
  }
}

</mosaic_0001>

<llo_original>
// kernel: my_decoder_ver_3_forward.1
$region0: #{my_decoder_ver_3_forward.1}
  #allocation0 [shape = 'u32[]', space=smem, size = 0x4, offset = 0x4, fixed_abs, tag = 'smem constant byte address 0x4 - core index']
  #allocation1 [shape = 'u32[144,128]{1,0:T(1,128)}', space=vmem, size = 0x12000, scoped, tag = 'internal scratch']
  #allocation2 [shape = 'bf16[8,8,32]{2,1,0:T(8,128)(2,1)}', space=vmem, size = 0x4000, scoped, tag = 'scratch operand']
  #allocation3 [shape = 'f32[8,32]{1,0:T(8,128)}', space=vmem, size = 0x1000, scoped, tag = 'scratch operand']
  #allocation4 [shape = 'f32[8,32]{1,0:T(8,128)}', space=vmem, size = 0x1000, scoped, tag = 'scratch operand']
  #allocation5 [shape = 'f32[8,32]{1,0:T(8,128)}', space=vmem, size = 0x1000, scoped, tag = 'scratch operand']
  #allocation6 [shape = 's32[8,1]{1,0:T(8,128)}', space=vmem, size = 0x1000, scoped, tag = 'scratch operand']
  %s0 = inlined_call_operand.vmem [shape: f32[8,32], index: 0, kind: input, shape index: {}]
  %s1 = inlined_call_operand.vmem [shape: f32[8,32], index: 1, kind: input, shape index: {}]
  %s2 = inlined_call_operand.vmem [shape: bf16[8,8,32], index: 2, kind: input, shape index: {}]
  %s3 = inlined_call_operand.vmem [shape: f32[8,1,8], index: 3, kind: input, shape index: {}]
  %s4 = inlined_call_operand.vmem [shape: f32[1,32], index: 4, kind: input, shape index: {}]
  %s5 = inlined_call_operand.vmem [shape: s32[8,1], index: 5, kind: input, shape index: {}]
  %s6 = inlined_call_operand.vmem [shape: bf16[4,32,32], index: 6, kind: input, shape index: {}]
  %s7 = inlined_call_operand.vmem [shape: bf16[4,32,32], index: 7, kind: input, shape index: {}]
  %s8 = inlined_call_operand.vmem [shape: f32[4,1,32], index: 8, kind: input, shape index: {}]
  %s9 = inlined_call_operand.vmem [shape: bf16[32,32], index: 9, kind: input, shape index: {}]
  %s10 = inlined_call_operand.vmem [shape: bf16[32,32], index: 10, kind: input, shape index: {}]
  %s11 = inlined_call_operand.vmem [shape: bf16[32,32], index: 11, kind: input, shape index: {}]
  %s12 = inlined_call_operand.vmem [shape: bf16[32,128], index: 12, kind: input, shape index: {}]
  %s13 = inlined_call_operand.vmem [shape: f32[1,128], index: 13, kind: input, shape index: {}]
  %s14 = inlined_call_operand.vmem [shape: f32[100,8,128], index: 14, kind: output, shape index: {0}]
  %s15 = inlined_call_operand.vmem [shape: s32[8,1], index: 15, kind: output, shape index: {1}]
  %16 = xla_tuple %s14, %s15
  %s17 = sld [smem:[#allocation0]]
  $region105: #{my_decoder_ver_3_forward.1} parent=0
    _
  %s19 = ssub.s32 1, %s17
  %s20 = scalar_select 0, %s19, %s17
  loop: start=0, step=1, limit=52
  $region2: #{my_decoder_ver_3_forward.1} parent=0 // loop_pre_header
    _
  $region3: #{my_decoder_ver_3_forward.1} parent=0 // loop_header
    %s22 = sphi 0, %s26
    %p23 = scmp.ge.s32.totalorder %s22, 52
    %s30 = sphi 0, %s30
    %s32 = sphi 0, %s30
    %s33 = sphi 0, %s32
    %s47 = sphi 0, %s33
    %s51 = sphi 0, %s51
    %s53 = sphi 0, %s51
    %s54 = sphi 0, %s53
    %s68 = sphi 0, %s54
    %s72 = sphi 0, %s72
    %s74 = sphi 0, %s72
    %s75 = sphi 0, %s74
    %s89 = sphi 0, %s75
    %s93 = sphi 0, %s93
    %s95 = sphi 0, %s93
    %s96 = sphi 0, %s95
    %s110 = sphi 0, %s96
    %s114 = sphi 0, %s114
    %s116 = sphi 0, %s114
    %s117 = sphi 0, %s116
    %s131 = sphi 0, %s117
    %s135 = sphi 0, %s135
    %s137 = sphi 0, %s135
    %s138 = sphi 0, %s137
    %s152 = sphi 0, %s138
    %s156 = sphi 0, %s156
    %s158 = sphi 0, %s156
    %s159 = sphi 0, %s158
    %s173 = sphi 0, %s159
    %s177 = sphi 0, %s177
    %s179 = sphi 0, %s177
    %s180 = sphi 0, %s179
    %s194 = sphi 0, %s180
    %s198 = sphi 0, %s198
    %s200 = sphi 0, %s198
    %s201 = sphi 0, %s200
    %s215 = sphi 0, %s201
    %s219 = sphi 0, %s219
    %s221 = sphi 0, %s219
    %s222 = sphi 0, %s221
    %s236 = sphi 0, %s222
    %s240 = sphi 0, %s240
    %s242 = sphi 0, %s240
    %s243 = sphi 0, %s242
    %s257 = sphi 0, %s243
    %s261 = sphi 0, %s261
    %s263 = sphi 0, %s261
    %s264 = sphi 0, %s263
    %s278 = sphi 0, %s264
    %s282 = sphi 0, %s282
    %s284 = sphi 0, %s282
    %s285 = sphi 0, %s284
    %s299 = sphi 0, %s285
    %s303 = sphi 0, %s303
    %s305 = sphi 0, %s303
    %s306 = sphi 0, %s305
    %s320 = sphi 0, %s306
    %s326 = sphi 0, %s328
    %s329 = sphi 0, %s326
    %s330 = sphi 0, %s329
    %s346 = sphi 0, %s330
    %s350 = sphi 0, %s350
    %s352 = sphi 0, %s350
    %s353 = sphi 0, %s352
    %s367 = sphi 0, %s353
  $region4: #{my_decoder_ver_3_forward.1} parent=0 // loop_header_branch
    %25 = sbr.rel (%p23) target = $region8
  $region5: #{my_decoder_ver_3_forward.1} parent=0 // loop_body
    %s27 = ssub.s32 %s22, 1
    %s28 = ssub.s32 %s22, 2
    %s29 = sadd.s32 %s22, 1
    %s31 = sadd.s32 %s30, 1
    %p34 = scmp.eq.s32.totalorder %s22, 49
    %p35 = scmp.ne.s32.totalorder %s30, %s32
    %p36 = scmp.eq.s32.totalorder %s22, 0
    %p37 = por %p35, %p36
    %p38 = scmp.ne.s32.totalorder %s30, %s32
    %p39 = scmp.eq.s32.totalorder %s27, 49
    %p40 = por %p38, %p39
    %p41 = scmp.ne.s32.totalorder %s32, %s33
    %p42 = scmp.eq.s32.totalorder %s27, 0
    %p43 = por %p41, %p42
    %p44 = scmp.ne.s32.totalorder %s32, %s33
    %p45 = scmp.eq.s32.totalorder %s28, 49
    %p46 = por %p44, %p45
    %p48 = scmp.ne.s32.totalorder %s33, %s47
    %p49 = scmp.eq.s32.totalorder %s28, 0
    %p50 = por %p48, %p49
    %s52 = sadd.s32 %s51, 1
    %p55 = scmp.eq.s32.totalorder %s22, 49
    %p56 = scmp.ne.s32.totalorder %s51, %s53
    %p57 = scmp.eq.s32.totalorder %s22, 0
    %p58 = por %p56, %p57
    %p59 = scmp.ne.s32.totalorder %s51, %s53
    %p60 = scmp.eq.s32.totalorder %s27, 49
    %p61 = por %p59, %p60
    %p62 = scmp.ne.s32.totalorder %s53, %s54
    %p63 = scmp.eq.s32.totalorder %s27, 0
    %p64 = por %p62, %p63
    %p65 = scmp.ne.s32.totalorder %s53, %s54
    %p66 = scmp.eq.s32.totalorder %s28, 49
    %p67 = por %p65, %p66
    %p69 = scmp.ne.s32.totalorder %s54, %s68
    %p70 = scmp.eq.s32.totalorder %s28, 0
    %p71 = por %p69, %p70
    %s73 = sadd.s32 %s72, 1
    %p76 = scmp.eq.s32.totalorder %s22, 49
    %p77 = scmp.ne.s32.totalorder %s72, %s74
    %p78 = scmp.eq.s32.totalorder %s22, 0
    %p79 = por %p77, %p78
    %p80 = scmp.ne.s32.totalorder %s72, %s74
    %p81 = scmp.eq.s32.totalorder %s27, 49
    %p82 = por %p80, %p81
    %p83 = scmp.ne.s32.totalorder %s74, %s75
    %p84 = scmp.eq.s32.totalorder %s27, 0
    %p85 = por %p83, %p84
    %p86 = scmp.ne.s32.totalorder %s74, %s75
    %p87 = scmp.eq.s32.totalorder %s28, 49
    %p88 = por %p86, %p87
    %p90 = scmp.ne.s32.totalorder %s75, %s89
    %p91 = scmp.eq.s32.totalorder %s28, 0
    %p92 = por %p90, %p91
    %s94 = sadd.s32 %s93, 1
    %p97 = scmp.eq.s32.totalorder %s22, 49
    %p98 = scmp.ne.s32.totalorder %s93, %s95
    %p99 = scmp.eq.s32.totalorder %s22, 0
    %p100 = por %p98, %p99
    %p101 = scmp.ne.s32.totalorder %s93, %s95
    %p102 = scmp.eq.s32.totalorder %s27, 49
    %p103 = por %p101, %p102
    %p104 = scmp.ne.s32.totalorder %s95, %s96
    %p105 = scmp.eq.s32.totalorder %s27, 0
    %p106 = por %p104, %p105
    %p107 = scmp.ne.s32.totalorder %s95, %s96
    %p108 = scmp.eq.s32.totalorder %s28, 49
    %p109 = por %p107, %p108
    %p111 = scmp.ne.s32.totalorder %s96, %s110
    %p112 = scmp.eq.s32.totalorder %s28, 0
    %p113 = por %p111, %p112
    %s115 = sadd.s32 %s114, 1
    %p118 = scmp.eq.s32.totalorder %s22, 49
    %p119 = scmp.ne.s32.totalorder %s114, %s116
    %p120 = scmp.eq.s32.totalorder %s22, 0
    %p121 = por %p119, %p120
    %p122 = scmp.ne.s32.totalorder %s114, %s116
    %p123 = scmp.eq.s32.totalorder %s27, 49
    %p124 = por %p122, %p123
    %p125 = scmp.ne.s32.totalorder %s116, %s117
    %p126 = scmp.eq.s32.totalorder %s27, 0
    %p127 = por %p125, %p126
    %p128 = scmp.ne.s32.totalorder %s116, %s117
    %p129 = scmp.eq.s32.totalorder %s28, 49
    %p130 = por %p128, %p129
    %p132 = scmp.ne.s32.totalorder %s117, %s131
    %p133 = scmp.eq.s32.totalorder %s28, 0
    %p134 = por %p132, %p133
    %s136 = sadd.s32 %s135, 1
    %p139 = scmp.eq.s32.totalorder %s22, 49
    %p140 = scmp.ne.s32.totalorder %s135, %s137
    %p141 = scmp.eq.s32.totalorder %s22, 0
    %p142 = por %p140, %p141
    %p143 = scmp.ne.s32.totalorder %s135, %s137
    %p144 = scmp.eq.s32.totalorder %s27, 49
    %p145 = por %p143, %p144
    %p146 = scmp.ne.s32.totalorder %s137, %s138
    %p147 = scmp.eq.s32.totalorder %s27, 0
    %p148 = por %p146, %p147
    %p149 = scmp.ne.s32.totalorder %s137, %s138
    %p150 = scmp.eq.s32.totalorder %s28, 49
    %p151 = por %p149, %p150
    %p153 = scmp.ne.s32.totalorder %s138, %s152
    %p154 = scmp.eq.s32.totalorder %s28, 0
    %p155 = por %p153, %p154
    %s157 = sadd.s32 %s156, 1
    %p160 = scmp.eq.s32.totalorder %s22, 49
    %p161 = scmp.ne.s32.totalorder %s156, %s158
    %p162 = scmp.eq.s32.totalorder %s22, 0
    %p163 = por %p161, %p162
    %p164 = scmp.ne.s32.totalorder %s156, %s158
    %p165 = scmp.eq.s32.totalorder %s27, 49
    %p166 = por %p164, %p165
    %p167 = scmp.ne.s32.totalorder %s158, %s159
    %p168 = scmp.eq.s32.totalorder %s27, 0
    %p169 = por %p167, %p168
    %p170 = scmp.ne.s32.totalorder %s158, %s159
    %p171 = scmp.eq.s32.totalorder %s28, 49
    %p172 = por %p170, %p171
    %p174 = scmp.ne.s32.totalorder %s159, %s173
    %p175 = scmp.eq.s32.totalorder %s28, 0
    %p176 = por %p174, %p175
    %s178 = sadd.s32 %s177, 1
    %p181 = scmp.eq.s32.totalorder %s22, 49
    %p182 = scmp.ne.s32.totalorder %s177, %s179
    %p183 = scmp.eq.s32.totalorder %s22, 0
    %p184 = por %p182, %p183
    %p185 = scmp.ne.s32.totalorder %s177, %s179
    %p186 = scmp.eq.s32.totalorder %s27, 49
    %p187 = por %p185, %p186
    %p188 = scmp.ne.s32.totalorder %s179, %s180
    %p189 = scmp.eq.s32.totalorder %s27, 0
    %p190 = por %p188, %p189
    %p191 = scmp.ne.s32.totalorder %s179, %s180
    %p192 = scmp.eq.s32.totalorder %s28, 49
    %p193 = por %p191, %p192
    %p195 = scmp.ne.s32.totalorder %s180, %s194
    %p196 = scmp.eq.s32.totalorder %s28, 0
    %p197 = por %p195, %p196
    %s199 = sadd.s32 %s198, 1
    %p202 = scmp.eq.s32.totalorder %s22, 49
    %p203 = scmp.ne.s32.totalorder %s198, %s200
    %p204 = scmp.eq.s32.totalorder %s22, 0
    %p205 = por %p203, %p204
    %p206 = scmp.ne.s32.totalorder %s198, %s200
    %p207 = scmp.eq.s32.totalorder %s27, 49
    %p208 = por %p206, %p207
    %p209 = scmp.ne.s32.totalorder %s200, %s201
    %p210 = scmp.eq.s32.totalorder %s27, 0
    %p211 = por %p209, %p210
    %p212 = scmp.ne.s32.totalorder %s200, %s201
    %p213 = scmp.eq.s32.totalorder %s28, 49
    %p214 = por %p212, %p213
    %p216 = scmp.ne.s32.totalorder %s201, %s215
    %p217 = scmp.eq.s32.totalorder %s28, 0
    %p218 = por %p216, %p217
    %s220 = sadd.s32 %s219, 1
    %p223 = scmp.eq.s32.totalorder %s22, 49
    %p224 = scmp.ne.s32.totalorder %s219, %s221
    %p225 = scmp.eq.s32.totalorder %s22, 0
    %p226 = por %p224, %p225
    %p227 = scmp.ne.s32.totalorder %s219, %s221
    %p228 = scmp.eq.s32.totalorder %s27, 49
    %p229 = por %p227, %p228
    %p230 = scmp.ne.s32.totalorder %s221, %s222
    %p231 = scmp.eq.s32.totalorder %s27, 0
    %p232 = por %p230, %p231
    %p233 = scmp.ne.s32.totalorder %s221, %s222
    %p234 = scmp.eq.s32.totalorder %s28, 49
    %p235 = por %p233, %p234
    %p237 = scmp.ne.s32.totalorder %s222, %s236
    %p238 = scmp.eq.s32.totalorder %s28, 0
    %p239 = por %p237, %p238
    %s241 = sadd.s32 %s240, 1
    %p244 = scmp.eq.s32.totalorder %s22, 49
    %p245 = scmp.ne.s32.totalorder %s240, %s242
    %p246 = scmp.eq.s32.totalorder %s22, 0
    %p247 = por %p245, %p246
    %p248 = scmp.ne.s32.totalorder %s240, %s242
    %p249 = scmp.eq.s32.totalorder %s27, 49
    %p250 = por %p248, %p249
    %p251 = scmp.ne.s32.totalorder %s242, %s243
    %p252 = scmp.eq.s32.totalorder %s27, 0
    %p253 = por %p251, %p252
    %p254 = scmp.ne.s32.totalorder %s242, %s243
    %p255 = scmp.eq.s32.totalorder %s28, 49
    %p256 = por %p254, %p255
    %p258 = scmp.ne.s32.totalorder %s243, %s257
    %p259 = scmp.eq.s32.totalorder %s28, 0
    %p260 = por %p258, %p259
    %s262 = sadd.s32 %s261, 1
    %p265 = scmp.eq.s32.totalorder %s22, 49
    %p266 = scmp.ne.s32.totalorder %s261, %s263
    %p267 = scmp.eq.s32.totalorder %s22, 0
    %p268 = por %p266, %p267
    %p269 = scmp.ne.s32.totalorder %s261, %s263
    %p270 = scmp.eq.s32.totalorder %s27, 49
    %p271 = por %p269, %p270
    %p272 = scmp.ne.s32.totalorder %s263, %s264
    %p273 = scmp.eq.s32.totalorder %s27, 0
    %p274 = por %p272, %p273
    %p275 = scmp.ne.s32.totalorder %s263, %s264
    %p276 = scmp.eq.s32.totalorder %s28, 49
    %p277 = por %p275, %p276
    %p279 = scmp.ne.s32.totalorder %s264, %s278
    %p280 = scmp.eq.s32.totalorder %s28, 0
    %p281 = por %p279, %p280
    %s283 = sadd.s32 %s282, 1
    %p286 = scmp.eq.s32.totalorder %s22, 49
    %p287 = scmp.ne.s32.totalorder %s282, %s284
    %p288 = scmp.eq.s32.totalorder %s22, 0
    %p289 = por %p287, %p288
    %p290 = scmp.ne.s32.totalorder %s282, %s284
    %p291 = scmp.eq.s32.totalorder %s27, 49
    %p292 = por %p290, %p291
    %p293 = scmp.ne.s32.totalorder %s284, %s285
    %p294 = scmp.eq.s32.totalorder %s27, 0
    %p295 = por %p293, %p294
    %p296 = scmp.ne.s32.totalorder %s284, %s285
    %p297 = scmp.eq.s32.totalorder %s28, 49
    %p298 = por %p296, %p297
    %p300 = scmp.ne.s32.totalorder %s285, %s299
    %p301 = scmp.eq.s32.totalorder %s28, 0
    %p302 = por %p300, %p301
    %s304 = sadd.s32 %s303, 1
    %p307 = scmp.eq.s32.totalorder %s22, 49
    %p308 = scmp.ne.s32.totalorder %s303, %s305
    %p309 = scmp.eq.s32.totalorder %s22, 0
    %p310 = por %p308, %p309
    %p311 = scmp.ne.s32.totalorder %s303, %s305
    %p312 = scmp.eq.s32.totalorder %s27, 49
    %p313 = por %p311, %p312
    %p314 = scmp.ne.s32.totalorder %s305, %s306
    %p315 = scmp.eq.s32.totalorder %s27, 0
    %p316 = por %p314, %p315
    %p317 = scmp.ne.s32.totalorder %s305, %s306
    %p318 = scmp.eq.s32.totalorder %s28, 49
    %p319 = por %p317, %p318
    %p321 = scmp.ne.s32.totalorder %s306, %s320
    %p322 = scmp.eq.s32.totalorder %s28, 0
    %p323 = por %p321, %p322
    %s324 = ssub.s32 %s22, %s29
    %p325 = scmp.eq.s32.totalorder %s324, 0
    %s327 = sadd.s32 %s326, 1
    %s328 = scalar_select %p325, %s326, %s327
    %p331 = pneg %p325
    %p332 = scmp.eq.s32.totalorder %s22, 49
    %p333 = por %p331, %p332
    %p334 = scmp.ne.s32.totalorder %s326, %s329
    %p335 = scmp.eq.s32.totalorder %s22, 0
    %p336 = por %p334, %p335
    %p337 = scmp.ne.s32.totalorder %s326, %s329
    %p338 = scmp.eq.s32.totalorder %s27, 49
    %p339 = por %p337, %p338
    %p340 = scmp.ne.s32.totalorder %s329, %s330
    %p341 = scmp.eq.s32.totalorder %s27, 0
    %p342 = por %p340, %p341
    %p343 = scmp.ne.s32.totalorder %s329, %s330
    %p344 = scmp.eq.s32.totalorder %s28, 49
    %p345 = por %p343, %p344
    %p347 = scmp.ne.s32.totalorder %s330, %s346
    %p348 = scmp.eq.s32.totalorder %s28, 0
    %p349 = por %p347, %p348
    %s351 = sadd.s32 %s350, 1
    %p354 = scmp.eq.s32.totalorder %s22, 49
    %p355 = scmp.ne.s32.totalorder %s350, %s352
    %p356 = scmp.eq.s32.totalorder %s22, 0
    %p357 = por %p355, %p356
    %p358 = scmp.ne.s32.totalorder %s350, %s352
    %p359 = scmp.eq.s32.totalorder %s27, 49
    %p360 = por %p358, %p359
    %p361 = scmp.ne.s32.totalorder %s352, %s353
    %p362 = scmp.eq.s32.totalorder %s27, 0
    %p363 = por %p361, %p362
    %p364 = scmp.ne.s32.totalorder %s352, %s353
    %p365 = scmp.eq.s32.totalorder %s28, 49
    %p366 = por %p364, %p365
    %p368 = scmp.ne.s32.totalorder %s353, %s367
    %p369 = scmp.eq.s32.totalorder %s28, 0
    %p370 = por %p368, %p369
    %p371 = scmp.le.s32.totalorder 1, %s22
    %p372 = scmp.lt.s32.totalorder %s22, 51
    %p373 = pnand %p371, %p372
    %p374 = pneg %p373
    // Predicated region
    $region9: #{my_decoder_ver_3_forward.1} parent=5 // pred_check
      _
    $region10: #{my_decoder_ver_3_forward.1} parent=5 // pred_check_branch
      %376 = sbr.rel (%p373) target = $region12
    $region11: #{my_decoder_ver_3_forward.1} parent=5 // pred_region
      %s377 = ssub.s32 %s22, 1
      // Predicated region
      $region13: #{my_decoder_ver_3_forward.1} parent=11 // pred_check
        %p378 = pneg %p43
      $region14: #{my_decoder_ver_3_forward.1} parent=11 // pred_check_branch
        %380 = sbr.rel (%p378) target = $region16
      $region15: #{my_decoder_ver_3_forward.1} parent=11 // pred_region
        _
      $region16: #{my_decoder_ver_3_forward.1} parent=11 // pred_fallthru
        _
      // Predicated region
      $region17: #{my_decoder_ver_3_forward.1} parent=11 // pred_check
        %p381 = pneg %p64
      $region18: #{my_decoder_ver_3_forward.1} parent=11 // pred_check_branch
        %383 = sbr.rel (%p381) target = $region20
      $region19: #{my_decoder_ver_3_forward.1} parent=11 // pred_region
        _
      $region20: #{my_decoder_ver_3_forward.1} parent=11 // pred_fallthru
        _
      // Predicated region
      $region21: #{my_decoder_ver_3_forward.1} parent=11 // pred_check
        %p384 = pneg %p85
      $region22: #{my_decoder_ver_3_forward.1} parent=11 // pred_check_branch
        %386 = sbr.rel (%p384) target = $region24
      $region23: #{my_decoder_ver_3_forward.1} parent=11 // pred_region
        _
      $region24: #{my_decoder_ver_3_forward.1} parent=11 // pred_fallthru
        _
      // Predicated region
      $region25: #{my_decoder_ver_3_forward.1} parent=11 // pred_check
        %p387 = pneg %p106
      $region26: #{my_decoder_ver_3_forward.1} parent=11 // pred_check_branch
        %389 = sbr.rel (%p387) target = $region28
      $region27: #{my_decoder_ver_3_forward.1} parent=11 // pred_region
        _
      $region28: #{my_decoder_ver_3_forward.1} parent=11 // pred_fallthru
        _
      // Predicated region
      $region29: #{my_decoder_ver_3_forward.1} parent=11 // pred_check
        %p390 = pneg %p127
      $region30: #{my_decoder_ver_3_forward.1} parent=11 // pred_check_branch
        %392 = sbr.rel (%p390) target = $region32
      $region31: #{my_decoder_ver_3_forward.1} parent=11 // pred_region
        _
      $region32: #{my_decoder_ver_3_forward.1} parent=11 // pred_fallthru
        _
      // Predicated region
      $region33: #{my_decoder_ver_3_forward.1} parent=11 // pred_check
        %p393 = pneg %p148
      $region34: #{my_decoder_ver_3_forward.1} parent=11 // pred_check_branch
        %395 = sbr.rel (%p393) target = $region36
      $region35: #{my_decoder_ver_3_forward.1} parent=11 // pred_region
        _
      $region36: #{my_decoder_ver_3_forward.1} parent=11 // pred_fallthru
        _
      // Predicated region
      $region37: #{my_decoder_ver_3_forward.1} parent=11 // pred_check
        %p396 = pneg %p169
      $region38: #{my_decoder_ver_3_forward.1} parent=11 // pred_check_branch
        %398 = sbr.rel (%p396) target = $region40
      $region39: #{my_decoder_ver_3_forward.1} parent=11 // pred_region
        _
      $region40: #{my_decoder_ver_3_forward.1} parent=11 // pred_fallthru
        _
      // Predicated region
      $region41: #{my_decoder_ver_3_forward.1} parent=11 // pred_check
        %p399 = pneg %p190
      $region42: #{my_decoder_ver_3_forward.1} parent=11 // pred_check_branch
        %401 = sbr.rel (%p399) target = $region44
      $region43: #{my_decoder_ver_3_forward.1} parent=11 // pred_region
        _
      $region44: #{my_decoder_ver_3_forward.1} parent=11 // pred_fallthru
        _
      // Predicated region
      $region45: #{my_decoder_ver_3_forward.1} parent=11 // pred_check
        %p402 = pneg %p211
      $region46: #{my_decoder_ver_3_forward.1} parent=11 // pred_check_branch
        %404 = sbr.rel (%p402) target = $region48
      $region47: #{my_decoder_ver_3_forward.1} parent=11 // pred_region
        _
      $region48: #{my_decoder_ver_3_forward.1} parent=11 // pred_fallthru
        _
      // Predicated region
      $region49: #{my_decoder_ver_3_forward.1} parent=11 // pred_check
        %p405 = pneg %p232
      $region50: #{my_decoder_ver_3_forward.1} parent=11 // pred_check_branch
        %407 = sbr.rel (%p405) target = $region52
      $region51: #{my_decoder_ver_3_forward.1} parent=11 // pred_region
        _
      $region52: #{my_decoder_ver_3_forward.1} parent=11 // pred_fallthru
        _
      // Predicated region
      $region53: #{my_decoder_ver_3_forward.1} parent=11 // pred_check
        %p408 = pneg %p253
      $region54: #{my_decoder_ver_3_forward.1} parent=11 // pred_check_branch
        %410 = sbr.rel (%p408) target = $region56
      $region55: #{my_decoder_ver_3_forward.1} parent=11 // pred_region
        _
      $region56: #{my_decoder_ver_3_forward.1} parent=11 // pred_fallthru
        _
      // Predicated region
      $region57: #{my_decoder_ver_3_forward.1} parent=11 // pred_check
        %p411 = pneg %p274
      $region58: #{my_decoder_ver_3_forward.1} parent=11 // pred_check_branch
        %413 = sbr.rel (%p411) target = $region60
      $region59: #{my_decoder_ver_3_forward.1} parent=11 // pred_region
        _
      $region60: #{my_decoder_ver_3_forward.1} parent=11 // pred_fallthru
        _
      // Predicated region
      $region61: #{my_decoder_ver_3_forward.1} parent=11 // pred_check
        %p414 = pneg %p295
      $region62: #{my_decoder_ver_3_forward.1} parent=11 // pred_check_branch
        %416 = sbr.rel (%p414) target = $region64
      $region63: #{my_decoder_ver_3_forward.1} parent=11 // pred_region
        _
      $region64: #{my_decoder_ver_3_forward.1} parent=11 // pred_fallthru
        _
      // Predicated region
      $region65: #{my_decoder_ver_3_forward.1} parent=11 // pred_check
        %p417 = pneg %p316
      $region66: #{my_decoder_ver_3_forward.1} parent=11 // pred_check_branch
        %419 = sbr.rel (%p417) target = $region68
      $region67: #{my_decoder_ver_3_forward.1} parent=11 // pred_region
        _
      $region68: #{my_decoder_ver_3_forward.1} parent=11 // pred_fallthru
        _
    $region12: #{my_decoder_ver_3_forward.1} parent=5 // pred_fallthru
      _
    %p420 = scmp.lt.s32.totalorder %s22, 50
    // Predicated region
    $region69: #{my_decoder_ver_3_forward.1} parent=5 // pred_check
      %p421 = pneg %p420
    $region70: #{my_decoder_ver_3_forward.1} parent=5 // pred_check_branch
      %423 = sbr.rel (%p421) target = $region72
    $region71: #{my_decoder_ver_3_forward.1} parent=5 // pred_region
      _
    $region72: #{my_decoder_ver_3_forward.1} parent=5 // pred_fallthru
      _
    %p424 = scmp.le.s32.totalorder 1, %s22
    %p425 = scmp.lt.s32.totalorder %s22, 51
    %p426 = pnand %p424, %p425
    %p427 = pneg %p426
    // Predicated region
    $region73: #{my_decoder_ver_3_forward.1} parent=5 // pred_check
      _
    $region74: #{my_decoder_ver_3_forward.1} parent=5 // pred_check_branch
      %429 = sbr.rel (%p426) target = $region76
    $region75: #{my_decoder_ver_3_forward.1} parent=5 // pred_region
      %s430 = ssub.s32 %s22, 1
      %p431 = pneg %p43
      %p432 = pneg %p40
      %p433 = pneg %p64
      %p434 = pneg %p61
      %p435 = pneg %p85
      %p436 = pneg %p82
      %p437 = pneg %p106
      %p438 = pneg %p103
      %p439 = pneg %p127
      %p440 = pneg %p124
      %p441 = pneg %p148
      %p442 = pneg %p145
      %p443 = pneg %p169
      %p444 = pneg %p166
      %p445 = pneg %p190
      %p446 = pneg %p187
      %p447 = pneg %p211
      %p448 = pneg %p208
      %p449 = pneg %p232
      %p450 = pneg %p229
      %p451 = pneg %p253
      %p452 = pneg %p250
      %p453 = pneg %p274
      %p454 = pneg %p271
      %p455 = pneg %p295
      %p456 = pneg %p292
      %p457 = pneg %p316
      %p458 = pneg %p313
      %p459 = pneg %p342
      %p460 = pneg %p339
      %s461 = smul.u32 2, %s27
      %p462 = scmp.lt.s32.totalorder %s461, 99
      %s463 = scalar_select %p462, %s461, 99
      %s464 = smul.addr %s463, 8
      %s465 = scalar_lea.vmem %s14, %s464
      %p466 = pneg %p363
      %p467 = pneg %p360
      %s468 = smul.u32 2, %s27
      %p469 = scmp.lt.s32.totalorder %s468, 99
      %s470 = scalar_select %p469, %s468, 99
      %s471 = smul.addr %s470, 8
      %s472 = scalar_lea.vmem %s14, %s471
      %s473 = smul.u32 2, %s27
      %p475 = scmp.eq.s32.totalorder %s27, 0
      // Predicated region
      $region77: #{my_decoder_ver_3_forward.1} parent=75 // pred_check
        %p476 = pneg %p475
      $region78: #{my_decoder_ver_3_forward.1} parent=75 // pred_check_branch
        %478 = sbr.rel (%p476) target = $region80
      $region79: #{my_decoder_ver_3_forward.1} parent=75 // pred_region
        %vm479 = vcmask 261120
        %480 = vst.msk [vmem:[#allocation3] sm:$0xff] %vm479, 0.0
        %v481 = vld [vmem:[%s0] sm:$0xff]
        %482 = vst.msk [vmem:[#allocation4] sm:$0xff] %vm479, %v481
        %v483 = vld [vmem:[%s1] sm:$0xff]
        %484 = vst.msk [vmem:[#allocation5] sm:$0xff] %vm479, %v483
        %v485 = vld [vmem:[%s5] sm:$0xff]
        %vm486 = vcmask 7168
        %487 = vst.msk [vmem:[#allocation6] sm:$0xff] %vm486, %v485
        %v488 = vld [vmem:[%s2] sm:$0xf]
        %v489 = vld [vmem:[%s2 + $0x4] sm:$0xf]
        %v490 = vld [vmem:[%s2 + $0x8] sm:$0xf]
        %v491 = vld [vmem:[%s2 + $0xc] sm:$0xf]
        %v492 = vld [vmem:[%s2 + $0x10] sm:$0xf]
        %v493 = vld [vmem:[%s2 + $0x14] sm:$0xf]
        %v494 = vld [vmem:[%s2 + $0x18] sm:$0xf]
        %v495 = vld [vmem:[%s2 + $0x1c] sm:$0xf]
        %v496 = vld [vmem:[%s9] sm:$0xf]
        %v497 = vld [vmem:[%s9 + $0x4] sm:$0xf]
        %v498 = vld [vmem:[%s9 + $0x8] sm:$0xf]
        %v499 = vld [vmem:[%s9 + $0xc] sm:$0xf]
        %v508 = vunpack.c.l.b16 %v488
        %v509 = vunpack.c.l.b16 %v489
        %v510 = vunpack.c.l.b16 %v490
        %v511 = vunpack.c.l.b16 %v491
        %v512 = vunpack.c.l.b16 %v492
        %v513 = vunpack.c.l.b16 %v493
        %v514 = vunpack.c.l.b16 %v494
        %v515 = vunpack.c.l.b16 %v495
        %v516 = vpack.c.b16 %v509, %v508
        %v517 = vpack.c.b16 %v511, %v510
        %v518 = vpack.c.b16 %v513, %v512
        %v519 = vpack.c.b16 %v515, %v514
        %v524 = vunpack.c.l.b16 %v496
        %v525 = vunpack.c.l.b16 %v497
        %v526 = vunpack.c.l.b16 %v498
        %v527 = vunpack.c.l.b16 %v499
        %v528 = vpack.c.b16 %v525, %v524
        %v529 = vpack.c.b16 %v527, %v526
        %v533 = vsel %vm479, %v516, 0
        %v536 = vsel %vm479, %v517, 0
        %v539 = vsel %vm479, %v518, 0
        %v542 = vsel %vm479, %v519, 0
        %544 = vmatprep.subr.bf16.mxu0 0
        %545 = vmatpush1.bf16.msra.mxu0 0
        %546 = vmatprep.subr.bf16.mxu0 0
        %547 = vmatpush1.bf16.msra.mxu0 0
        %548 = vmatprep.subr.bf16.mxu0 0
        %549 = vmatpush1.bf16.msra.mxu0 0
        %550 = vmatprep.subr.bf16.mxu0 0
        %551 = vmatpush1.bf16.msra.mxu0 0
        %552 = vmatprep.subr.bf16.mxu0 0
        %553 = vmatpush1.bf16.msra.mxu0 0
        %554 = vmatprep.subr.bf16.mxu0 0
        %555 = vmatpush1.bf16.msra.mxu0 0
        %556 = vmatprep.subr.bf16.mxu0 0
        %557 = vmatpush1.bf16.msra.mxu0 %v529
        %558 = vmatprep.subr.bf16.mxu0 0
        %559 = vmatpush1.bf16.msra.mxu0 %v528
        %560 = vmatprep.subr.bf16.mxu0 0
        %561 = vmatpush2.bf16.msra.mxu0 0
        %562 = vmatprep.subr.bf16.mxu0 0
        %563 = vmatpush2.bf16.msra.mxu0 0
        %564 = vmatprep.subr.bf16.mxu0 0
        %565 = vmatpush2.bf16.msra.mxu0 0
        %566 = vmatprep.subr.bf16.mxu0 0
        %567 = vmatpush2.bf16.msra.mxu0 0
        %568 = vmatprep.subr.bf16.mxu0 0
        %569 = vmatpush2.bf16.msra.mxu0 0
        %570 = vmatprep.subr.bf16.mxu0 0
        %571 = vmatpush2.bf16.msra.mxu0 0
        %572 = vmatprep.subr.bf16.mxu0 0
        %573 = vmatpush2.bf16.msra.mxu0 0
        %574 = vmatprep.subr.bf16.mxu0 0
        %575 = vmatpush2.bf16.msra.mxu0 0
        %576 = vmatprep.mubr.bf16.mxu0 0
        %577 = vmatmul.mubr.bf16.gmra.mxu0 %v533
        %v578 = vpop.f32.mrf.mxu0
        %v579 = vadd.f32 0.0, %v578
        %v580 = vpop.f32.mrf.mxu0
        %v581 = vpop.f32.mrf.mxu0
        %v582 = vadd.f32 0.0, %v581
        %v583 = vpop.f32.mrf.mxu0
        %584 = vmatprep.mubr.bf16.mxu0 0
        %585 = vmatmul.mubr.bf16.gmra.mxu0 %v536
        %v586 = vpop.f32.mrf.mxu0
        %v587 = vadd.f32 0.0, %v586
        %v588 = vpop.f32.mrf.mxu0
        %v589 = vpop.f32.mrf.mxu0
        %v590 = vadd.f32 0.0, %v589
        %v591 = vpop.f32.mrf.mxu0
        %592 = vmatprep.mubr.bf16.mxu0 0
        %593 = vmatmul.mubr.bf16.gmra.mxu0 %v539
        %v594 = vpop.f32.mrf.mxu0
        %v595 = vadd.f32 0.0, %v594
        %v596 = vpop.f32.mrf.mxu0
        %v597 = vpop.f32.mrf.mxu0
        %v598 = vadd.f32 0.0, %v597
        %v599 = vpop.f32.mrf.mxu0
        %600 = vmatprep.mubr.bf16.mxu0 0
        %601 = vmatmul.mubr.bf16.gmra.mxu0 %v542
        %v602 = vpop.f32.mrf.mxu0
        %v603 = vadd.f32 0.0, %v602
        %v604 = vpop.f32.mrf.mxu0
        %v605 = vpop.f32.mrf.mxu0
        %v606 = vadd.f32 0.0, %v605
        %v607 = vpop.f32.mrf.mxu0
        %608 = vdwg.mxu0
        %v609 = vpack.c.bf16 %v579, %v579
        %v610 = vpack.c.bf16 %v582, %v582
        %v611 = vpack.c.bf16 %v587, %v587
        %v612 = vpack.c.bf16 %v590, %v590
        %v613 = vpack.c.bf16 %v595, %v595
        %v614 = vpack.c.bf16 %v598, %v598
        %v615 = vpack.c.bf16 %v603, %v603
        %v616 = vpack.c.bf16 %v606, %v606
        %vm617 = vcmask 257024
        %618 = vst.msk [vmem:[#allocation2] sm:$0xf] %vm617, %v609
        %619 = vst.msk [vmem:[#allocation2 + $0x4] sm:$0xf] %vm617, %v610
        %620 = vst.msk [vmem:[#allocation2 + $0x8] sm:$0xf] %vm617, %v611
        %621 = vst.msk [vmem:[#allocation2 + $0xc] sm:$0xf] %vm617, %v612
        %622 = vst.msk [vmem:[#allocation2 + $0x10] sm:$0xf] %vm617, %v613
        %623 = vst.msk [vmem:[#allocation2 + $0x14] sm:$0xf] %vm617, %v614
        %624 = vst.msk [vmem:[#allocation2 + $0x18] sm:$0xf] %vm617, %v615
        %625 = vst.msk [vmem:[#allocation2 + $0x1c] sm:$0xf] %vm617, %v616
      $region80: #{my_decoder_ver_3_forward.1} parent=75 // pred_fallthru
        _
      %v626 = vld [vmem:[%s4] sm:$0x1]
      %v627 = vld [vmem:[%s3] sm:$0x1]
      %v628 = vld [vmem:[%s3 + $0x1] sm:$0x1]
      %v629 = vld [vmem:[%s3 + $0x2] sm:$0x1]
      %v630 = vld [vmem:[%s3 + $0x3] sm:$0x1]
      %v631 = vld [vmem:[%s3 + $0x4] sm:$0x1]
      %v632 = vld [vmem:[%s3 + $0x5] sm:$0x1]
      %v633 = vld [vmem:[%s3 + $0x6] sm:$0x1]
      %v634 = vld [vmem:[%s3 + $0x7] sm:$0x1]
      %v635 = vld [vmem:[%s2] sm:$0xf]
      %v636 = vld [vmem:[%s2 + $0x4] sm:$0xf]
      %v637 = vld [vmem:[%s2 + $0x8] sm:$0xf]
      %v638 = vld [vmem:[%s2 + $0xc] sm:$0xf]
      %v639 = vld [vmem:[%s2 + $0x10] sm:$0xf]
      %v640 = vld [vmem:[%s2 + $0x14] sm:$0xf]
      %v641 = vld [vmem:[%s2 + $0x18] sm:$0xf]
      %v642 = vld [vmem:[%s2 + $0x1c] sm:$0xf]
      %v643 = vld [vmem:[#allocation2] sm:$0xf]
      %v644 = vld [vmem:[#allocation2 + $0x4] sm:$0xf]
      %v645 = vld [vmem:[#allocation2 + $0x8] sm:$0xf]
      %v646 = vld [vmem:[#allocation2 + $0xc] sm:$0xf]
      %v647 = vld [vmem:[#allocation2 + $0x10] sm:$0xf]
      %v648 = vld [vmem:[#allocation2 + $0x14] sm:$0xf]
      %v649 = vld [vmem:[#allocation2 + $0x18] sm:$0xf]
      %v650 = vld [vmem:[#allocation2 + $0x1c] sm:$0xf]
      %v651 = vld [vmem:[%s13] sm:$0x1]
      %v652 = vld [vmem:[%s6] sm:$0xf]
      %v653 = vld [vmem:[%s6 + $0x4] sm:$0xf]
      %v654 = vld [vmem:[%s6 + $0x8] sm:$0xf]
      %v655 = vld [vmem:[%s6 + $0xc] sm:$0xf]
      %s656 = scalar_lea.vmem %s6, 16
      %v657 = vld [vmem:[%s656] sm:$0xf]
      %v658 = vld [vmem:[%s656 + $0x4] sm:$0xf]
      %v659 = vld [vmem:[%s656 + $0x8] sm:$0xf]
      %v660 = vld [vmem:[%s656 + $0xc] sm:$0xf]
      %s661 = scalar_lea.vmem %s6, 32
      %v662 = vld [vmem:[%s661] sm:$0xf]
      %v663 = vld [vmem:[%s661 + $0x4] sm:$0xf]
      %v664 = vld [vmem:[%s661 + $0x8] sm:$0xf]
      %v665 = vld [vmem:[%s661 + $0xc] sm:$0xf]
      %s666 = scalar_lea.vmem %s6, 48
      %v667 = vld [vmem:[%s666] sm:$0xf]
      %v668 = vld [vmem:[%s666 + $0x4] sm:$0xf]
      %v669 = vld [vmem:[%s666 + $0x8] sm:$0xf]
      %v670 = vld [vmem:[%s666 + $0xc] sm:$0xf]
      %v671 = vld [vmem:[%s7] sm:$0xf]
      %v672 = vld [vmem:[%s7 + $0x4] sm:$0xf]
      %v673 = vld [vmem:[%s7 + $0x8] sm:$0xf]
      %v674 = vld [vmem:[%s7 + $0xc] sm:$0xf]
      %s675 = scalar_lea.vmem %s7, 16
      %v676 = vld [vmem:[%s675] sm:$0xf]
      %v677 = vld [vmem:[%s675 + $0x4] sm:$0xf]
      %v678 = vld [vmem:[%s675 + $0x8] sm:$0xf]
      %v679 = vld [vmem:[%s675 + $0xc] sm:$0xf]
      %s680 = scalar_lea.vmem %s7, 32
      %v681 = vld [vmem:[%s680] sm:$0xf]
      %v682 = vld [vmem:[%s680 + $0x4] sm:$0xf]
      %v683 = vld [vmem:[%s680 + $0x8] sm:$0xf]
      %v684 = vld [vmem:[%s680 + $0xc] sm:$0xf]
      %s685 = scalar_lea.vmem %s7, 48
      %v686 = vld [vmem:[%s685] sm:$0xf]
      %v687 = vld [vmem:[%s685 + $0x4] sm:$0xf]
      %v688 = vld [vmem:[%s685 + $0x8] sm:$0xf]
      %v689 = vld [vmem:[%s685 + $0xc] sm:$0xf]
      %v690 = vld [vmem:[%s8] sm:$0x1]
      %s691 = scalar_lea.vmem %s8, 1
      %v692 = vld [vmem:[%s691] sm:$0x1]
      %s693 = scalar_lea.vmem %s8, 2
      %v694 = vld [vmem:[%s693] sm:$0x1]
      %s695 = scalar_lea.vmem %s8, 3
      %v696 = vld [vmem:[%s695] sm:$0x1]
      %v697 = vld [vmem:[%s10] sm:$0xf]
      %v698 = vld [vmem:[%s10 + $0x4] sm:$0xf]
      %v699 = vld [vmem:[%s10 + $0x8] sm:$0xf]
      %v700 = vld [vmem:[%s10 + $0xc] sm:$0xf]
      %v701 = vld [vmem:[%s11] sm:$0xf]
      %v702 = vld [vmem:[%s11 + $0x4] sm:$0xf]
      %v703 = vld [vmem:[%s11 + $0x8] sm:$0xf]
      %v704 = vld [vmem:[%s11 + $0xc] sm:$0xf]
      %v705 = vld [vmem:[%s12] sm:$0xf]
      %v706 = vld [vmem:[%s12 + $0x4] sm:$0xf]
      %v707 = vld [vmem:[%s12 + $0x8] sm:$0xf]
      %v708 = vld [vmem:[%s12 + $0xc] sm:$0xf]
      %s709 = smul.u32 %s27, 2
      %v710 = vld [vmem:[#allocation3] sm:$0xff]
      %v711 = vpack.c.bf16 %v710, %v710
      %v712 = vld [vmem:[#allocation4] sm:$0xff]
      %v713 = vpack.c.bf16 %v712, %v712
      %v714 = vld [vmem:[#allocation5] sm:$0xff]
      %v719 = vunpack.c.l.b16 %v671
      %v720 = vunpack.c.l.b16 %v672
      %v721 = vunpack.c.l.b16 %v673
      %v722 = vunpack.c.l.b16 %v674
      %v723 = vpack.c.b16 %v720, %v719
      %v724 = vpack.c.b16 %v722, %v721
      %vm727 = vcmask 261120
      %v729 = vsel %vm727, %v713, 0
      %731 = vmatprep.subr.bf16.mxu0 0
      %732 = vmatpush1.bf16.msra.mxu0 0
      %733 = vmatprep.subr.bf16.mxu0 0
      %734 = vmatpush1.bf16.msra.mxu0 0
      %735 = vmatprep.subr.bf16.mxu0 0
      %736 = vmatpush1.bf16.msra.mxu0 0
      %737 = vmatprep.subr.bf16.mxu0 0
      %738 = vmatpush1.bf16.msra.mxu0 0
      %739 = vmatprep.subr.bf16.mxu0 0
      %740 = vmatpush1.bf16.msra.mxu0 0
      %741 = vmatprep.subr.bf16.mxu0 0
      %742 = vmatpush1.bf16.msra.mxu0 0
      %743 = vmatprep.subr.bf16.mxu0 0
      %744 = vmatpush1.bf16.msra.mxu0 %v724
      %745 = vmatprep.subr.bf16.mxu0 0
      %746 = vmatpush1.bf16.msra.mxu0 %v723
      %747 = vmatprep.subr.bf16.mxu0 0
      %748 = vmatpush2.bf16.msra.mxu0 0
      %749 = vmatprep.subr.bf16.mxu0 0
      %750 = vmatpush2.bf16.msra.mxu0 0
      %751 = vmatprep.subr.bf16.mxu0 0
      %752 = vmatpush2.bf16.msra.mxu0 0
      %753 = vmatprep.subr.bf16.mxu0 0
      %754 = vmatpush2.bf16.msra.mxu0 0
      %755 = vmatprep.subr.bf16.mxu0 0
      %756 = vmatpush2.bf16.msra.mxu0 0
      %757 = vmatprep.subr.bf16.mxu0 0
      %758 = vmatpush2.bf16.msra.mxu0 0
      %759 = vmatprep.subr.bf16.mxu0 0
      %760 = vmatpush2.bf16.msra.mxu0 0
      %761 = vmatprep.subr.bf16.mxu0 0
      %762 = vmatpush2.bf16.msra.mxu0 0
      %763 = vmatprep.mubr.bf16.mxu0 0
      %764 = vmatmul.mubr.bf16.gmra.mxu0 %v729
      %v765 = vpop.f32.mrf.mxu0
      %v766 = vadd.f32 0.0, %v765
      %v767 = vpop.f32.mrf.mxu0
      %v768 = vpop.f32.mrf.mxu0
      %v769 = vpop.f32.mrf.mxu0
      %770 = vdwg.mxu0
      %v775 = vunpack.c.l.b16 %v652
      %v776 = vunpack.c.l.b16 %v653
      %v777 = vunpack.c.l.b16 %v654
      %v778 = vunpack.c.l.b16 %v655
      %v779 = vpack.c.b16 %v776, %v775
      %v780 = vpack.c.b16 %v778, %v777
      %v784 = vsel %vm727, %v711, 0
      %786 = vmatprep.subr.bf16.mxu0 0
      %787 = vmatpush1.bf16.msra.mxu0 0
      %788 = vmatprep.subr.bf16.mxu0 0
      %789 = vmatpush1.bf16.msra.mxu0 0
      %790 = vmatprep.subr.bf16.mxu0 0
      %791 = vmatpush1.bf16.msra.mxu0 0
      %792 = vmatprep.subr.bf16.mxu0 0
      %793 = vmatpush1.bf16.msra.mxu0 0
      %794 = vmatprep.subr.bf16.mxu0 0
      %795 = vmatpush1.bf16.msra.mxu0 0
      %796 = vmatprep.subr.bf16.mxu0 0
      %797 = vmatpush1.bf16.msra.mxu0 0
      %798 = vmatprep.subr.bf16.mxu0 0
      %799 = vmatpush1.bf16.msra.mxu0 %v780
      %800 = vmatprep.subr.bf16.mxu0 0
      %801 = vmatpush1.bf16.msra.mxu0 %v779
      %802 = vmatprep.subr.bf16.mxu0 0
      %803 = vmatpush2.bf16.msra.mxu0 0
      %804 = vmatprep.subr.bf16.mxu0 0
      %805 = vmatpush2.bf16.msra.mxu0 0
      %806 = vmatprep.subr.bf16.mxu0 0
      %807 = vmatpush2.bf16.msra.mxu0 0
      %808 = vmatprep.subr.bf16.mxu0 0
      %809 = vmatpush2.bf16.msra.mxu0 0
      %810 = vmatprep.subr.bf16.mxu0 0
      %811 = vmatpush2.bf16.msra.mxu0 0
      %812 = vmatprep.subr.bf16.mxu0 0
      %813 = vmatpush2.bf16.msra.mxu0 0
      %814 = vmatprep.subr.bf16.mxu0 0
      %815 = vmatpush2.bf16.msra.mxu0 0
      %816 = vmatprep.subr.bf16.mxu0 0
      %817 = vmatpush2.bf16.msra.mxu0 0
      %818 = vmatprep.mubr.bf16.mxu0 0
      %819 = vmatmul.mubr.bf16.gmra.mxu0 %v784
      %v820 = vpop.f32.mrf.mxu0
      %v821 = vadd.f32 %v766, %v820
      %v822 = vpop.f32.mrf.mxu0
      %v823 = vpop.f32.mrf.mxu0
      %v824 = vpop.f32.mrf.mxu0
      %825 = vdwg.mxu0
      %v827 = vlaneseq
      %v828 = vshrl.u32 %v827, 7
      %v829 = vsub.s32 0, %v828
      %v830 = vrot.slane %v690, %v829
      %v832 = vadd.f32 %v821, %v830
      %v833 = vxor.u32 %v832, 2147483648
      %v834 = vmul.f32 %v833, 1.442695
      %v835 = vpow.pop %v834
      %v836 = vadd.f32 %v835, 1.0
      %v837 = vrcp.pop %v836
      %v838 = vmul.f32 1.0, %v837
      %v843 = vunpack.c.l.b16 %v676
      %v844 = vunpack.c.l.b16 %v677
      %v845 = vunpack.c.l.b16 %v678
      %v846 = vunpack.c.l.b16 %v679
      %v847 = vpack.c.b16 %v844, %v843
      %v848 = vpack.c.b16 %v846, %v845
      %851 = vmatprep.subr.bf16.mxu0 0
      %852 = vmatpush1.bf16.msra.mxu0 0
      %853 = vmatprep.subr.bf16.mxu0 0
      %854 = vmatpush1.bf16.msra.mxu0 0
      %855 = vmatprep.subr.bf16.mxu0 0
      %856 = vmatpush1.bf16.msra.mxu0 0
      %857 = vmatprep.subr.bf16.mxu0 0
      %858 = vmatpush1.bf16.msra.mxu0 0
      %859 = vmatprep.subr.bf16.mxu0 0
      %860 = vmatpush1.bf16.msra.mxu0 0
      %861 = vmatprep.subr.bf16.mxu0 0
      %862 = vmatpush1.bf16.msra.mxu0 0
      %863 = vmatprep.subr.bf16.mxu0 0
      %864 = vmatpush1.bf16.msra.mxu0 %v848
      %865 = vmatprep.subr.bf16.mxu0 0
      %866 = vmatpush1.bf16.msra.mxu0 %v847
      %867 = vmatprep.subr.bf16.mxu0 0
      %868 = vmatpush2.bf16.msra.mxu0 0
      %869 = vmatprep.subr.bf16.mxu0 0
      %870 = vmatpush2.bf16.msra.mxu0 0
      %871 = vmatprep.subr.bf16.mxu0 0
      %872 = vmatpush2.bf16.msra.mxu0 0
      %873 = vmatprep.subr.bf16.mxu0 0
      %874 = vmatpush2.bf16.msra.mxu0 0
      %875 = vmatprep.subr.bf16.mxu0 0
      %876 = vmatpush2.bf16.msra.mxu0 0
      %877 = vmatprep.subr.bf16.mxu0 0
      %878 = vmatpush2.bf16.msra.mxu0 0
      %879 = vmatprep.subr.bf16.mxu0 0
      %880 = vmatpush2.bf16.msra.mxu0 0
      %881 = vmatprep.subr.bf16.mxu0 0
      %882 = vmatpush2.bf16.msra.mxu0 0
      %883 = vmatprep.mubr.bf16.mxu0 0
      %884 = vmatmul.mubr.bf16.gmra.mxu0 %v729
      %v885 = vpop.f32.mrf.mxu0
      %v886 = vadd.f32 0.0, %v885
      %v887 = vpop.f32.mrf.mxu0
      %v888 = vpop.f32.mrf.mxu0
      %v889 = vpop.f32.mrf.mxu0
      %890 = vdwg.mxu0
      %v895 = vunpack.c.l.b16 %v657
      %v896 = vunpack.c.l.b16 %v658
      %v897 = vunpack.c.l.b16 %v659
      %v898 = vunpack.c.l.b16 %v660
      %v899 = vpack.c.b16 %v896, %v895
      %v900 = vpack.c.b16 %v898, %v897
      %903 = vmatprep.subr.bf16.mxu0 0
      %904 = vmatpush1.bf16.msra.mxu0 0
      %905 = vmatprep.subr.bf16.mxu0 0
      %906 = vmatpush1.bf16.msra.mxu0 0
      %907 = vmatprep.subr.bf16.mxu0 0
      %908 = vmatpush1.bf16.msra.mxu0 0
      %909 = vmatprep.subr.bf16.mxu0 0
      %910 = vmatpush1.bf16.msra.mxu0 0
      %911 = vmatprep.subr.bf16.mxu0 0
      %912 = vmatpush1.bf16.msra.mxu0 0
      %913 = vmatprep.subr.bf16.mxu0 0
      %914 = vmatpush1.bf16.msra.mxu0 0
      %915 = vmatprep.subr.bf16.mxu0 0
      %916 = vmatpush1.bf16.msra.mxu0 %v900
      %917 = vmatprep.subr.bf16.mxu0 0
      %918 = vmatpush1.bf16.msra.mxu0 %v899
      %919 = vmatprep.subr.bf16.mxu0 0
      %920 = vmatpush2.bf16.msra.mxu0 0
      %921 = vmatprep.subr.bf16.mxu0 0
      %922 = vmatpush2.bf16.msra.mxu0 0
      %923 = vmatprep.subr.bf16.mxu0 0
      %924 = vmatpush2.bf16.msra.mxu0 0
      %925 = vmatprep.subr.bf16.mxu0 0
      %926 = vmatpush2.bf16.msra.mxu0 0
      %927 = vmatprep.subr.bf16.mxu0 0
      %928 = vmatpush2.bf16.msra.mxu0 0
      %929 = vmatprep.subr.bf16.mxu0 0
      %930 = vmatpush2.bf16.msra.mxu0 0
      %931 = vmatprep.subr.bf16.mxu0 0
      %932 = vmatpush2.bf16.msra.mxu0 0
      %933 = vmatprep.subr.bf16.mxu0 0
      %934 = vmatpush2.bf16.msra.mxu0 0
      %935 = vmatprep.mubr.bf16.mxu0 0
      %936 = vmatmul.mubr.bf16.gmra.mxu0 %v784
      %v937 = vpop.f32.mrf.mxu0
      %v938 = vadd.f32 %v886, %v937
      %v939 = vpop.f32.mrf.mxu0
      %v940 = vpop.f32.mrf.mxu0
      %v941 = vpop.f32.mrf.mxu0
      %942 = vdwg.mxu0
      %v944 = vlaneseq
      %v945 = vshrl.u32 %v944, 7
      %v946 = vsub.s32 0, %v945
      %v947 = vrot.slane %v692, %v946
      %v949 = vadd.f32 %v938, %v947
      %v950 = vxor.u32 %v949, 2147483648
      %v951 = vmul.f32 %v950, 1.442695
      %v952 = vpow.pop %v951
      %v953 = vadd.f32 %v952, 1.0
      %v954 = vrcp.pop %v953
      %v955 = vmul.f32 1.0, %v954
      %v960 = vunpack.c.l.b16 %v681
      %v961 = vunpack.c.l.b16 %v682
      %v962 = vunpack.c.l.b16 %v683
      %v963 = vunpack.c.l.b16 %v684
      %v964 = vpack.c.b16 %v961, %v960
      %v965 = vpack.c.b16 %v963, %v962
      %968 = vmatprep.subr.bf16.mxu0 0
      %969 = vmatpush1.bf16.msra.mxu0 0
      %970 = vmatprep.subr.bf16.mxu0 0
      %971 = vmatpush1.bf16.msra.mxu0 0
      %972 = vmatprep.subr.bf16.mxu0 0
      %973 = vmatpush1.bf16.msra.mxu0 0
      %974 = vmatprep.subr.bf16.mxu0 0
      %975 = vmatpush1.bf16.msra.mxu0 0
      %976 = vmatprep.subr.bf16.mxu0 0
      %977 = vmatpush1.bf16.msra.mxu0 0
      %978 = vmatprep.subr.bf16.mxu0 0
      %979 = vmatpush1.bf16.msra.mxu0 0
      %980 = vmatprep.subr.bf16.mxu0 0
      %981 = vmatpush1.bf16.msra.mxu0 %v965
      %982 = vmatprep.subr.bf16.mxu0 0
      %983 = vmatpush1.bf16.msra.mxu0 %v964
      %984 = vmatprep.subr.bf16.mxu0 0
      %985 = vmatpush2.bf16.msra.mxu0 0
      %986 = vmatprep.subr.bf16.mxu0 0
      %987 = vmatpush2.bf16.msra.mxu0 0
      %988 = vmatprep.subr.bf16.mxu0 0
      %989 = vmatpush2.bf16.msra.mxu0 0
      %990 = vmatprep.subr.bf16.mxu0 0
      %991 = vmatpush2.bf16.msra.mxu0 0
      %992 = vmatprep.subr.bf16.mxu0 0
      %993 = vmatpush2.bf16.msra.mxu0 0
      %994 = vmatprep.subr.bf16.mxu0 0
      %995 = vmatpush2.bf16.msra.mxu0 0
      %996 = vmatprep.subr.bf16.mxu0 0
      %997 = vmatpush2.bf16.msra.mxu0 0
      %998 = vmatprep.subr.bf16.mxu0 0
      %999 = vmatpush2.bf16.msra.mxu0 0
      %1000 = vmatprep.mubr.bf16.mxu0 0
      %1001 = vmatmul.mubr.bf16.gmra.mxu0 %v729
      %v1002 = vpop.f32.mrf.mxu0
      %v1003 = vadd.f32 0.0, %v1002
      %v1004 = vpop.f32.mrf.mxu0
      %v1005 = vpop.f32.mrf.mxu0
      %v1006 = vpop.f32.mrf.mxu0
      %1007 = vdwg.mxu0
      %v1012 = vunpack.c.l.b16 %v662
      %v1013 = vunpack.c.l.b16 %v663
      %v1014 = vunpack.c.l.b16 %v664
      %v1015 = vunpack.c.l.b16 %v665
      %v1016 = vpack.c.b16 %v1013, %v1012
      %v1017 = vpack.c.b16 %v1015, %v1014
      %1020 = vmatprep.subr.bf16.mxu0 0
      %1021 = vmatpush1.bf16.msra.mxu0 0
      %1022 = vmatprep.subr.bf16.mxu0 0
      %1023 = vmatpush1.bf16.msra.mxu0 0
      %1024 = vmatprep.subr.bf16.mxu0 0
      %1025 = vmatpush1.bf16.msra.mxu0 0
      %1026 = vmatprep.subr.bf16.mxu0 0
      %1027 = vmatpush1.bf16.msra.mxu0 0
      %1028 = vmatprep.subr.bf16.mxu0 0
      %1029 = vmatpush1.bf16.msra.mxu0 0
      %1030 = vmatprep.subr.bf16.mxu0 0
      %1031 = vmatpush1.bf16.msra.mxu0 0
      %1032 = vmatprep.subr.bf16.mxu0 0
      %1033 = vmatpush1.bf16.msra.mxu0 %v1017
      %1034 = vmatprep.subr.bf16.mxu0 0
      %1035 = vmatpush1.bf16.msra.mxu0 %v1016
      %1036 = vmatprep.subr.bf16.mxu0 0
      %1037 = vmatpush2.bf16.msra.mxu0 0
      %1038 = vmatprep.subr.bf16.mxu0 0
      %1039 = vmatpush2.bf16.msra.mxu0 0
      %1040 = vmatprep.subr.bf16.mxu0 0
      %1041 = vmatpush2.bf16.msra.mxu0 0
      %1042 = vmatprep.subr.bf16.mxu0 0
      %1043 = vmatpush2.bf16.msra.mxu0 0
      %1044 = vmatprep.subr.bf16.mxu0 0
      %1045 = vmatpush2.bf16.msra.mxu0 0
      %1046 = vmatprep.subr.bf16.mxu0 0
      %1047 = vmatpush2.bf16.msra.mxu0 0
      %1048 = vmatprep.subr.bf16.mxu0 0
      %1049 = vmatpush2.bf16.msra.mxu0 0
      %1050 = vmatprep.subr.bf16.mxu0 0
      %1051 = vmatpush2.bf16.msra.mxu0 0
      %1052 = vmatprep.mubr.bf16.mxu0 0
      %1053 = vmatmul.mubr.bf16.gmra.mxu0 %v784
      %v1054 = vpop.f32.mrf.mxu0
      %v1055 = vadd.f32 %v1003, %v1054
      %v1056 = vpop.f32.mrf.mxu0
      %v1057 = vpop.f32.mrf.mxu0
      %v1058 = vpop.f32.mrf.mxu0
      %1059 = vdwg.mxu0
      %v1061 = vlaneseq
      %v1062 = vshrl.u32 %v1061, 7
      %v1063 = vsub.s32 0, %v1062
      %v1064 = vrot.slane %v694, %v1063
      %v1066 = vadd.f32 %v1055, %v1064
      %v1067 = vtanh.pop %v1066
      %v1072 = vunpack.c.l.b16 %v686
      %v1073 = vunpack.c.l.b16 %v687
      %v1074 = vunpack.c.l.b16 %v688
      %v1075 = vunpack.c.l.b16 %v689
      %v1076 = vpack.c.b16 %v1073, %v1072
      %v1077 = vpack.c.b16 %v1075, %v1074
      %1080 = vmatprep.subr.bf16.mxu0 0
      %1081 = vmatpush1.bf16.msra.mxu0 0
      %1082 = vmatprep.subr.bf16.mxu0 0
      %1083 = vmatpush1.bf16.msra.mxu0 0
      %1084 = vmatprep.subr.bf16.mxu0 0
      %1085 = vmatpush1.bf16.msra.mxu0 0
      %1086 = vmatprep.subr.bf16.mxu0 0
      %1087 = vmatpush1.bf16.msra.mxu0 0
      %1088 = vmatprep.subr.bf16.mxu0 0
      %1089 = vmatpush1.bf16.msra.mxu0 0
      %1090 = vmatprep.subr.bf16.mxu0 0
      %1091 = vmatpush1.bf16.msra.mxu0 0
      %1092 = vmatprep.subr.bf16.mxu0 0
      %1093 = vmatpush1.bf16.msra.mxu0 %v1077
      %1094 = vmatprep.subr.bf16.mxu0 0
      %1095 = vmatpush1.bf16.msra.mxu0 %v1076
      %1096 = vmatprep.subr.bf16.mxu0 0
      %1097 = vmatpush2.bf16.msra.mxu0 0
      %1098 = vmatprep.subr.bf16.mxu0 0
      %1099 = vmatpush2.bf16.msra.mxu0 0
      %1100 = vmatprep.subr.bf16.mxu0 0
      %1101 = vmatpush2.bf16.msra.mxu0 0
      %1102 = vmatprep.subr.bf16.mxu0 0
      %1103 = vmatpush2.bf16.msra.mxu0 0
      %1104 = vmatprep.subr.bf16.mxu0 0
      %1105 = vmatpush2.bf16.msra.mxu0 0
      %1106 = vmatprep.subr.bf16.mxu0 0
      %1107 = vmatpush2.bf16.msra.mxu0 0
      %1108 = vmatprep.subr.bf16.mxu0 0
      %1109 = vmatpush2.bf16.msra.mxu0 0
      %1110 = vmatprep.subr.bf16.mxu0 0
      %1111 = vmatpush2.bf16.msra.mxu0 0
      %1112 = vmatprep.mubr.bf16.mxu0 0
      %1113 = vmatmul.mubr.bf16.gmra.mxu0 %v729
      %v1114 = vpop.f32.mrf.mxu0
      %v1115 = vadd.f32 0.0, %v1114
      %v1116 = vpop.f32.mrf.mxu0
      %v1117 = vpop.f32.mrf.mxu0
      %v1118 = vpop.f32.mrf.mxu0
      %1119 = vdwg.mxu0
      %v1124 = vunpack.c.l.b16 %v667
      %v1125 = vunpack.c.l.b16 %v668
      %v1126 = vunpack.c.l.b16 %v669
      %v1127 = vunpack.c.l.b16 %v670
      %v1128 = vpack.c.b16 %v1125, %v1124
      %v1129 = vpack.c.b16 %v1127, %v1126
      %1132 = vmatprep.subr.bf16.mxu0 0
      %1133 = vmatpush1.bf16.msra.mxu0 0
      %1134 = vmatprep.subr.bf16.mxu0 0
      %1135 = vmatpush1.bf16.msra.mxu0 0
      %1136 = vmatprep.subr.bf16.mxu0 0
      %1137 = vmatpush1.bf16.msra.mxu0 0
      %1138 = vmatprep.subr.bf16.mxu0 0
      %1139 = vmatpush1.bf16.msra.mxu0 0
      %1140 = vmatprep.subr.bf16.mxu0 0
      %1141 = vmatpush1.bf16.msra.mxu0 0
      %1142 = vmatprep.subr.bf16.mxu0 0
      %1143 = vmatpush1.bf16.msra.mxu0 0
      %1144 = vmatprep.subr.bf16.mxu0 0
      %1145 = vmatpush1.bf16.msra.mxu0 %v1129
      %1146 = vmatprep.subr.bf16.mxu0 0
      %1147 = vmatpush1.bf16.msra.mxu0 %v1128
      %1148 = vmatprep.subr.bf16.mxu0 0
      %1149 = vmatpush2.bf16.msra.mxu0 0
      %1150 = vmatprep.subr.bf16.mxu0 0
      %1151 = vmatpush2.bf16.msra.mxu0 0
      %1152 = vmatprep.subr.bf16.mxu0 0
      %1153 = vmatpush2.bf16.msra.mxu0 0
      %1154 = vmatprep.subr.bf16.mxu0 0
      %1155 = vmatpush2.bf16.msra.mxu0 0
      %1156 = vmatprep.subr.bf16.mxu0 0
      %1157 = vmatpush2.bf16.msra.mxu0 0
      %1158 = vmatprep.subr.bf16.mxu0 0
      %1159 = vmatpush2.bf16.msra.mxu0 0
      %1160 = vmatprep.subr.bf16.mxu0 0
      %1161 = vmatpush2.bf16.msra.mxu0 0
      %1162 = vmatprep.subr.bf16.mxu0 0
      %1163 = vmatpush2.bf16.msra.mxu0 0
      %1164 = vmatprep.mubr.bf16.mxu0 0
      %1165 = vmatmul.mubr.bf16.gmra.mxu0 %v784
      %v1166 = vpop.f32.mrf.mxu0
      %v1167 = vadd.f32 %v1115, %v1166
      %v1168 = vpop.f32.mrf.mxu0
      %v1169 = vpop.f32.mrf.mxu0
      %v1170 = vpop.f32.mrf.mxu0
      %1171 = vdwg.mxu0
      %v1173 = vlaneseq
      %v1174 = vshrl.u32 %v1173, 7
      %v1175 = vsub.s32 0, %v1174
      %v1176 = vrot.slane %v696, %v1175
      %v1178 = vadd.f32 %v1167, %v1176
      %v1179 = vxor.u32 %v1178, 2147483648
      %v1180 = vmul.f32 %v1179, 1.442695
      %v1181 = vpow.pop %v1180
      %v1182 = vadd.f32 %v1181, 1.0
      %v1183 = vrcp.pop %v1182
      %v1184 = vmul.f32 1.0, %v1183
      %v1185 = vmul.f32 %v955, %v714
      %v1186 = vmul.f32 %v838, %v1067
      %v1187 = vadd.f32 %v1185, %v1186
      %v1188 = vtanh.pop %v1187
      %v1189 = vmul.f32 %v1184, %v1188
      %v1190 = vpack.c.bf16 %v1189, %v1189
      %v1193 = vunpack.c.l.s4 1966171168
      %v1194 = vunpack.c.0.s8 %v1193
      %v1195 = vlaneseq
      %v1196 = vshrl.u32 %v1195, 7
      %v1197 = vsub.s32 %v1194, %v1196
      %v1198 = vrot.slane %v1190, %v1197
      %v1199 = vcombine.high %v1198, %v1198
      %v1201 = vunpack.c.l.s4 1966171168
      %v1202 = vunpack.c.0.s8 %v1201
      %v1203 = vlaneseq
      %v1204 = vshrl.u32 %v1203, 7
      %v1205 = vsub.s32 %v1202, %v1204
      %v1206 = vrot.slane %v1198, %v1205
      %v1208 = vunpack.c.l.s4 1966171168
      %v1209 = vunpack.c.0.s8 %v1208
      %v1210 = vlaneseq
      %v1211 = vshrl.u32 %v1210, 7
      %v1212 = vsub.s32 %v1209, %v1211
      %v1213 = vrot.slane %v1199, %v1212
      %v1214 = vcombine.high %v1206, %v1206
      %v1215 = vcombine.high %v1213, %v1213
      %v1216 = vunpack.i.l.s16 %v1206
      %v1217 = vunpack.i.h.s16 %v1206
      %v1218 = vunpack.i.l.s16 %v1213
      %v1219 = vunpack.i.h.s16 %v1213
      %v1220 = vunpack.i.l.s16 %v1214
      %v1221 = vunpack.i.h.s16 %v1214
      %v1222 = vunpack.i.l.s16 %v1215
      %v1223 = vunpack.i.h.s16 %v1215
      %v1224 = vpack.i.b16 %v1216, %v1216
      %v1225 = vlaneseq
      %v1226 = vshrl.u32 %v1225, 7
      %v1227 = vsub.s32 0, %v1226
      %v1228 = vrot.slane %v1224, %v1227
      %v1230 = vsel %vm727, %v1228, 0
      %v1233 = vsel %vm727, %v643, 0
      %1235 = vmatprep.subr.bf16.mxu0 0
      %1236 = vmatpush1.bf16.xpose.msra.mxu0 0
      %1237 = vmatprep.subr.bf16.mxu0 0
      %1238 = vmatpush1.bf16.xpose.msra.mxu0 0
      %1239 = vmatprep.subr.bf16.mxu0 0
      %1240 = vmatpush1.bf16.xpose.msra.mxu0 0
      %1241 = vmatprep.subr.bf16.mxu0 0
      %1242 = vmatpush1.bf16.xpose.msra.mxu0 0
      %1243 = vmatprep.subr.bf16.mxu0 0
      %1244 = vmatpush1.bf16.xpose.msra.mxu0 0
      %1245 = vmatprep.subr.bf16.mxu0 0
      %1246 = vmatpush1.bf16.xpose.msra.mxu0 0
      %1247 = vmatprep.subr.bf16.mxu0 0
      %1248 = vmatpush1.bf16.xpose.msra.mxu0 0
      %1249 = vmatprep.subr.bf16.mxu0 0
      %1250 = vmatpush1.bf16.xpose.msra.mxu0 %v1233
      %1251 = vmatprep.subr.bf16.mxu0 0
      %1252 = vmatpush2.bf16.xpose.msra.mxu0 0
      %1253 = vmatprep.subr.bf16.mxu0 0
      %1254 = vmatpush2.bf16.xpose.msra.mxu0 0
      %1255 = vmatprep.subr.bf16.mxu0 0
      %1256 = vmatpush2.bf16.xpose.msra.mxu0 0
      %1257 = vmatprep.subr.bf16.mxu0 0
      %1258 = vmatpush2.bf16.xpose.msra.mxu0 0
      %1259 = vmatprep.subr.bf16.mxu0 0
      %1260 = vmatpush2.bf16.xpose.msra.mxu0 0
      %1261 = vmatprep.subr.bf16.mxu0 0
      %1262 = vmatpush2.bf16.xpose.msra.mxu0 0
      %1263 = vmatprep.subr.bf16.mxu0 0
      %1264 = vmatpush2.bf16.xpose.msra.mxu0 0
      %1265 = vmatprep.subr.bf16.mxu0 0
      %1266 = vmatpush2.bf16.xpose.msra.mxu0 0
      %1267 = vmatprep.mubr.bf16.mxu0 0
      %1268 = vmatmul.mubr.bf16.gmra.mxu0 %v1230
      %v1269 = vpop.f32.mrf.mxu0
      %v1270 = vadd.f32 %v627, %v1269
      %v1271 = vpop.f32.mrf.mxu0
      %v1272 = vpop.f32.mrf.mxu0
      %v1273 = vpop.f32.mrf.mxu0
      %1274 = vdwg.mxu0
      %v1275 = vpack.i.b16 %v1217, %v1217
      %v1276 = vlaneseq
      %v1277 = vshrl.u32 %v1276, 7
      %v1278 = vsub.s32 0, %v1277
      %v1279 = vrot.slane %v1275, %v1278
      %v1281 = vsel %vm727, %v1279, 0
      %v1284 = vsel %vm727, %v644, 0
      %1286 = vmatprep.subr.bf16.mxu0 0
      %1287 = vmatpush1.bf16.xpose.msra.mxu0 0
      %1288 = vmatprep.subr.bf16.mxu0 0
      %1289 = vmatpush1.bf16.xpose.msra.mxu0 0
      %1290 = vmatprep.subr.bf16.mxu0 0
      %1291 = vmatpush1.bf16.xpose.msra.mxu0 0
      %1292 = vmatprep.subr.bf16.mxu0 0
      %1293 = vmatpush1.bf16.xpose.msra.mxu0 0
      %1294 = vmatprep.subr.bf16.mxu0 0
      %1295 = vmatpush1.bf16.xpose.msra.mxu0 0
      %1296 = vmatprep.subr.bf16.mxu0 0
      %1297 = vmatpush1.bf16.xpose.msra.mxu0 0
      %1298 = vmatprep.subr.bf16.mxu0 0
      %1299 = vmatpush1.bf16.xpose.msra.mxu0 0
      %1300 = vmatprep.subr.bf16.mxu0 0
      %1301 = vmatpush1.bf16.xpose.msra.mxu0 %v1284
      %1302 = vmatprep.subr.bf16.mxu0 0
      %1303 = vmatpush2.bf16.xpose.msra.mxu0 0
      %1304 = vmatprep.subr.bf16.mxu0 0
      %1305 = vmatpush2.bf16.xpose.msra.mxu0 0
      %1306 = vmatprep.subr.bf16.mxu0 0
      %1307 = vmatpush2.bf16.xpose.msra.mxu0 0
      %1308 = vmatprep.subr.bf16.mxu0 0
      %1309 = vmatpush2.bf16.xpose.msra.mxu0 0
      %1310 = vmatprep.subr.bf16.mxu0 0
      %1311 = vmatpush2.bf16.xpose.msra.mxu0 0
      %1312 = vmatprep.subr.bf16.mxu0 0
      %1313 = vmatpush2.bf16.xpose.msra.mxu0 0
      %1314 = vmatprep.subr.bf16.mxu0 0
      %1315 = vmatpush2.bf16.xpose.msra.mxu0 0
      %1316 = vmatprep.subr.bf16.mxu0 0
      %1317 = vmatpush2.bf16.xpose.msra.mxu0 0
      %1318 = vmatprep.mubr.bf16.mxu0 0
      %1319 = vmatmul.mubr.bf16.gmra.mxu0 %v1281
      %v1320 = vpop.f32.mrf.mxu0
      %v1321 = vadd.f32 %v628, %v1320
      %v1322 = vpop.f32.mrf.mxu0
      %v1323 = vpop.f32.mrf.mxu0
      %v1324 = vpop.f32.mrf.mxu0
      %1325 = vdwg.mxu0
      %v1326 = vpack.i.b16 %v1218, %v1218
      %v1327 = vlaneseq
      %v1328 = vshrl.u32 %v1327, 7
      %v1329 = vsub.s32 0, %v1328
      %v1330 = vrot.slane %v1326, %v1329
      %v1332 = vsel %vm727, %v1330, 0
      %v1335 = vsel %vm727, %v645, 0
      %1337 = vmatprep.subr.bf16.mxu0 0
      %1338 = vmatpush1.bf16.xpose.msra.mxu0 0
      %1339 = vmatprep.subr.bf16.mxu0 0
      %1340 = vmatpush1.bf16.xpose.msra.mxu0 0
      %1341 = vmatprep.subr.bf16.mxu0 0
      %1342 = vmatpush1.bf16.xpose.msra.mxu0 0
      %1343 = vmatprep.subr.bf16.mxu0 0
      %1344 = vmatpush1.bf16.xpose.msra.mxu0 0
      %1345 = vmatprep.subr.bf16.mxu0 0
      %1346 = vmatpush1.bf16.xpose.msra.mxu0 0
      %1347 = vmatprep.subr.bf16.mxu0 0
      %1348 = vmatpush1.bf16.xpose.msra.mxu0 0
      %1349 = vmatprep.subr.bf16.mxu0 0
      %1350 = vmatpush1.bf16.xpose.msra.mxu0 0
      %1351 = vmatprep.subr.bf16.mxu0 0
      %1352 = vmatpush1.bf16.xpose.msra.mxu0 %v1335
      %1353 = vmatprep.subr.bf16.mxu0 0
      %1354 = vmatpush2.bf16.xpose.msra.mxu0 0
      %1355 = vmatprep.subr.bf16.mxu0 0
      %1356 = vmatpush2.bf16.xpose.msra.mxu0 0
      %1357 = vmatprep.subr.bf16.mxu0 0
      %1358 = vmatpush2.bf16.xpose.msra.mxu0 0
      %1359 = vmatprep.subr.bf16.mxu0 0
      %1360 = vmatpush2.bf16.xpose.msra.mxu0 0
      %1361 = vmatprep.subr.bf16.mxu0 0
      %1362 = vmatpush2.bf16.xpose.msra.mxu0 0
      %1363 = vmatprep.subr.bf16.mxu0 0
      %1364 = vmatpush2.bf16.xpose.msra.mxu0 0
      %1365 = vmatprep.subr.bf16.mxu0 0
      %1366 = vmatpush2.bf16.xpose.msra.mxu0 0
      %1367 = vmatprep.subr.bf16.mxu0 0
      %1368 = vmatpush2.bf16.xpose.msra.mxu0 0
      %1369 = vmatprep.mubr.bf16.mxu0 0
      %1370 = vmatmul.mubr.bf16.gmra.mxu0 %v1332
      %v1371 = vpop.f32.mrf.mxu0
      %v1372 = vadd.f32 %v629, %v1371
      %v1373 = vpop.f32.mrf.mxu0
      %v1374 = vpop.f32.mrf.mxu0
      %v1375 = vpop.f32.mrf.mxu0
      %1376 = vdwg.mxu0
      %v1377 = vpack.i.b16 %v1219, %v1219
      %v1378 = vlaneseq
      %v1379 = vshrl.u32 %v1378, 7
      %v1380 = vsub.s32 0, %v1379
      %v1381 = vrot.slane %v1377, %v1380
      %v1383 = vsel %vm727, %v1381, 0
      %v1386 = vsel %vm727, %v646, 0
      %1388 = vmatprep.subr.bf16.mxu0 0
      %1389 = vmatpush1.bf16.xpose.msra.mxu0 0
      %1390 = vmatprep.subr.bf16.mxu0 0
      %1391 = vmatpush1.bf16.xpose.msra.mxu0 0
      %1392 = vmatprep.subr.bf16.mxu0 0
      %1393 = vmatpush1.bf16.xpose.msra.mxu0 0
      %1394 = vmatprep.subr.bf16.mxu0 0
      %1395 = vmatpush1.bf16.xpose.msra.mxu0 0
      %1396 = vmatprep.subr.bf16.mxu0 0
      %1397 = vmatpush1.bf16.xpose.msra.mxu0 0
      %1398 = vmatprep.subr.bf16.mxu0 0
      %1399 = vmatpush1.bf16.xpose.msra.mxu0 0
      %1400 = vmatprep.subr.bf16.mxu0 0
      %1401 = vmatpush1.bf16.xpose.msra.mxu0 0
      %1402 = vmatprep.subr.bf16.mxu0 0
      %1403 = vmatpush1.bf16.xpose.msra.mxu0 %v1386
      %1404 = vmatprep.subr.bf16.mxu0 0
      %1405 = vmatpush2.bf16.xpose.msra.mxu0 0
      %1406 = vmatprep.subr.bf16.mxu0 0
      %1407 = vmatpush2.bf16.xpose.msra.mxu0 0
      %1408 = vmatprep.subr.bf16.mxu0 0
      %1409 = vmatpush2.bf16.xpose.msra.mxu0 0
      %1410 = vmatprep.subr.bf16.mxu0 0
      %1411 = vmatpush2.bf16.xpose.msra.mxu0 0
      %1412 = vmatprep.subr.bf16.mxu0 0
      %1413 = vmatpush2.bf16.xpose.msra.mxu0 0
      %1414 = vmatprep.subr.bf16.mxu0 0
      %1415 = vmatpush2.bf16.xpose.msra.mxu0 0
      %1416 = vmatprep.subr.bf16.mxu0 0
      %1417 = vmatpush2.bf16.xpose.msra.mxu0 0
      %1418 = vmatprep.subr.bf16.mxu0 0
      %1419 = vmatpush2.bf16.xpose.msra.mxu0 0
      %1420 = vmatprep.mubr.bf16.mxu0 0
      %1421 = vmatmul.mubr.bf16.gmra.mxu0 %v1383
      %v1422 = vpop.f32.mrf.mxu0
      %v1423 = vadd.f32 %v630, %v1422
      %v1424 = vpop.f32.mrf.mxu0
      %v1425 = vpop.f32.mrf.mxu0
      %v1426 = vpop.f32.mrf.mxu0
      %1427 = vdwg.mxu0
      %v1428 = vpack.i.b16 %v1220, %v1220
      %v1429 = vlaneseq
      %v1430 = vshrl.u32 %v1429, 7
      %v1431 = vsub.s32 0, %v1430
      %v1432 = vrot.slane %v1428, %v1431
      %v1434 = vsel %vm727, %v1432, 0
      %v1437 = vsel %vm727, %v647, 0
      %1439 = vmatprep.subr.bf16.mxu0 0
      %1440 = vmatpush1.bf16.xpose.msra.mxu0 0
      %1441 = vmatprep.subr.bf16.mxu0 0
      %1442 = vmatpush1.bf16.xpose.msra.mxu0 0
      %1443 = vmatprep.subr.bf16.mxu0 0
      %1444 = vmatpush1.bf16.xpose.msra.mxu0 0
      %1445 = vmatprep.subr.bf16.mxu0 0
      %1446 = vmatpush1.bf16.xpose.msra.mxu0 0
      %1447 = vmatprep.subr.bf16.mxu0 0
      %1448 = vmatpush1.bf16.xpose.msra.mxu0 0
      %1449 = vmatprep.subr.bf16.mxu0 0
      %1450 = vmatpush1.bf16.xpose.msra.mxu0 0
      %1451 = vmatprep.subr.bf16.mxu0 0
      %1452 = vmatpush1.bf16.xpose.msra.mxu0 0
      %1453 = vmatprep.subr.bf16.mxu0 0
      %1454 = vmatpush1.bf16.xpose.msra.mxu0 %v1437
      %1455 = vmatprep.subr.bf16.mxu0 0
      %1456 = vmatpush2.bf16.xpose.msra.mxu0 0
      %1457 = vmatprep.subr.bf16.mxu0 0
      %1458 = vmatpush2.bf16.xpose.msra.mxu0 0
      %1459 = vmatprep.subr.bf16.mxu0 0
      %1460 = vmatpush2.bf16.xpose.msra.mxu0 0
      %1461 = vmatprep.subr.bf16.mxu0 0
      %1462 = vmatpush2.bf16.xpose.msra.mxu0 0
      %1463 = vmatprep.subr.bf16.mxu0 0
      %1464 = vmatpush2.bf16.xpose.msra.mxu0 0
      %1465 = vmatprep.subr.bf16.mxu0 0
      %1466 = vmatpush2.bf16.xpose.msra.mxu0 0
      %1467 = vmatprep.subr.bf16.mxu0 0
      %1468 = vmatpush2.bf16.xpose.msra.mxu0 0
      %1469 = vmatprep.subr.bf16.mxu0 0
      %1470 = vmatpush2.bf16.xpose.msra.mxu0 0
      %1471 = vmatprep.mubr.bf16.mxu0 0
      %1472 = vmatmul.mubr.bf16.gmra.mxu0 %v1434
      %v1473 = vpop.f32.mrf.mxu0
      %v1474 = vadd.f32 %v631, %v1473
      %v1475 = vpop.f32.mrf.mxu0
      %v1476 = vpop.f32.mrf.mxu0
      %v1477 = vpop.f32.mrf.mxu0
      %1478 = vdwg.mxu0
      %v1479 = vpack.i.b16 %v1221, %v1221
      %v1480 = vlaneseq
      %v1481 = vshrl.u32 %v1480, 7
      %v1482 = vsub.s32 0, %v1481
      %v1483 = vrot.slane %v1479, %v1482
      %v1485 = vsel %vm727, %v1483, 0
      %v1488 = vsel %vm727, %v648, 0
      %1490 = vmatprep.subr.bf16.mxu0 0
      %1491 = vmatpush1.bf16.xpose.msra.mxu0 0
      %1492 = vmatprep.subr.bf16.mxu0 0
      %1493 = vmatpush1.bf16.xpose.msra.mxu0 0
      %1494 = vmatprep.subr.bf16.mxu0 0
      %1495 = vmatpush1.bf16.xpose.msra.mxu0 0
      %1496 = vmatprep.subr.bf16.mxu0 0
      %1497 = vmatpush1.bf16.xpose.msra.mxu0 0
      %1498 = vmatprep.subr.bf16.mxu0 0
      %1499 = vmatpush1.bf16.xpose.msra.mxu0 0
      %1500 = vmatprep.subr.bf16.mxu0 0
      %1501 = vmatpush1.bf16.xpose.msra.mxu0 0
      %1502 = vmatprep.subr.bf16.mxu0 0
      %1503 = vmatpush1.bf16.xpose.msra.mxu0 0
      %1504 = vmatprep.subr.bf16.mxu0 0
      %1505 = vmatpush1.bf16.xpose.msra.mxu0 %v1488
      %1506 = vmatprep.subr.bf16.mxu0 0
      %1507 = vmatpush2.bf16.xpose.msra.mxu0 0
      %1508 = vmatprep.subr.bf16.mxu0 0
      %1509 = vmatpush2.bf16.xpose.msra.mxu0 0
      %1510 = vmatprep.subr.bf16.mxu0 0
      %1511 = vmatpush2.bf16.xpose.msra.mxu0 0
      %1512 = vmatprep.subr.bf16.mxu0 0
      %1513 = vmatpush2.bf16.xpose.msra.mxu0 0
      %1514 = vmatprep.subr.bf16.mxu0 0
      %1515 = vmatpush2.bf16.xpose.msra.mxu0 0
      %1516 = vmatprep.subr.bf16.mxu0 0
      %1517 = vmatpush2.bf16.xpose.msra.mxu0 0
      %1518 = vmatprep.subr.bf16.mxu0 0
      %1519 = vmatpush2.bf16.xpose.msra.mxu0 0
      %1520 = vmatprep.subr.bf16.mxu0 0
      %1521 = vmatpush2.bf16.xpose.msra.mxu0 0
      %1522 = vmatprep.mubr.bf16.mxu0 0
      %1523 = vmatmul.mubr.bf16.gmra.mxu0 %v1485
      %v1524 = vpop.f32.mrf.mxu0
      %v1525 = vadd.f32 %v632, %v1524
      %v1526 = vpop.f32.mrf.mxu0
      %v1527 = vpop.f32.mrf.mxu0
      %v1528 = vpop.f32.mrf.mxu0
      %1529 = vdwg.mxu0
      %v1530 = vpack.i.b16 %v1222, %v1222
      %v1531 = vlaneseq
      %v1532 = vshrl.u32 %v1531, 7
      %v1533 = vsub.s32 0, %v1532
      %v1534 = vrot.slane %v1530, %v1533
      %v1536 = vsel %vm727, %v1534, 0
      %v1539 = vsel %vm727, %v649, 0
      %1541 = vmatprep.subr.bf16.mxu0 0
      %1542 = vmatpush1.bf16.xpose.msra.mxu0 0
      %1543 = vmatprep.subr.bf16.mxu0 0
      %1544 = vmatpush1.bf16.xpose.msra.mxu0 0
      %1545 = vmatprep.subr.bf16.mxu0 0
      %1546 = vmatpush1.bf16.xpose.msra.mxu0 0
      %1547 = vmatprep.subr.bf16.mxu0 0
      %1548 = vmatpush1.bf16.xpose.msra.mxu0 0
      %1549 = vmatprep.subr.bf16.mxu0 0
      %1550 = vmatpush1.bf16.xpose.msra.mxu0 0
      %1551 = vmatprep.subr.bf16.mxu0 0
      %1552 = vmatpush1.bf16.xpose.msra.mxu0 0
      %1553 = vmatprep.subr.bf16.mxu0 0
      %1554 = vmatpush1.bf16.xpose.msra.mxu0 0
      %1555 = vmatprep.subr.bf16.mxu0 0
      %1556 = vmatpush1.bf16.xpose.msra.mxu0 %v1539
      %1557 = vmatprep.subr.bf16.mxu0 0
      %1558 = vmatpush2.bf16.xpose.msra.mxu0 0
      %1559 = vmatprep.subr.bf16.mxu0 0
      %1560 = vmatpush2.bf16.xpose.msra.mxu0 0
      %1561 = vmatprep.subr.bf16.mxu0 0
      %1562 = vmatpush2.bf16.xpose.msra.mxu0 0
      %1563 = vmatprep.subr.bf16.mxu0 0
      %1564 = vmatpush2.bf16.xpose.msra.mxu0 0
      %1565 = vmatprep.subr.bf16.mxu0 0
      %1566 = vmatpush2.bf16.xpose.msra.mxu0 0
      %1567 = vmatprep.subr.bf16.mxu0 0
      %1568 = vmatpush2.bf16.xpose.msra.mxu0 0
      %1569 = vmatprep.subr.bf16.mxu0 0
      %1570 = vmatpush2.bf16.xpose.msra.mxu0 0
      %1571 = vmatprep.subr.bf16.mxu0 0
      %1572 = vmatpush2.bf16.xpose.msra.mxu0 0
      %1573 = vmatprep.mubr.bf16.mxu0 0
      %1574 = vmatmul.mubr.bf16.gmra.mxu0 %v1536
      %v1575 = vpop.f32.mrf.mxu0
      %v1576 = vadd.f32 %v633, %v1575
      %v1577 = vpop.f32.mrf.mxu0
      %v1578 = vpop.f32.mrf.mxu0
      %v1579 = vpop.f32.mrf.mxu0
      %1580 = vdwg.mxu0
      %v1581 = vpack.i.b16 %v1223, %v1223
      %v1582 = vlaneseq
      %v1583 = vshrl.u32 %v1582, 7
      %v1584 = vsub.s32 0, %v1583
      %v1585 = vrot.slane %v1581, %v1584
      %v1587 = vsel %vm727, %v1585, 0
      %v1590 = vsel %vm727, %v650, 0
      %1592 = vmatprep.subr.bf16.mxu0 0
      %1593 = vmatpush1.bf16.xpose.msra.mxu0 0
      %1594 = vmatprep.subr.bf16.mxu0 0
      %1595 = vmatpush1.bf16.xpose.msra.mxu0 0
      %1596 = vmatprep.subr.bf16.mxu0 0
      %1597 = vmatpush1.bf16.xpose.msra.mxu0 0
      %1598 = vmatprep.subr.bf16.mxu0 0
      %1599 = vmatpush1.bf16.xpose.msra.mxu0 0
      %1600 = vmatprep.subr.bf16.mxu0 0
      %1601 = vmatpush1.bf16.xpose.msra.mxu0 0
      %1602 = vmatprep.subr.bf16.mxu0 0
      %1603 = vmatpush1.bf16.xpose.msra.mxu0 0
      %1604 = vmatprep.subr.bf16.mxu0 0
      %1605 = vmatpush1.bf16.xpose.msra.mxu0 0
      %1606 = vmatprep.subr.bf16.mxu0 0
      %1607 = vmatpush1.bf16.xpose.msra.mxu0 %v1590
      %1608 = vmatprep.subr.bf16.mxu0 0
      %1609 = vmatpush2.bf16.xpose.msra.mxu0 0
      %1610 = vmatprep.subr.bf16.mxu0 0
      %1611 = vmatpush2.bf16.xpose.msra.mxu0 0
      %1612 = vmatprep.subr.bf16.mxu0 0
      %1613 = vmatpush2.bf16.xpose.msra.mxu0 0
      %1614 = vmatprep.subr.bf16.mxu0 0
      %1615 = vmatpush2.bf16.xpose.msra.mxu0 0
      %1616 = vmatprep.subr.bf16.mxu0 0
      %1617 = vmatpush2.bf16.xpose.msra.mxu0 0
      %1618 = vmatprep.subr.bf16.mxu0 0
      %1619 = vmatpush2.bf16.xpose.msra.mxu0 0
      %1620 = vmatprep.subr.bf16.mxu0 0
      %1621 = vmatpush2.bf16.xpose.msra.mxu0 0
      %1622 = vmatprep.subr.bf16.mxu0 0
      %1623 = vmatpush2.bf16.xpose.msra.mxu0 0
      %1624 = vmatprep.mubr.bf16.mxu0 0
      %1625 = vmatmul.mubr.bf16.gmra.mxu0 %v1587
      %v1626 = vpop.f32.mrf.mxu0
      %v1627 = vadd.f32 %v634, %v1626
      %v1628 = vpop.f32.mrf.mxu0
      %v1629 = vpop.f32.mrf.mxu0
      %v1630 = vpop.f32.mrf.mxu0
      %1631 = vdwg.mxu0
      %vm1632 = vcmask 57344
      %v1633 = vsel %vm1632, %v1270, -inf
      %1634 = vmax.xlane.f32.xlu0 %v1633
      %v1635 = vpop.xlane.xlu0 %1634
      %v1636 = vsel %vm1632, %v1321, -inf
      %1637 = vmax.xlane.f32.xlu0 %v1636
      %v1638 = vpop.xlane.xlu0 %1637
      %v1639 = vsel %vm1632, %v1372, -inf
      %1640 = vmax.xlane.f32.xlu0 %v1639
      %v1641 = vpop.xlane.xlu0 %1640
      %v1642 = vsel %vm1632, %v1423, -inf
      %1643 = vmax.xlane.f32.xlu0 %v1642
      %v1644 = vpop.xlane.xlu0 %1643
      %v1645 = vsel %vm1632, %v1474, -inf
      %1646 = vmax.xlane.f32.xlu0 %v1645
      %v1647 = vpop.xlane.xlu0 %1646
      %v1648 = vsel %vm1632, %v1525, -inf
      %1649 = vmax.xlane.f32.xlu0 %v1648
      %v1650 = vpop.xlane.xlu0 %1649
      %v1651 = vsel %vm1632, %v1576, -inf
      %1652 = vmax.xlane.f32.xlu0 %v1651
      %v1653 = vpop.xlane.xlu0 %1652
      %v1654 = vsel %vm1632, %v1627, -inf
      %1655 = vmax.xlane.f32.xlu0 %v1654
      %v1656 = vpop.xlane.xlu0 %1655
      %v1657 = vsub.f32 %v1270, %v1635
      %v1658 = vsub.f32 %v1321, %v1638
      %v1659 = vsub.f32 %v1372, %v1641
      %v1660 = vsub.f32 %v1423, %v1644
      %v1661 = vsub.f32 %v1474, %v1647
      %v1662 = vsub.f32 %v1525, %v1650
      %v1663 = vsub.f32 %v1576, %v1653
      %v1664 = vsub.f32 %v1627, %v1656
      %v1665 = vmul.f32 %v1657, 1.442695
      %v1666 = vpow.pop %v1665
      %v1667 = vmul.f32 %v1658, 1.442695
      %v1668 = vpow.pop %v1667
      %v1669 = vmul.f32 %v1659, 1.442695
      %v1670 = vpow.pop %v1669
      %v1671 = vmul.f32 %v1660, 1.442695
      %v1672 = vpow.pop %v1671
      %v1673 = vmul.f32 %v1661, 1.442695
      %v1674 = vpow.pop %v1673
      %v1675 = vmul.f32 %v1662, 1.442695
      %v1676 = vpow.pop %v1675
      %v1677 = vmul.f32 %v1663, 1.442695
      %v1678 = vpow.pop %v1677
      %v1679 = vmul.f32 %v1664, 1.442695
      %v1680 = vpow.pop %v1679
      %v1681 = vsel %vm1632, %v1666, 0.0
      %1682 = vadd.xlane.f32.xlu0 %v1681
      %v1683 = vpop.xlane.xlu0 %1682
      %v1684 = vsel %vm1632, %v1668, 0.0
      %1685 = vadd.xlane.f32.xlu0 %v1684
      %v1686 = vpop.xlane.xlu0 %1685
      %v1687 = vsel %vm1632, %v1670, 0.0
      %1688 = vadd.xlane.f32.xlu0 %v1687
      %v1689 = vpop.xlane.xlu0 %1688
      %v1690 = vsel %vm1632, %v1672, 0.0
      %1691 = vadd.xlane.f32.xlu0 %v1690
      %v1692 = vpop.xlane.xlu0 %1691
      %v1693 = vsel %vm1632, %v1674, 0.0
      %1694 = vadd.xlane.f32.xlu0 %v1693
      %v1695 = vpop.xlane.xlu0 %1694
      %v1696 = vsel %vm1632, %v1676, 0.0
      %1697 = vadd.xlane.f32.xlu0 %v1696
      %v1698 = vpop.xlane.xlu0 %1697
      %v1699 = vsel %vm1632, %v1678, 0.0
      %1700 = vadd.xlane.f32.xlu0 %v1699
      %v1701 = vpop.xlane.xlu0 %1700
      %v1702 = vsel %vm1632, %v1680, 0.0
      %1703 = vadd.xlane.f32.xlu0 %v1702
      %v1704 = vpop.xlane.xlu0 %1703
      %v1705 = vrcp.pop %v1683
      %v1706 = vrcp.pop %v1686
      %v1707 = vrcp.pop %v1689
      %v1708 = vrcp.pop %v1692
      %v1709 = vrcp.pop %v1695
      %v1710 = vrcp.pop %v1698
      %v1711 = vrcp.pop %v1701
      %v1712 = vrcp.pop %v1704
      %v1713 = vmul.f32 %v1666, %v1705
      %v1714 = vmul.f32 %v1668, %v1706
      %v1715 = vmul.f32 %v1670, %v1707
      %v1716 = vmul.f32 %v1672, %v1708
      %v1717 = vmul.f32 %v1674, %v1709
      %v1718 = vmul.f32 %v1676, %v1710
      %v1719 = vmul.f32 %v1678, %v1711
      %v1720 = vmul.f32 %v1680, %v1712
      %v1721 = vpack.c.bf16 %v1713, %v1713
      %v1722 = vpack.c.bf16 %v1714, %v1714
      %v1723 = vpack.c.bf16 %v1715, %v1715
      %v1724 = vpack.c.bf16 %v1716, %v1716
      %v1725 = vpack.c.bf16 %v1717, %v1717
      %v1726 = vpack.c.bf16 %v1718, %v1718
      %v1727 = vpack.c.bf16 %v1719, %v1719
      %v1728 = vpack.c.bf16 %v1720, %v1720
      %vm1729 = vcmask 64512
      %v1731 = vsel %vm1729, %v1721, 0
      %vm1733 = vcmask 1043456
      %v1735 = vsel %vm1733, %v635, 0
      %1737 = vmatprep.subr.bf16.mxu0 0
      %1738 = vmatpush1.bf16.msra.mxu0 0
      %1739 = vmatprep.subr.bf16.mxu0 0
      %1740 = vmatpush1.bf16.msra.mxu0 0
      %1741 = vmatprep.subr.bf16.mxu0 0
      %1742 = vmatpush1.bf16.msra.mxu0 0
      %1743 = vmatprep.subr.bf16.mxu0 0
      %1744 = vmatpush1.bf16.msra.mxu0 0
      %1745 = vmatprep.subr.bf16.mxu0 0
      %1746 = vmatpush1.bf16.msra.mxu0 0
      %1747 = vmatprep.subr.bf16.mxu0 0
      %1748 = vmatpush1.bf16.msra.mxu0 0
      %1749 = vmatprep.subr.bf16.mxu0 0
      %1750 = vmatpush1.bf16.msra.mxu0 0
      %1751 = vmatprep.subr.bf16.mxu0 0
      %1752 = vmatpush1.bf16.msra.mxu0 %v1735
      %1753 = vmatprep.subr.bf16.mxu0 0
      %1754 = vmatpush2.bf16.msra.mxu0 0
      %1755 = vmatprep.subr.bf16.mxu0 0
      %1756 = vmatpush2.bf16.msra.mxu0 0
      %1757 = vmatprep.subr.bf16.mxu0 0
      %1758 = vmatpush2.bf16.msra.mxu0 0
      %1759 = vmatprep.subr.bf16.mxu0 0
      %1760 = vmatpush2.bf16.msra.mxu0 0
      %1761 = vmatprep.subr.bf16.mxu0 0
      %1762 = vmatpush2.bf16.msra.mxu0 0
      %1763 = vmatprep.subr.bf16.mxu0 0
      %1764 = vmatpush2.bf16.msra.mxu0 0
      %1765 = vmatprep.subr.bf16.mxu0 0
      %1766 = vmatpush2.bf16.msra.mxu0 0
      %1767 = vmatprep.subr.bf16.mxu0 0
      %1768 = vmatpush2.bf16.msra.mxu0 0
      %1769 = vmatprep.mubr.bf16.mxu0 0
      %1770 = vmatmul.mubr.bf16.gmra.mxu0 %v1731
      %v1771 = vpop.f32.mrf.mxu0
      %v1772 = vadd.f32 0.0, %v1771
      %v1773 = vpop.f32.mrf.mxu0
      %v1774 = vpop.f32.mrf.mxu0
      %v1775 = vpop.f32.mrf.mxu0
      %1776 = vdwg.mxu0
      %v1778 = vsel %vm1729, %v1722, 0
      %v1781 = vsel %vm1733, %v636, 0
      %1783 = vmatprep.subr.bf16.mxu0 0
      %1784 = vmatpush1.bf16.msra.mxu0 0
      %1785 = vmatprep.subr.bf16.mxu0 0
      %1786 = vmatpush1.bf16.msra.mxu0 0
      %1787 = vmatprep.subr.bf16.mxu0 0
      %1788 = vmatpush1.bf16.msra.mxu0 0
      %1789 = vmatprep.subr.bf16.mxu0 0
      %1790 = vmatpush1.bf16.msra.mxu0 0
      %1791 = vmatprep.subr.bf16.mxu0 0
      %1792 = vmatpush1.bf16.msra.mxu0 0
      %1793 = vmatprep.subr.bf16.mxu0 0
      %1794 = vmatpush1.bf16.msra.mxu0 0
      %1795 = vmatprep.subr.bf16.mxu0 0
      %1796 = vmatpush1.bf16.msra.mxu0 0
      %1797 = vmatprep.subr.bf16.mxu0 0
      %1798 = vmatpush1.bf16.msra.mxu0 %v1781
      %1799 = vmatprep.subr.bf16.mxu0 0
      %1800 = vmatpush2.bf16.msra.mxu0 0
      %1801 = vmatprep.subr.bf16.mxu0 0
      %1802 = vmatpush2.bf16.msra.mxu0 0
      %1803 = vmatprep.subr.bf16.mxu0 0
      %1804 = vmatpush2.bf16.msra.mxu0 0
      %1805 = vmatprep.subr.bf16.mxu0 0
      %1806 = vmatpush2.bf16.msra.mxu0 0
      %1807 = vmatprep.subr.bf16.mxu0 0
      %1808 = vmatpush2.bf16.msra.mxu0 0
      %1809 = vmatprep.subr.bf16.mxu0 0
      %1810 = vmatpush2.bf16.msra.mxu0 0
      %1811 = vmatprep.subr.bf16.mxu0 0
      %1812 = vmatpush2.bf16.msra.mxu0 0
      %1813 = vmatprep.subr.bf16.mxu0 0
      %1814 = vmatpush2.bf16.msra.mxu0 0
      %1815 = vmatprep.mubr.bf16.mxu0 0
      %1816 = vmatmul.mubr.bf16.gmra.mxu0 %v1778
      %v1817 = vpop.f32.mrf.mxu0
      %v1818 = vadd.f32 0.0, %v1817
      %v1819 = vpop.f32.mrf.mxu0
      %v1820 = vpop.f32.mrf.mxu0
      %v1821 = vpop.f32.mrf.mxu0
      %1822 = vdwg.mxu0
      %v1824 = vsel %vm1729, %v1723, 0
      %v1827 = vsel %vm1733, %v637, 0
      %1829 = vmatprep.subr.bf16.mxu0 0
      %1830 = vmatpush1.bf16.msra.mxu0 0
      %1831 = vmatprep.subr.bf16.mxu0 0
      %1832 = vmatpush1.bf16.msra.mxu0 0
      %1833 = vmatprep.subr.bf16.mxu0 0
      %1834 = vmatpush1.bf16.msra.mxu0 0
      %1835 = vmatprep.subr.bf16.mxu0 0
      %1836 = vmatpush1.bf16.msra.mxu0 0
      %1837 = vmatprep.subr.bf16.mxu0 0
      %1838 = vmatpush1.bf16.msra.mxu0 0
      %1839 = vmatprep.subr.bf16.mxu0 0
      %1840 = vmatpush1.bf16.msra.mxu0 0
      %1841 = vmatprep.subr.bf16.mxu0 0
      %1842 = vmatpush1.bf16.msra.mxu0 0
      %1843 = vmatprep.subr.bf16.mxu0 0
      %1844 = vmatpush1.bf16.msra.mxu0 %v1827
      %1845 = vmatprep.subr.bf16.mxu0 0
      %1846 = vmatpush2.bf16.msra.mxu0 0
      %1847 = vmatprep.subr.bf16.mxu0 0
      %1848 = vmatpush2.bf16.msra.mxu0 0
      %1849 = vmatprep.subr.bf16.mxu0 0
      %1850 = vmatpush2.bf16.msra.mxu0 0
      %1851 = vmatprep.subr.bf16.mxu0 0
      %1852 = vmatpush2.bf16.msra.mxu0 0
      %1853 = vmatprep.subr.bf16.mxu0 0
      %1854 = vmatpush2.bf16.msra.mxu0 0
      %1855 = vmatprep.subr.bf16.mxu0 0
      %1856 = vmatpush2.bf16.msra.mxu0 0
      %1857 = vmatprep.subr.bf16.mxu0 0
      %1858 = vmatpush2.bf16.msra.mxu0 0
      %1859 = vmatprep.subr.bf16.mxu0 0
      %1860 = vmatpush2.bf16.msra.mxu0 0
      %1861 = vmatprep.mubr.bf16.mxu0 0
      %1862 = vmatmul.mubr.bf16.gmra.mxu0 %v1824
      %v1863 = vpop.f32.mrf.mxu0
      %v1864 = vadd.f32 0.0, %v1863
      %v1865 = vpop.f32.mrf.mxu0
      %v1866 = vpop.f32.mrf.mxu0
      %v1867 = vpop.f32.mrf.mxu0
      %1868 = vdwg.mxu0
      %v1870 = vsel %vm1729, %v1724, 0
      %v1873 = vsel %vm1733, %v638, 0
      %1875 = vmatprep.subr.bf16.mxu0 0
      %1876 = vmatpush1.bf16.msra.mxu0 0
      %1877 = vmatprep.subr.bf16.mxu0 0
      %1878 = vmatpush1.bf16.msra.mxu0 0
      %1879 = vmatprep.subr.bf16.mxu0 0
      %1880 = vmatpush1.bf16.msra.mxu0 0
      %1881 = vmatprep.subr.bf16.mxu0 0
      %1882 = vmatpush1.bf16.msra.mxu0 0
      %1883 = vmatprep.subr.bf16.mxu0 0
      %1884 = vmatpush1.bf16.msra.mxu0 0
      %1885 = vmatprep.subr.bf16.mxu0 0
      %1886 = vmatpush1.bf16.msra.mxu0 0
      %1887 = vmatprep.subr.bf16.mxu0 0
      %1888 = vmatpush1.bf16.msra.mxu0 0
      %1889 = vmatprep.subr.bf16.mxu0 0
      %1890 = vmatpush1.bf16.msra.mxu0 %v1873
      %1891 = vmatprep.subr.bf16.mxu0 0
      %1892 = vmatpush2.bf16.msra.mxu0 0
      %1893 = vmatprep.subr.bf16.mxu0 0
      %1894 = vmatpush2.bf16.msra.mxu0 0
      %1895 = vmatprep.subr.bf16.mxu0 0
      %1896 = vmatpush2.bf16.msra.mxu0 0
      %1897 = vmatprep.subr.bf16.mxu0 0
      %1898 = vmatpush2.bf16.msra.mxu0 0
      %1899 = vmatprep.subr.bf16.mxu0 0
      %1900 = vmatpush2.bf16.msra.mxu0 0
      %1901 = vmatprep.subr.bf16.mxu0 0
      %1902 = vmatpush2.bf16.msra.mxu0 0
      %1903 = vmatprep.subr.bf16.mxu0 0
      %1904 = vmatpush2.bf16.msra.mxu0 0
      %1905 = vmatprep.subr.bf16.mxu0 0
      %1906 = vmatpush2.bf16.msra.mxu0 0
      %1907 = vmatprep.mubr.bf16.mxu0 0
      %1908 = vmatmul.mubr.bf16.gmra.mxu0 %v1870
      %v1909 = vpop.f32.mrf.mxu0
      %v1910 = vadd.f32 0.0, %v1909
      %v1911 = vpop.f32.mrf.mxu0
      %v1912 = vpop.f32.mrf.mxu0
      %v1913 = vpop.f32.mrf.mxu0
      %1914 = vdwg.mxu0
      %v1916 = vsel %vm1729, %v1725, 0
      %v1919 = vsel %vm1733, %v639, 0
      %1921 = vmatprep.subr.bf16.mxu0 0
      %1922 = vmatpush1.bf16.msra.mxu0 0
      %1923 = vmatprep.subr.bf16.mxu0 0
      %1924 = vmatpush1.bf16.msra.mxu0 0
      %1925 = vmatprep.subr.bf16.mxu0 0
      %1926 = vmatpush1.bf16.msra.mxu0 0
      %1927 = vmatprep.subr.bf16.mxu0 0
      %1928 = vmatpush1.bf16.msra.mxu0 0
      %1929 = vmatprep.subr.bf16.mxu0 0
      %1930 = vmatpush1.bf16.msra.mxu0 0
      %1931 = vmatprep.subr.bf16.mxu0 0
      %1932 = vmatpush1.bf16.msra.mxu0 0
      %1933 = vmatprep.subr.bf16.mxu0 0
      %1934 = vmatpush1.bf16.msra.mxu0 0
      %1935 = vmatprep.subr.bf16.mxu0 0
      %1936 = vmatpush1.bf16.msra.mxu0 %v1919
      %1937 = vmatprep.subr.bf16.mxu0 0
      %1938 = vmatpush2.bf16.msra.mxu0 0
      %1939 = vmatprep.subr.bf16.mxu0 0
      %1940 = vmatpush2.bf16.msra.mxu0 0
      %1941 = vmatprep.subr.bf16.mxu0 0
      %1942 = vmatpush2.bf16.msra.mxu0 0
      %1943 = vmatprep.subr.bf16.mxu0 0
      %1944 = vmatpush2.bf16.msra.mxu0 0
      %1945 = vmatprep.subr.bf16.mxu0 0
      %1946 = vmatpush2.bf16.msra.mxu0 0
      %1947 = vmatprep.subr.bf16.mxu0 0
      %1948 = vmatpush2.bf16.msra.mxu0 0
      %1949 = vmatprep.subr.bf16.mxu0 0
      %1950 = vmatpush2.bf16.msra.mxu0 0
      %1951 = vmatprep.subr.bf16.mxu0 0
      %1952 = vmatpush2.bf16.msra.mxu0 0
      %1953 = vmatprep.mubr.bf16.mxu0 0
      %1954 = vmatmul.mubr.bf16.gmra.mxu0 %v1916
      %v1955 = vpop.f32.mrf.mxu0
      %v1956 = vadd.f32 0.0, %v1955
      %v1957 = vpop.f32.mrf.mxu0
      %v1958 = vpop.f32.mrf.mxu0
      %v1959 = vpop.f32.mrf.mxu0
      %1960 = vdwg.mxu0
      %v1962 = vsel %vm1729, %v1726, 0
      %v1965 = vsel %vm1733, %v640, 0
      %1967 = vmatprep.subr.bf16.mxu0 0
      %1968 = vmatpush1.bf16.msra.mxu0 0
      %1969 = vmatprep.subr.bf16.mxu0 0
      %1970 = vmatpush1.bf16.msra.mxu0 0
      %1971 = vmatprep.subr.bf16.mxu0 0
      %1972 = vmatpush1.bf16.msra.mxu0 0
      %1973 = vmatprep.subr.bf16.mxu0 0
      %1974 = vmatpush1.bf16.msra.mxu0 0
      %1975 = vmatprep.subr.bf16.mxu0 0
      %1976 = vmatpush1.bf16.msra.mxu0 0
      %1977 = vmatprep.subr.bf16.mxu0 0
      %1978 = vmatpush1.bf16.msra.mxu0 0
      %1979 = vmatprep.subr.bf16.mxu0 0
      %1980 = vmatpush1.bf16.msra.mxu0 0
      %1981 = vmatprep.subr.bf16.mxu0 0
      %1982 = vmatpush1.bf16.msra.mxu0 %v1965
      %1983 = vmatprep.subr.bf16.mxu0 0
      %1984 = vmatpush2.bf16.msra.mxu0 0
      %1985 = vmatprep.subr.bf16.mxu0 0
      %1986 = vmatpush2.bf16.msra.mxu0 0
      %1987 = vmatprep.subr.bf16.mxu0 0
      %1988 = vmatpush2.bf16.msra.mxu0 0
      %1989 = vmatprep.subr.bf16.mxu0 0
      %1990 = vmatpush2.bf16.msra.mxu0 0
      %1991 = vmatprep.subr.bf16.mxu0 0
      %1992 = vmatpush2.bf16.msra.mxu0 0
      %1993 = vmatprep.subr.bf16.mxu0 0
      %1994 = vmatpush2.bf16.msra.mxu0 0
      %1995 = vmatprep.subr.bf16.mxu0 0
      %1996 = vmatpush2.bf16.msra.mxu0 0
      %1997 = vmatprep.subr.bf16.mxu0 0
      %1998 = vmatpush2.bf16.msra.mxu0 0
      %1999 = vmatprep.mubr.bf16.mxu0 0
      %2000 = vmatmul.mubr.bf16.gmra.mxu0 %v1962
      %v2001 = vpop.f32.mrf.mxu0
      %v2002 = vadd.f32 0.0, %v2001
      %v2003 = vpop.f32.mrf.mxu0
      %v2004 = vpop.f32.mrf.mxu0
      %v2005 = vpop.f32.mrf.mxu0
      %2006 = vdwg.mxu0
      %v2008 = vsel %vm1729, %v1727, 0
      %v2011 = vsel %vm1733, %v641, 0
      %2013 = vmatprep.subr.bf16.mxu0 0
      %2014 = vmatpush1.bf16.msra.mxu0 0
      %2015 = vmatprep.subr.bf16.mxu0 0
      %2016 = vmatpush1.bf16.msra.mxu0 0
      %2017 = vmatprep.subr.bf16.mxu0 0
      %2018 = vmatpush1.bf16.msra.mxu0 0
      %2019 = vmatprep.subr.bf16.mxu0 0
      %2020 = vmatpush1.bf16.msra.mxu0 0
      %2021 = vmatprep.subr.bf16.mxu0 0
      %2022 = vmatpush1.bf16.msra.mxu0 0
      %2023 = vmatprep.subr.bf16.mxu0 0
      %2024 = vmatpush1.bf16.msra.mxu0 0
      %2025 = vmatprep.subr.bf16.mxu0 0
      %2026 = vmatpush1.bf16.msra.mxu0 0
      %2027 = vmatprep.subr.bf16.mxu0 0
      %2028 = vmatpush1.bf16.msra.mxu0 %v2011
      %2029 = vmatprep.subr.bf16.mxu0 0
      %2030 = vmatpush2.bf16.msra.mxu0 0
      %2031 = vmatprep.subr.bf16.mxu0 0
      %2032 = vmatpush2.bf16.msra.mxu0 0
      %2033 = vmatprep.subr.bf16.mxu0 0
      %2034 = vmatpush2.bf16.msra.mxu0 0
      %2035 = vmatprep.subr.bf16.mxu0 0
      %2036 = vmatpush2.bf16.msra.mxu0 0
      %2037 = vmatprep.subr.bf16.mxu0 0
      %2038 = vmatpush2.bf16.msra.mxu0 0
      %2039 = vmatprep.subr.bf16.mxu0 0
      %2040 = vmatpush2.bf16.msra.mxu0 0
      %2041 = vmatprep.subr.bf16.mxu0 0
      %2042 = vmatpush2.bf16.msra.mxu0 0
      %2043 = vmatprep.subr.bf16.mxu0 0
      %2044 = vmatpush2.bf16.msra.mxu0 0
      %2045 = vmatprep.mubr.bf16.mxu0 0
      %2046 = vmatmul.mubr.bf16.gmra.mxu0 %v2008
      %v2047 = vpop.f32.mrf.mxu0
      %v2048 = vadd.f32 0.0, %v2047
      %v2049 = vpop.f32.mrf.mxu0
      %v2050 = vpop.f32.mrf.mxu0
      %v2051 = vpop.f32.mrf.mxu0
      %2052 = vdwg.mxu0
      %v2054 = vsel %vm1729, %v1728, 0
      %v2057 = vsel %vm1733, %v642, 0
      %2059 = vmatprep.subr.bf16.mxu0 0
      %2060 = vmatpush1.bf16.msra.mxu0 0
      %2061 = vmatprep.subr.bf16.mxu0 0
      %2062 = vmatpush1.bf16.msra.mxu0 0
      %2063 = vmatprep.subr.bf16.mxu0 0
      %2064 = vmatpush1.bf16.msra.mxu0 0
      %2065 = vmatprep.subr.bf16.mxu0 0
      %2066 = vmatpush1.bf16.msra.mxu0 0
      %2067 = vmatprep.subr.bf16.mxu0 0
      %2068 = vmatpush1.bf16.msra.mxu0 0
      %2069 = vmatprep.subr.bf16.mxu0 0
      %2070 = vmatpush1.bf16.msra.mxu0 0
      %2071 = vmatprep.subr.bf16.mxu0 0
      %2072 = vmatpush1.bf16.msra.mxu0 0
      %2073 = vmatprep.subr.bf16.mxu0 0
      %2074 = vmatpush1.bf16.msra.mxu0 %v2057
      %2075 = vmatprep.subr.bf16.mxu0 0
      %2076 = vmatpush2.bf16.msra.mxu0 0
      %2077 = vmatprep.subr.bf16.mxu0 0
      %2078 = vmatpush2.bf16.msra.mxu0 0
      %2079 = vmatprep.subr.bf16.mxu0 0
      %2080 = vmatpush2.bf16.msra.mxu0 0
      %2081 = vmatprep.subr.bf16.mxu0 0
      %2082 = vmatpush2.bf16.msra.mxu0 0
      %2083 = vmatprep.subr.bf16.mxu0 0
      %2084 = vmatpush2.bf16.msra.mxu0 0
      %2085 = vmatprep.subr.bf16.mxu0 0
      %2086 = vmatpush2.bf16.msra.mxu0 0
      %2087 = vmatprep.subr.bf16.mxu0 0
      %2088 = vmatpush2.bf16.msra.mxu0 0
      %2089 = vmatprep.subr.bf16.mxu0 0
      %2090 = vmatpush2.bf16.msra.mxu0 0
      %2091 = vmatprep.mubr.bf16.mxu0 0
      %2092 = vmatmul.mubr.bf16.gmra.mxu0 %v2054
      %v2093 = vpop.f32.mrf.mxu0
      %v2094 = vadd.f32 0.0, %v2093
      %v2095 = vpop.f32.mrf.mxu0
      %v2096 = vpop.f32.mrf.mxu0
      %v2097 = vpop.f32.mrf.mxu0
      %2098 = vdwg.mxu0
      %v2099 = vadd.f32 %v1772, 0.0
      %v2100 = vadd.f32 %v1818, 0.0
      %v2101 = vadd.f32 %v1864, 0.0
      %v2102 = vadd.f32 %v1910, 0.0
      %v2103 = vadd.f32 %v1956, 0.0
      %v2104 = vadd.f32 %v2002, 0.0
      %v2105 = vadd.f32 %v2048, 0.0
      %v2106 = vadd.f32 %v2094, 0.0
      %v2107 = vpack.c.bf16 %v2099, %v2099
      %v2108 = vpack.c.bf16 %v2100, %v2100
      %v2109 = vpack.c.bf16 %v2101, %v2101
      %v2110 = vpack.c.bf16 %v2102, %v2102
      %v2111 = vpack.c.bf16 %v2103, %v2103
      %v2112 = vpack.c.bf16 %v2104, %v2104
      %v2113 = vpack.c.bf16 %v2105, %v2105
      %v2114 = vpack.c.bf16 %v2106, %v2106
      %v2123 = vunpack.c.l.b16 %v2107
      %v2124 = vunpack.c.l.b16 %v2108
      %v2125 = vunpack.c.l.b16 %v2109
      %v2126 = vunpack.c.l.b16 %v2110
      %v2127 = vunpack.c.l.b16 %v2111
      %v2128 = vunpack.c.l.b16 %v2112
      %v2129 = vunpack.c.l.b16 %v2113
      %v2130 = vunpack.c.l.b16 %v2114
      %v2131 = vrot.slane %v2124, 7
      %vm2132 = vcmask 1041409
      %v2133 = vsel %vm2132, %v2131, %v2123
      %v2134 = vrot.slane %v2125, 6
      %vm2135 = vcmask 1042434
      %v2136 = vsel %vm2135, %v2134, %v2133
      %v2137 = vrot.slane %v2126, 5
      %vm2138 = vcmask 1043459
      %v2139 = vsel %vm2138, %v2137, %v2136
      %v2140 = vrot.slane %v2127, 4
      %vm2141 = vcmask 1044484
      %v2142 = vsel %vm2141, %v2140, %v2139
      %v2143 = vrot.slane %v2128, 3
      %vm2144 = vcmask 1045509
      %v2145 = vsel %vm2144, %v2143, %v2142
      %v2146 = vrot.slane %v2129, 2
      %vm2147 = vcmask 1046534
      %v2148 = vsel %vm2147, %v2146, %v2145
      %v2149 = vrot.slane %v2130, 1
      %vm2150 = vcmask 1047559
      %v2151 = vsel %vm2150, %v2149, %v2148
      %v2152 = vpack.c.b16 %v2151, %v2151
      %v2157 = vunpack.c.l.b16 %v701
      %v2158 = vunpack.c.l.b16 %v702
      %v2159 = vunpack.c.l.b16 %v703
      %v2160 = vunpack.c.l.b16 %v704
      %v2161 = vpack.c.b16 %v2158, %v2157
      %v2162 = vpack.c.b16 %v2160, %v2159
      %v2166 = vsel %vm727, %v2152, 0
      %2168 = vmatprep.subr.bf16.mxu0 0
      %2169 = vmatpush1.bf16.msra.mxu0 0
      %2170 = vmatprep.subr.bf16.mxu0 0
      %2171 = vmatpush1.bf16.msra.mxu0 0
      %2172 = vmatprep.subr.bf16.mxu0 0
      %2173 = vmatpush1.bf16.msra.mxu0 0
      %2174 = vmatprep.subr.bf16.mxu0 0
      %2175 = vmatpush1.bf16.msra.mxu0 0
      %2176 = vmatprep.subr.bf16.mxu0 0
      %2177 = vmatpush1.bf16.msra.mxu0 0
      %2178 = vmatprep.subr.bf16.mxu0 0
      %2179 = vmatpush1.bf16.msra.mxu0 0
      %2180 = vmatprep.subr.bf16.mxu0 0
      %2181 = vmatpush1.bf16.msra.mxu0 %v2162
      %2182 = vmatprep.subr.bf16.mxu0 0
      %2183 = vmatpush1.bf16.msra.mxu0 %v2161
      %2184 = vmatprep.subr.bf16.mxu0 0
      %2185 = vmatpush2.bf16.msra.mxu0 0
      %2186 = vmatprep.subr.bf16.mxu0 0
      %2187 = vmatpush2.bf16.msra.mxu0 0
      %2188 = vmatprep.subr.bf16.mxu0 0
      %2189 = vmatpush2.bf16.msra.mxu0 0
      %2190 = vmatprep.subr.bf16.mxu0 0
      %2191 = vmatpush2.bf16.msra.mxu0 0
      %2192 = vmatprep.subr.bf16.mxu0 0
      %2193 = vmatpush2.bf16.msra.mxu0 0
      %2194 = vmatprep.subr.bf16.mxu0 0
      %2195 = vmatpush2.bf16.msra.mxu0 0
      %2196 = vmatprep.subr.bf16.mxu0 0
      %2197 = vmatpush2.bf16.msra.mxu0 0
      %2198 = vmatprep.subr.bf16.mxu0 0
      %2199 = vmatpush2.bf16.msra.mxu0 0
      %2200 = vmatprep.mubr.bf16.mxu0 0
      %2201 = vmatmul.mubr.bf16.gmra.mxu0 %v2166
      %v2202 = vpop.f32.mrf.mxu0
      %v2203 = vadd.f32 0.0, %v2202
      %v2204 = vpop.f32.mrf.mxu0
      %v2205 = vpop.f32.mrf.mxu0
      %v2206 = vpop.f32.mrf.mxu0
      %2207 = vdwg.mxu0
      %v2212 = vunpack.c.l.b16 %v697
      %v2213 = vunpack.c.l.b16 %v698
      %v2214 = vunpack.c.l.b16 %v699
      %v2215 = vunpack.c.l.b16 %v700
      %v2216 = vpack.c.b16 %v2213, %v2212
      %v2217 = vpack.c.b16 %v2215, %v2214
      %v2221 = vsel %vm727, %v1190, 0
      %2223 = vmatprep.subr.bf16.mxu0 0
      %2224 = vmatpush1.bf16.msra.mxu0 0
      %2225 = vmatprep.subr.bf16.mxu0 0
      %2226 = vmatpush1.bf16.msra.mxu0 0
      %2227 = vmatprep.subr.bf16.mxu0 0
      %2228 = vmatpush1.bf16.msra.mxu0 0
      %2229 = vmatprep.subr.bf16.mxu0 0
      %2230 = vmatpush1.bf16.msra.mxu0 0
      %2231 = vmatprep.subr.bf16.mxu0 0
      %2232 = vmatpush1.bf16.msra.mxu0 0
      %2233 = vmatprep.subr.bf16.mxu0 0
      %2234 = vmatpush1.bf16.msra.mxu0 0
      %2235 = vmatprep.subr.bf16.mxu0 0
      %2236 = vmatpush1.bf16.msra.mxu0 %v2217
      %2237 = vmatprep.subr.bf16.mxu0 0
      %2238 = vmatpush1.bf16.msra.mxu0 %v2216
      %2239 = vmatprep.subr.bf16.mxu0 0
      %2240 = vmatpush2.bf16.msra.mxu0 0
      %2241 = vmatprep.subr.bf16.mxu0 0
      %2242 = vmatpush2.bf16.msra.mxu0 0
      %2243 = vmatprep.subr.bf16.mxu0 0
      %2244 = vmatpush2.bf16.msra.mxu0 0
      %2245 = vmatprep.subr.bf16.mxu0 0
      %2246 = vmatpush2.bf16.msra.mxu0 0
      %2247 = vmatprep.subr.bf16.mxu0 0
      %2248 = vmatpush2.bf16.msra.mxu0 0
      %2249 = vmatprep.subr.bf16.mxu0 0
      %2250 = vmatpush2.bf16.msra.mxu0 0
      %2251 = vmatprep.subr.bf16.mxu0 0
      %2252 = vmatpush2.bf16.msra.mxu0 0
      %2253 = vmatprep.subr.bf16.mxu0 0
      %2254 = vmatpush2.bf16.msra.mxu0 0
      %2255 = vmatprep.mubr.bf16.mxu0 0
      %2256 = vmatmul.mubr.bf16.gmra.mxu0 %v2221
      %v2257 = vpop.f32.mrf.mxu0
      %v2258 = vadd.f32 %v2203, %v2257
      %v2259 = vpop.f32.mrf.mxu0
      %v2260 = vpop.f32.mrf.mxu0
      %v2261 = vpop.f32.mrf.mxu0
      %2262 = vdwg.mxu0
      %v2263 = vtanh.pop %v2258
      %v2264 = vpack.c.bf16 %v2263, %v2263
      %v2266 = vlaneseq
      %v2267 = vshrl.u32 %v2266, 7
      %v2268 = vsub.s32 0, %v2267
      %v2269 = vrot.slane %v651, %v2268
      %v2275 = vunpack.c.l.b16 %v705
      %v2276 = vunpack.c.l.b16 %v706
      %v2277 = vunpack.c.l.b16 %v707
      %v2278 = vunpack.c.l.b16 %v708
      %v2279 = vpack.c.b16 %v2276, %v2275
      %v2280 = vpack.c.b16 %v2278, %v2277
      %v2284 = vsel %vm727, %v2264, 0
      %2286 = vmatprep.subr.bf16.mxu0 0
      %2287 = vmatpush1.bf16.msra.mxu0 0
      %2288 = vmatprep.subr.bf16.mxu0 0
      %2289 = vmatpush1.bf16.msra.mxu0 0
      %2290 = vmatprep.subr.bf16.mxu0 0
      %2291 = vmatpush1.bf16.msra.mxu0 0
      %2292 = vmatprep.subr.bf16.mxu0 0
      %2293 = vmatpush1.bf16.msra.mxu0 0
      %2294 = vmatprep.subr.bf16.mxu0 0
      %2295 = vmatpush1.bf16.msra.mxu0 0
      %2296 = vmatprep.subr.bf16.mxu0 0
      %2297 = vmatpush1.bf16.msra.mxu0 0
      %2298 = vmatprep.subr.bf16.mxu0 0
      %2299 = vmatpush1.bf16.msra.mxu0 %v2280
      %2300 = vmatprep.subr.bf16.mxu0 0
      %2301 = vmatpush1.bf16.msra.mxu0 %v2279
      %2302 = vmatprep.subr.bf16.mxu0 0
      %2303 = vmatpush2.bf16.msra.mxu0 0
      %2304 = vmatprep.subr.bf16.mxu0 0
      %2305 = vmatpush2.bf16.msra.mxu0 0
      %2306 = vmatprep.subr.bf16.mxu0 0
      %2307 = vmatpush2.bf16.msra.mxu0 0
      %2308 = vmatprep.subr.bf16.mxu0 0
      %2309 = vmatpush2.bf16.msra.mxu0 0
      %2310 = vmatprep.subr.bf16.mxu0 0
      %2311 = vmatpush2.bf16.msra.mxu0 0
      %2312 = vmatprep.subr.bf16.mxu0 0
      %2313 = vmatpush2.bf16.msra.mxu0 0
      %2314 = vmatprep.subr.bf16.mxu0 0
      %2315 = vmatpush2.bf16.msra.mxu0 0
      %2316 = vmatprep.subr.bf16.mxu0 0
      %2317 = vmatpush2.bf16.msra.mxu0 0
      %2318 = vmatprep.mubr.bf16.mxu0 0
      %2319 = vmatmul.mubr.bf16.gmra.mxu0 %v2284
      %v2320 = vpop.f32.mrf.mxu0
      %v2321 = vadd.f32 %v2269, %v2320
      %v2322 = vpop.f32.mrf.mxu0
      %v2323 = vpop.f32.mrf.mxu0
      %v2324 = vpop.f32.mrf.mxu0
      %2325 = vdwg.mxu0
      %2326 = vmax.xlane.f32.xlu0 %v2321
      %v2327 = vpop.xlane.xlu0 %2326
      %v2328 = vsub.f32 %v2321, %v2327
      %v2329 = vmul.f32 %v2328, 1.442695
      %v2330 = vpow.pop %v2329
      %2331 = vadd.xlane.f32.xlu0 %v2330
      %v2332 = vpop.xlane.xlu0 %2331
      %v2333 = vlog2.pop %v2332
      %v2334 = vmul.f32 %v2333, 0.6931472
      %v2335 = vadd.f32 %v2327, %v2334
      %v2336 = vsub.f32 %v2321, %v2335
      %2337 = vst [vmem:[%s472] sm:$0xff] %v2336
      %v2339 = vlaneseq
      %v2340 = vshrl.u32 %v2339, 7
      %v2341 = vsub.s32 0, %v2340
      %v2342 = vrot.slane %v626, %v2341
      %v2344 = vsub.f32 %v2263, %v2342
      %v2345 = vand.u32 2147483647, %v2344
      %v2346 = vand.u32 2147483647, %v626
      %v2347 = vmul.f32 %v2346, 0.001
      %v2348 = vadd.f32 %v2347, 1e-08
      %v2350 = vlaneseq
      %v2351 = vshrl.u32 %v2350, 7
      %v2352 = vsub.s32 0, %v2351
      %v2353 = vrot.slane %v2348, %v2352
      %vm2355 = vcmp.le.f32.partialorder %v2345, %v2353
      %v2356 = vsel %vm2355, 1, 0
      %v2357 = vsel %vm727, %v2356, 2147483647
      %v2358 = vand.u32 %v2357, 65535
      %v2359 = vshra.s32 %v2357, 16
      %v2360 = vcvt.s32.f32 %v2358
      %v2361 = vcvt.s32.f32 %v2359
      %2362 = vmin.xlane.f32.xlu0 %v2361
      %v2363 = vpop.xlane.xlu0 %2362
      %vm2364 = vcmp.eq.f32.partialorder %v2361, %v2363
      %v2365 = vsel %vm2364, %v2360, inf
      %2366 = vmin.xlane.f32.xlu0 %v2365
      %v2367 = vpop.xlane.xlu0 %2366
      %v2368 = vcvt.f32.s32 %v2367
      %v2369 = vcvt.f32.s32 %v2363
      %v2370 = vshll.u32 %v2369, 16
      %v2371 = vadd.s32 %v2370, %v2368
      %v2372 = vld [vmem:[#allocation6] sm:$0xff]
      %vm2373 = vcmp.eq.s32.totalorder %v2372, 0
      %vm2374 = vcmp.ne.s32.totalorder %v2371, 0
      %vm2375 = vmand %vm2373, %vm2374
      %s2376 = sadd.s32 %s709, 1
      %v2377 = vstv %s2376
      %v2378 = vsel %vm2375, %v2377, %v2372
      %vm2379 = vcmask 7168
      %2380 = vst.msk [vmem:[#allocation6] sm:$0xff] %vm2379, %v2378
      %2381 = vst.msk [vmem:[#allocation3] sm:$0xff] %vm727, %v2263
      %2382 = vst.msk [vmem:[#allocation4] sm:$0xff] %vm727, %v1189
      %2383 = vst.msk [vmem:[#allocation5] sm:$0xff] %vm727, %v1187
      %v2384 = vld [vmem:[#allocation3] sm:$0xff]
      %v2385 = vpack.c.bf16 %v2384, %v2384
      %v2386 = vld [vmem:[#allocation4] sm:$0xff]
      %v2387 = vpack.c.bf16 %v2386, %v2386
      %v2388 = vld [vmem:[#allocation5] sm:$0xff]
      %v2390 = vsel %vm727, %v2387, 0
      %2392 = vmatprep.subr.bf16.mxu0 0
      %2393 = vmatpush1.bf16.msra.mxu0 0
      %2394 = vmatprep.subr.bf16.mxu0 0
      %2395 = vmatpush1.bf16.msra.mxu0 0
      %2396 = vmatprep.subr.bf16.mxu0 0
      %2397 = vmatpush1.bf16.msra.mxu0 0
      %2398 = vmatprep.subr.bf16.mxu0 0
      %2399 = vmatpush1.bf16.msra.mxu0 0
      %2400 = vmatprep.subr.bf16.mxu0 0
      %2401 = vmatpush1.bf16.msra.mxu0 0
      %2402 = vmatprep.subr.bf16.mxu0 0
      %2403 = vmatpush1.bf16.msra.mxu0 0
      %2404 = vmatprep.subr.bf16.mxu0 0
      %2405 = vmatpush1.bf16.msra.mxu0 %v724
      %2406 = vmatprep.subr.bf16.mxu0 0
      %2407 = vmatpush1.bf16.msra.mxu0 %v723
      %2408 = vmatprep.subr.bf16.mxu0 0
      %2409 = vmatpush2.bf16.msra.mxu0 0
      %2410 = vmatprep.subr.bf16.mxu0 0
      %2411 = vmatpush2.bf16.msra.mxu0 0
      %2412 = vmatprep.subr.bf16.mxu0 0
      %2413 = vmatpush2.bf16.msra.mxu0 0
      %2414 = vmatprep.subr.bf16.mxu0 0
      %2415 = vmatpush2.bf16.msra.mxu0 0
      %2416 = vmatprep.subr.bf16.mxu0 0
      %2417 = vmatpush2.bf16.msra.mxu0 0
      %2418 = vmatprep.subr.bf16.mxu0 0
      %2419 = vmatpush2.bf16.msra.mxu0 0
      %2420 = vmatprep.subr.bf16.mxu0 0
      %2421 = vmatpush2.bf16.msra.mxu0 0
      %2422 = vmatprep.subr.bf16.mxu0 0
      %2423 = vmatpush2.bf16.msra.mxu0 0
      %2424 = vmatprep.mubr.bf16.mxu0 0
      %2425 = vmatmul.mubr.bf16.gmra.mxu0 %v2390
      %v2426 = vpop.f32.mrf.mxu0
      %v2427 = vadd.f32 0.0, %v2426
      %v2428 = vpop.f32.mrf.mxu0
      %v2429 = vpop.f32.mrf.mxu0
      %v2430 = vpop.f32.mrf.mxu0
      %2431 = vdwg.mxu0
      %v2433 = vsel %vm727, %v2385, 0
      %2435 = vmatprep.subr.bf16.mxu0 0
      %2436 = vmatpush1.bf16.msra.mxu0 0
      %2437 = vmatprep.subr.bf16.mxu0 0
      %2438 = vmatpush1.bf16.msra.mxu0 0
      %2439 = vmatprep.subr.bf16.mxu0 0
      %2440 = vmatpush1.bf16.msra.mxu0 0
      %2441 = vmatprep.subr.bf16.mxu0 0
      %2442 = vmatpush1.bf16.msra.mxu0 0
      %2443 = vmatprep.subr.bf16.mxu0 0
      %2444 = vmatpush1.bf16.msra.mxu0 0
      %2445 = vmatprep.subr.bf16.mxu0 0
      %2446 = vmatpush1.bf16.msra.mxu0 0
      %2447 = vmatprep.subr.bf16.mxu0 0
      %2448 = vmatpush1.bf16.msra.mxu0 %v780
      %2449 = vmatprep.subr.bf16.mxu0 0
      %2450 = vmatpush1.bf16.msra.mxu0 %v779
      %2451 = vmatprep.subr.bf16.mxu0 0
      %2452 = vmatpush2.bf16.msra.mxu0 0
      %2453 = vmatprep.subr.bf16.mxu0 0
      %2454 = vmatpush2.bf16.msra.mxu0 0
      %2455 = vmatprep.subr.bf16.mxu0 0
      %2456 = vmatpush2.bf16.msra.mxu0 0
      %2457 = vmatprep.subr.bf16.mxu0 0
      %2458 = vmatpush2.bf16.msra.mxu0 0
      %2459 = vmatprep.subr.bf16.mxu0 0
      %2460 = vmatpush2.bf16.msra.mxu0 0
      %2461 = vmatprep.subr.bf16.mxu0 0
      %2462 = vmatpush2.bf16.msra.mxu0 0
      %2463 = vmatprep.subr.bf16.mxu0 0
      %2464 = vmatpush2.bf16.msra.mxu0 0
      %2465 = vmatprep.subr.bf16.mxu0 0
      %2466 = vmatpush2.bf16.msra.mxu0 0
      %2467 = vmatprep.mubr.bf16.mxu0 0
      %2468 = vmatmul.mubr.bf16.gmra.mxu0 %v2433
      %v2469 = vpop.f32.mrf.mxu0
      %v2470 = vadd.f32 %v2427, %v2469
      %v2471 = vpop.f32.mrf.mxu0
      %v2472 = vpop.f32.mrf.mxu0
      %v2473 = vpop.f32.mrf.mxu0
      %2474 = vdwg.mxu0
      %v2475 = vadd.f32 %v2470, %v830
      %v2476 = vxor.u32 %v2475, 2147483648
      %v2477 = vmul.f32 %v2476, 1.442695
      %v2478 = vpow.pop %v2477
      %v2479 = vadd.f32 %v2478, 1.0
      %v2480 = vrcp.pop %v2479
      %v2481 = vmul.f32 1.0, %v2480
      %2482 = vmatprep.subr.bf16.mxu0 0
      %2483 = vmatpush1.bf16.msra.mxu0 0
      %2484 = vmatprep.subr.bf16.mxu0 0
      %2485 = vmatpush1.bf16.msra.mxu0 0
      %2486 = vmatprep.subr.bf16.mxu0 0
      %2487 = vmatpush1.bf16.msra.mxu0 0
      %2488 = vmatprep.subr.bf16.mxu0 0
      %2489 = vmatpush1.bf16.msra.mxu0 0
      %2490 = vmatprep.subr.bf16.mxu0 0
      %2491 = vmatpush1.bf16.msra.mxu0 0
      %2492 = vmatprep.subr.bf16.mxu0 0
      %2493 = vmatpush1.bf16.msra.mxu0 0
      %2494 = vmatprep.subr.bf16.mxu0 0
      %2495 = vmatpush1.bf16.msra.mxu0 %v848
      %2496 = vmatprep.subr.bf16.mxu0 0
      %2497 = vmatpush1.bf16.msra.mxu0 %v847
      %2498 = vmatprep.subr.bf16.mxu0 0
      %2499 = vmatpush2.bf16.msra.mxu0 0
      %2500 = vmatprep.subr.bf16.mxu0 0
      %2501 = vmatpush2.bf16.msra.mxu0 0
      %2502 = vmatprep.subr.bf16.mxu0 0
      %2503 = vmatpush2.bf16.msra.mxu0 0
      %2504 = vmatprep.subr.bf16.mxu0 0
      %2505 = vmatpush2.bf16.msra.mxu0 0
      %2506 = vmatprep.subr.bf16.mxu0 0
      %2507 = vmatpush2.bf16.msra.mxu0 0
      %2508 = vmatprep.subr.bf16.mxu0 0
      %2509 = vmatpush2.bf16.msra.mxu0 0
      %2510 = vmatprep.subr.bf16.mxu0 0
      %2511 = vmatpush2.bf16.msra.mxu0 0
      %2512 = vmatprep.subr.bf16.mxu0 0
      %2513 = vmatpush2.bf16.msra.mxu0 0
      %2514 = vmatprep.mubr.bf16.mxu0 0
      %2515 = vmatmul.mubr.bf16.gmra.mxu0 %v2390
      %v2516 = vpop.f32.mrf.mxu0
      %v2517 = vadd.f32 0.0, %v2516
      %v2518 = vpop.f32.mrf.mxu0
      %v2519 = vpop.f32.mrf.mxu0
      %v2520 = vpop.f32.mrf.mxu0
      %2521 = vdwg.mxu0
      %2522 = vmatprep.subr.bf16.mxu0 0
      %2523 = vmatpush1.bf16.msra.mxu0 0
      %2524 = vmatprep.subr.bf16.mxu0 0
      %2525 = vmatpush1.bf16.msra.mxu0 0
      %2526 = vmatprep.subr.bf16.mxu0 0
      %2527 = vmatpush1.bf16.msra.mxu0 0
      %2528 = vmatprep.subr.bf16.mxu0 0
      %2529 = vmatpush1.bf16.msra.mxu0 0
      %2530 = vmatprep.subr.bf16.mxu0 0
      %2531 = vmatpush1.bf16.msra.mxu0 0
      %2532 = vmatprep.subr.bf16.mxu0 0
      %2533 = vmatpush1.bf16.msra.mxu0 0
      %2534 = vmatprep.subr.bf16.mxu0 0
      %2535 = vmatpush1.bf16.msra.mxu0 %v900
      %2536 = vmatprep.subr.bf16.mxu0 0
      %2537 = vmatpush1.bf16.msra.mxu0 %v899
      %2538 = vmatprep.subr.bf16.mxu0 0
      %2539 = vmatpush2.bf16.msra.mxu0 0
      %2540 = vmatprep.subr.bf16.mxu0 0
      %2541 = vmatpush2.bf16.msra.mxu0 0
      %2542 = vmatprep.subr.bf16.mxu0 0
      %2543 = vmatpush2.bf16.msra.mxu0 0
      %2544 = vmatprep.subr.bf16.mxu0 0
      %2545 = vmatpush2.bf16.msra.mxu0 0
      %2546 = vmatprep.subr.bf16.mxu0 0
      %2547 = vmatpush2.bf16.msra.mxu0 0
      %2548 = vmatprep.subr.bf16.mxu0 0
      %2549 = vmatpush2.bf16.msra.mxu0 0
      %2550 = vmatprep.subr.bf16.mxu0 0
      %2551 = vmatpush2.bf16.msra.mxu0 0
      %2552 = vmatprep.subr.bf16.mxu0 0
      %2553 = vmatpush2.bf16.msra.mxu0 0
      %2554 = vmatprep.mubr.bf16.mxu0 0
      %2555 = vmatmul.mubr.bf16.gmra.mxu0 %v2433
      %v2556 = vpop.f32.mrf.mxu0
      %v2557 = vadd.f32 %v2517, %v2556
      %v2558 = vpop.f32.mrf.mxu0
      %v2559 = vpop.f32.mrf.mxu0
      %v2560 = vpop.f32.mrf.mxu0
      %2561 = vdwg.mxu0
      %v2562 = vadd.f32 %v2557, %v947
      %v2563 = vxor.u32 %v2562, 2147483648
      %v2564 = vmul.f32 %v2563, 1.442695
      %v2565 = vpow.pop %v2564
      %v2566 = vadd.f32 %v2565, 1.0
      %v2567 = vrcp.pop %v2566
      %v2568 = vmul.f32 1.0, %v2567
      %2569 = vmatprep.subr.bf16.mxu0 0
      %2570 = vmatpush1.bf16.msra.mxu0 0
      %2571 = vmatprep.subr.bf16.mxu0 0
      %2572 = vmatpush1.bf16.msra.mxu0 0
      %2573 = vmatprep.subr.bf16.mxu0 0
      %2574 = vmatpush1.bf16.msra.mxu0 0
      %2575 = vmatprep.subr.bf16.mxu0 0
      %2576 = vmatpush1.bf16.msra.mxu0 0
      %2577 = vmatprep.subr.bf16.mxu0 0
      %2578 = vmatpush1.bf16.msra.mxu0 0
      %2579 = vmatprep.subr.bf16.mxu0 0
      %2580 = vmatpush1.bf16.msra.mxu0 0
      %2581 = vmatprep.subr.bf16.mxu0 0
      %2582 = vmatpush1.bf16.msra.mxu0 %v965
      %2583 = vmatprep.subr.bf16.mxu0 0
      %2584 = vmatpush1.bf16.msra.mxu0 %v964
      %2585 = vmatprep.subr.bf16.mxu0 0
      %2586 = vmatpush2.bf16.msra.mxu0 0
      %2587 = vmatprep.subr.bf16.mxu0 0
      %2588 = vmatpush2.bf16.msra.mxu0 0
      %2589 = vmatprep.subr.bf16.mxu0 0
      %2590 = vmatpush2.bf16.msra.mxu0 0
      %2591 = vmatprep.subr.bf16.mxu0 0
      %2592 = vmatpush2.bf16.msra.mxu0 0
      %2593 = vmatprep.subr.bf16.mxu0 0
      %2594 = vmatpush2.bf16.msra.mxu0 0
      %2595 = vmatprep.subr.bf16.mxu0 0
      %2596 = vmatpush2.bf16.msra.mxu0 0
      %2597 = vmatprep.subr.bf16.mxu0 0
      %2598 = vmatpush2.bf16.msra.mxu0 0
      %2599 = vmatprep.subr.bf16.mxu0 0
      %2600 = vmatpush2.bf16.msra.mxu0 0
      %2601 = vmatprep.mubr.bf16.mxu0 0
      %2602 = vmatmul.mubr.bf16.gmra.mxu0 %v2390
      %v2603 = vpop.f32.mrf.mxu0
      %v2604 = vadd.f32 0.0, %v2603
      %v2605 = vpop.f32.mrf.mxu0
      %v2606 = vpop.f32.mrf.mxu0
      %v2607 = vpop.f32.mrf.mxu0
      %2608 = vdwg.mxu0
      %2609 = vmatprep.subr.bf16.mxu0 0
      %2610 = vmatpush1.bf16.msra.mxu0 0
      %2611 = vmatprep.subr.bf16.mxu0 0
      %2612 = vmatpush1.bf16.msra.mxu0 0
      %2613 = vmatprep.subr.bf16.mxu0 0
      %2614 = vmatpush1.bf16.msra.mxu0 0
      %2615 = vmatprep.subr.bf16.mxu0 0
      %2616 = vmatpush1.bf16.msra.mxu0 0
      %2617 = vmatprep.subr.bf16.mxu0 0
      %2618 = vmatpush1.bf16.msra.mxu0 0
      %2619 = vmatprep.subr.bf16.mxu0 0
      %2620 = vmatpush1.bf16.msra.mxu0 0
      %2621 = vmatprep.subr.bf16.mxu0 0
      %2622 = vmatpush1.bf16.msra.mxu0 %v1017
      %2623 = vmatprep.subr.bf16.mxu0 0
      %2624 = vmatpush1.bf16.msra.mxu0 %v1016
      %2625 = vmatprep.subr.bf16.mxu0 0
      %2626 = vmatpush2.bf16.msra.mxu0 0
      %2627 = vmatprep.subr.bf16.mxu0 0
      %2628 = vmatpush2.bf16.msra.mxu0 0
      %2629 = vmatprep.subr.bf16.mxu0 0
      %2630 = vmatpush2.bf16.msra.mxu0 0
      %2631 = vmatprep.subr.bf16.mxu0 0
      %2632 = vmatpush2.bf16.msra.mxu0 0
      %2633 = vmatprep.subr.bf16.mxu0 0
      %2634 = vmatpush2.bf16.msra.mxu0 0
      %2635 = vmatprep.subr.bf16.mxu0 0
      %2636 = vmatpush2.bf16.msra.mxu0 0
      %2637 = vmatprep.subr.bf16.mxu0 0
      %2638 = vmatpush2.bf16.msra.mxu0 0
      %2639 = vmatprep.subr.bf16.mxu0 0
      %2640 = vmatpush2.bf16.msra.mxu0 0
      %2641 = vmatprep.mubr.bf16.mxu0 0
      %2642 = vmatmul.mubr.bf16.gmra.mxu0 %v2433
      %v2643 = vpop.f32.mrf.mxu0
      %v2644 = vadd.f32 %v2604, %v2643
      %v2645 = vpop.f32.mrf.mxu0
      %v2646 = vpop.f32.mrf.mxu0
      %v2647 = vpop.f32.mrf.mxu0
      %2648 = vdwg.mxu0
      %v2649 = vadd.f32 %v2644, %v1064
      %v2650 = vtanh.pop %v2649
      %2651 = vmatprep.subr.bf16.mxu0 0
      %2652 = vmatpush1.bf16.msra.mxu0 0
      %2653 = vmatprep.subr.bf16.mxu0 0
      %2654 = vmatpush1.bf16.msra.mxu0 0
      %2655 = vmatprep.subr.bf16.mxu0 0
      %2656 = vmatpush1.bf16.msra.mxu0 0
      %2657 = vmatprep.subr.bf16.mxu0 0
      %2658 = vmatpush1.bf16.msra.mxu0 0
      %2659 = vmatprep.subr.bf16.mxu0 0
      %2660 = vmatpush1.bf16.msra.mxu0 0
      %2661 = vmatprep.subr.bf16.mxu0 0
      %2662 = vmatpush1.bf16.msra.mxu0 0
      %2663 = vmatprep.subr.bf16.mxu0 0
      %2664 = vmatpush1.bf16.msra.mxu0 %v1077
      %2665 = vmatprep.subr.bf16.mxu0 0
      %2666 = vmatpush1.bf16.msra.mxu0 %v1076
      %2667 = vmatprep.subr.bf16.mxu0 0
      %2668 = vmatpush2.bf16.msra.mxu0 0
      %2669 = vmatprep.subr.bf16.mxu0 0
      %2670 = vmatpush2.bf16.msra.mxu0 0
      %2671 = vmatprep.subr.bf16.mxu0 0
      %2672 = vmatpush2.bf16.msra.mxu0 0
      %2673 = vmatprep.subr.bf16.mxu0 0
      %2674 = vmatpush2.bf16.msra.mxu0 0
      %2675 = vmatprep.subr.bf16.mxu0 0
      %2676 = vmatpush2.bf16.msra.mxu0 0
      %2677 = vmatprep.subr.bf16.mxu0 0
      %2678 = vmatpush2.bf16.msra.mxu0 0
      %2679 = vmatprep.subr.bf16.mxu0 0
      %2680 = vmatpush2.bf16.msra.mxu0 0
      %2681 = vmatprep.subr.bf16.mxu0 0
      %2682 = vmatpush2.bf16.msra.mxu0 0
      %2683 = vmatprep.mubr.bf16.mxu0 0
      %2684 = vmatmul.mubr.bf16.gmra.mxu0 %v2390
      %v2685 = vpop.f32.mrf.mxu0
      %v2686 = vadd.f32 0.0, %v2685
      %v2687 = vpop.f32.mrf.mxu0
      %v2688 = vpop.f32.mrf.mxu0
      %v2689 = vpop.f32.mrf.mxu0
      %2690 = vdwg.mxu0
      %2691 = vmatprep.subr.bf16.mxu0 0
      %2692 = vmatpush1.bf16.msra.mxu0 0
      %2693 = vmatprep.subr.bf16.mxu0 0
      %2694 = vmatpush1.bf16.msra.mxu0 0
      %2695 = vmatprep.subr.bf16.mxu0 0
      %2696 = vmatpush1.bf16.msra.mxu0 0
      %2697 = vmatprep.subr.bf16.mxu0 0
      %2698 = vmatpush1.bf16.msra.mxu0 0
      %2699 = vmatprep.subr.bf16.mxu0 0
      %2700 = vmatpush1.bf16.msra.mxu0 0
      %2701 = vmatprep.subr.bf16.mxu0 0
      %2702 = vmatpush1.bf16.msra.mxu0 0
      %2703 = vmatprep.subr.bf16.mxu0 0
      %2704 = vmatpush1.bf16.msra.mxu0 %v1129
      %2705 = vmatprep.subr.bf16.mxu0 0
      %2706 = vmatpush1.bf16.msra.mxu0 %v1128
      %2707 = vmatprep.subr.bf16.mxu0 0
      %2708 = vmatpush2.bf16.msra.mxu0 0
      %2709 = vmatprep.subr.bf16.mxu0 0
      %2710 = vmatpush2.bf16.msra.mxu0 0
      %2711 = vmatprep.subr.bf16.mxu0 0
      %2712 = vmatpush2.bf16.msra.mxu0 0
      %2713 = vmatprep.subr.bf16.mxu0 0
      %2714 = vmatpush2.bf16.msra.mxu0 0
      %2715 = vmatprep.subr.bf16.mxu0 0
      %2716 = vmatpush2.bf16.msra.mxu0 0
      %2717 = vmatprep.subr.bf16.mxu0 0
      %2718 = vmatpush2.bf16.msra.mxu0 0
      %2719 = vmatprep.subr.bf16.mxu0 0
      %2720 = vmatpush2.bf16.msra.mxu0 0
      %2721 = vmatprep.subr.bf16.mxu0 0
      %2722 = vmatpush2.bf16.msra.mxu0 0
      %2723 = vmatprep.mubr.bf16.mxu0 0
      %2724 = vmatmul.mubr.bf16.gmra.mxu0 %v2433
      %v2725 = vpop.f32.mrf.mxu0
      %v2726 = vadd.f32 %v2686, %v2725
      %v2727 = vpop.f32.mrf.mxu0
      %v2728 = vpop.f32.mrf.mxu0
      %v2729 = vpop.f32.mrf.mxu0
      %2730 = vdwg.mxu0
      %v2731 = vadd.f32 %v2726, %v1176
      %v2732 = vxor.u32 %v2731, 2147483648
      %v2733 = vmul.f32 %v2732, 1.442695
      %v2734 = vpow.pop %v2733
      %v2735 = vadd.f32 %v2734, 1.0
      %v2736 = vrcp.pop %v2735
      %v2737 = vmul.f32 1.0, %v2736
      %v2738 = vmul.f32 %v2568, %v2388
      %v2739 = vmul.f32 %v2481, %v2650
      %v2740 = vadd.f32 %v2738, %v2739
      %v2741 = vtanh.pop %v2740
      %v2742 = vmul.f32 %v2737, %v2741
      %v2743 = vpack.c.bf16 %v2742, %v2742
      %v2746 = vunpack.c.l.s4 1966171168
      %v2747 = vunpack.c.0.s8 %v2746
      %v2748 = vlaneseq
      %v2749 = vshrl.u32 %v2748, 7
      %v2750 = vsub.s32 %v2747, %v2749
      %v2751 = vrot.slane %v2743, %v2750
      %v2752 = vcombine.high %v2751, %v2751
      %v2754 = vunpack.c.l.s4 1966171168
      %v2755 = vunpack.c.0.s8 %v2754
      %v2756 = vlaneseq
      %v2757 = vshrl.u32 %v2756, 7
      %v2758 = vsub.s32 %v2755, %v2757
      %v2759 = vrot.slane %v2751, %v2758
      %v2761 = vunpack.c.l.s4 1966171168
      %v2762 = vunpack.c.0.s8 %v2761
      %v2763 = vlaneseq
      %v2764 = vshrl.u32 %v2763, 7
      %v2765 = vsub.s32 %v2762, %v2764
      %v2766 = vrot.slane %v2752, %v2765
      %v2767 = vcombine.high %v2759, %v2759
      %v2768 = vcombine.high %v2766, %v2766
      %v2769 = vunpack.i.l.s16 %v2759
      %v2770 = vunpack.i.h.s16 %v2759
      %v2771 = vunpack.i.l.s16 %v2766
      %v2772 = vunpack.i.h.s16 %v2766
      %v2773 = vunpack.i.l.s16 %v2767
      %v2774 = vunpack.i.h.s16 %v2767
      %v2775 = vunpack.i.l.s16 %v2768
      %v2776 = vunpack.i.h.s16 %v2768
      %v2777 = vpack.i.b16 %v2769, %v2769
      %v2778 = vlaneseq
      %v2779 = vshrl.u32 %v2778, 7
      %v2780 = vsub.s32 0, %v2779
      %v2781 = vrot.slane %v2777, %v2780
      %v2783 = vsel %vm727, %v2781, 0
      %2785 = vmatprep.subr.bf16.mxu0 0
      %2786 = vmatpush1.bf16.xpose.msra.mxu0 0
      %2787 = vmatprep.subr.bf16.mxu0 0
      %2788 = vmatpush1.bf16.xpose.msra.mxu0 0
      %2789 = vmatprep.subr.bf16.mxu0 0
      %2790 = vmatpush1.bf16.xpose.msra.mxu0 0
      %2791 = vmatprep.subr.bf16.mxu0 0
      %2792 = vmatpush1.bf16.xpose.msra.mxu0 0
      %2793 = vmatprep.subr.bf16.mxu0 0
      %2794 = vmatpush1.bf16.xpose.msra.mxu0 0
      %2795 = vmatprep.subr.bf16.mxu0 0
      %2796 = vmatpush1.bf16.xpose.msra.mxu0 0
      %2797 = vmatprep.subr.bf16.mxu0 0
      %2798 = vmatpush1.bf16.xpose.msra.mxu0 0
      %2799 = vmatprep.subr.bf16.mxu0 0
      %2800 = vmatpush1.bf16.xpose.msra.mxu0 %v1233
      %2801 = vmatprep.subr.bf16.mxu0 0
      %2802 = vmatpush2.bf16.xpose.msra.mxu0 0
      %2803 = vmatprep.subr.bf16.mxu0 0
      %2804 = vmatpush2.bf16.xpose.msra.mxu0 0
      %2805 = vmatprep.subr.bf16.mxu0 0
      %2806 = vmatpush2.bf16.xpose.msra.mxu0 0
      %2807 = vmatprep.subr.bf16.mxu0 0
      %2808 = vmatpush2.bf16.xpose.msra.mxu0 0
      %2809 = vmatprep.subr.bf16.mxu0 0
      %2810 = vmatpush2.bf16.xpose.msra.mxu0 0
      %2811 = vmatprep.subr.bf16.mxu0 0
      %2812 = vmatpush2.bf16.xpose.msra.mxu0 0
      %2813 = vmatprep.subr.bf16.mxu0 0
      %2814 = vmatpush2.bf16.xpose.msra.mxu0 0
      %2815 = vmatprep.subr.bf16.mxu0 0
      %2816 = vmatpush2.bf16.xpose.msra.mxu0 0
      %2817 = vmatprep.mubr.bf16.mxu0 0
      %2818 = vmatmul.mubr.bf16.gmra.mxu0 %v2783
      %v2819 = vpop.f32.mrf.mxu0
      %v2820 = vadd.f32 %v627, %v2819
      %v2821 = vpop.f32.mrf.mxu0
      %v2822 = vpop.f32.mrf.mxu0
      %v2823 = vpop.f32.mrf.mxu0
      %2824 = vdwg.mxu0
      %v2825 = vpack.i.b16 %v2770, %v2770
      %v2826 = vlaneseq
      %v2827 = vshrl.u32 %v2826, 7
      %v2828 = vsub.s32 0, %v2827
      %v2829 = vrot.slane %v2825, %v2828
      %v2831 = vsel %vm727, %v2829, 0
      %2833 = vmatprep.subr.bf16.mxu0 0
      %2834 = vmatpush1.bf16.xpose.msra.mxu0 0
      %2835 = vmatprep.subr.bf16.mxu0 0
      %2836 = vmatpush1.bf16.xpose.msra.mxu0 0
      %2837 = vmatprep.subr.bf16.mxu0 0
      %2838 = vmatpush1.bf16.xpose.msra.mxu0 0
      %2839 = vmatprep.subr.bf16.mxu0 0
      %2840 = vmatpush1.bf16.xpose.msra.mxu0 0
      %2841 = vmatprep.subr.bf16.mxu0 0
      %2842 = vmatpush1.bf16.xpose.msra.mxu0 0
      %2843 = vmatprep.subr.bf16.mxu0 0
      %2844 = vmatpush1.bf16.xpose.msra.mxu0 0
      %2845 = vmatprep.subr.bf16.mxu0 0
      %2846 = vmatpush1.bf16.xpose.msra.mxu0 0
      %2847 = vmatprep.subr.bf16.mxu0 0
      %2848 = vmatpush1.bf16.xpose.msra.mxu0 %v1284
      %2849 = vmatprep.subr.bf16.mxu0 0
      %2850 = vmatpush2.bf16.xpose.msra.mxu0 0
      %2851 = vmatprep.subr.bf16.mxu0 0
      %2852 = vmatpush2.bf16.xpose.msra.mxu0 0
      %2853 = vmatprep.subr.bf16.mxu0 0
      %2854 = vmatpush2.bf16.xpose.msra.mxu0 0
      %2855 = vmatprep.subr.bf16.mxu0 0
      %2856 = vmatpush2.bf16.xpose.msra.mxu0 0
      %2857 = vmatprep.subr.bf16.mxu0 0
      %2858 = vmatpush2.bf16.xpose.msra.mxu0 0
      %2859 = vmatprep.subr.bf16.mxu0 0
      %2860 = vmatpush2.bf16.xpose.msra.mxu0 0
      %2861 = vmatprep.subr.bf16.mxu0 0
      %2862 = vmatpush2.bf16.xpose.msra.mxu0 0
      %2863 = vmatprep.subr.bf16.mxu0 0
      %2864 = vmatpush2.bf16.xpose.msra.mxu0 0
      %2865 = vmatprep.mubr.bf16.mxu0 0
      %2866 = vmatmul.mubr.bf16.gmra.mxu0 %v2831
      %v2867 = vpop.f32.mrf.mxu0
      %v2868 = vadd.f32 %v628, %v2867
      %v2869 = vpop.f32.mrf.mxu0
      %v2870 = vpop.f32.mrf.mxu0
      %v2871 = vpop.f32.mrf.mxu0
      %2872 = vdwg.mxu0
      %v2873 = vpack.i.b16 %v2771, %v2771
      %v2874 = vlaneseq
      %v2875 = vshrl.u32 %v2874, 7
      %v2876 = vsub.s32 0, %v2875
      %v2877 = vrot.slane %v2873, %v2876
      %v2879 = vsel %vm727, %v2877, 0
      %2881 = vmatprep.subr.bf16.mxu0 0
      %2882 = vmatpush1.bf16.xpose.msra.mxu0 0
      %2883 = vmatprep.subr.bf16.mxu0 0
      %2884 = vmatpush1.bf16.xpose.msra.mxu0 0
      %2885 = vmatprep.subr.bf16.mxu0 0
      %2886 = vmatpush1.bf16.xpose.msra.mxu0 0
      %2887 = vmatprep.subr.bf16.mxu0 0
      %2888 = vmatpush1.bf16.xpose.msra.mxu0 0
      %2889 = vmatprep.subr.bf16.mxu0 0
      %2890 = vmatpush1.bf16.xpose.msra.mxu0 0
      %2891 = vmatprep.subr.bf16.mxu0 0
      %2892 = vmatpush1.bf16.xpose.msra.mxu0 0
      %2893 = vmatprep.subr.bf16.mxu0 0
      %2894 = vmatpush1.bf16.xpose.msra.mxu0 0
      %2895 = vmatprep.subr.bf16.mxu0 0
      %2896 = vmatpush1.bf16.xpose.msra.mxu0 %v1335
      %2897 = vmatprep.subr.bf16.mxu0 0
      %2898 = vmatpush2.bf16.xpose.msra.mxu0 0
      %2899 = vmatprep.subr.bf16.mxu0 0
      %2900 = vmatpush2.bf16.xpose.msra.mxu0 0
      %2901 = vmatprep.subr.bf16.mxu0 0
      %2902 = vmatpush2.bf16.xpose.msra.mxu0 0
      %2903 = vmatprep.subr.bf16.mxu0 0
      %2904 = vmatpush2.bf16.xpose.msra.mxu0 0
      %2905 = vmatprep.subr.bf16.mxu0 0
      %2906 = vmatpush2.bf16.xpose.msra.mxu0 0
      %2907 = vmatprep.subr.bf16.mxu0 0
      %2908 = vmatpush2.bf16.xpose.msra.mxu0 0
      %2909 = vmatprep.subr.bf16.mxu0 0
      %2910 = vmatpush2.bf16.xpose.msra.mxu0 0
      %2911 = vmatprep.subr.bf16.mxu0 0
      %2912 = vmatpush2.bf16.xpose.msra.mxu0 0
      %2913 = vmatprep.mubr.bf16.mxu0 0
      %2914 = vmatmul.mubr.bf16.gmra.mxu0 %v2879
      %v2915 = vpop.f32.mrf.mxu0
      %v2916 = vadd.f32 %v629, %v2915
      %v2917 = vpop.f32.mrf.mxu0
      %v2918 = vpop.f32.mrf.mxu0
      %v2919 = vpop.f32.mrf.mxu0
      %2920 = vdwg.mxu0
      %v2921 = vpack.i.b16 %v2772, %v2772
      %v2922 = vlaneseq
      %v2923 = vshrl.u32 %v2922, 7
      %v2924 = vsub.s32 0, %v2923
      %v2925 = vrot.slane %v2921, %v2924
      %v2927 = vsel %vm727, %v2925, 0
      %2929 = vmatprep.subr.bf16.mxu0 0
      %2930 = vmatpush1.bf16.xpose.msra.mxu0 0
      %2931 = vmatprep.subr.bf16.mxu0 0
      %2932 = vmatpush1.bf16.xpose.msra.mxu0 0
      %2933 = vmatprep.subr.bf16.mxu0 0
      %2934 = vmatpush1.bf16.xpose.msra.mxu0 0
      %2935 = vmatprep.subr.bf16.mxu0 0
      %2936 = vmatpush1.bf16.xpose.msra.mxu0 0
      %2937 = vmatprep.subr.bf16.mxu0 0
      %2938 = vmatpush1.bf16.xpose.msra.mxu0 0
      %2939 = vmatprep.subr.bf16.mxu0 0
      %2940 = vmatpush1.bf16.xpose.msra.mxu0 0
      %2941 = vmatprep.subr.bf16.mxu0 0
      %2942 = vmatpush1.bf16.xpose.msra.mxu0 0
      %2943 = vmatprep.subr.bf16.mxu0 0
      %2944 = vmatpush1.bf16.xpose.msra.mxu0 %v1386
      %2945 = vmatprep.subr.bf16.mxu0 0
      %2946 = vmatpush2.bf16.xpose.msra.mxu0 0
      %2947 = vmatprep.subr.bf16.mxu0 0
      %2948 = vmatpush2.bf16.xpose.msra.mxu0 0
      %2949 = vmatprep.subr.bf16.mxu0 0
      %2950 = vmatpush2.bf16.xpose.msra.mxu0 0
      %2951 = vmatprep.subr.bf16.mxu0 0
      %2952 = vmatpush2.bf16.xpose.msra.mxu0 0
      %2953 = vmatprep.subr.bf16.mxu0 0
      %2954 = vmatpush2.bf16.xpose.msra.mxu0 0
      %2955 = vmatprep.subr.bf16.mxu0 0
      %2956 = vmatpush2.bf16.xpose.msra.mxu0 0
      %2957 = vmatprep.subr.bf16.mxu0 0
      %2958 = vmatpush2.bf16.xpose.msra.mxu0 0
      %2959 = vmatprep.subr.bf16.mxu0 0
      %2960 = vmatpush2.bf16.xpose.msra.mxu0 0
      %2961 = vmatprep.mubr.bf16.mxu0 0
      %2962 = vmatmul.mubr.bf16.gmra.mxu0 %v2927
      %v2963 = vpop.f32.mrf.mxu0
      %v2964 = vadd.f32 %v630, %v2963
      %v2965 = vpop.f32.mrf.mxu0
      %v2966 = vpop.f32.mrf.mxu0
      %v2967 = vpop.f32.mrf.mxu0
      %2968 = vdwg.mxu0
      %v2969 = vpack.i.b16 %v2773, %v2773
      %v2970 = vlaneseq
      %v2971 = vshrl.u32 %v2970, 7
      %v2972 = vsub.s32 0, %v2971
      %v2973 = vrot.slane %v2969, %v2972
      %v2975 = vsel %vm727, %v2973, 0
      %2977 = vmatprep.subr.bf16.mxu0 0
      %2978 = vmatpush1.bf16.xpose.msra.mxu0 0
      %2979 = vmatprep.subr.bf16.mxu0 0
      %2980 = vmatpush1.bf16.xpose.msra.mxu0 0
      %2981 = vmatprep.subr.bf16.mxu0 0
      %2982 = vmatpush1.bf16.xpose.msra.mxu0 0
      %2983 = vmatprep.subr.bf16.mxu0 0
      %2984 = vmatpush1.bf16.xpose.msra.mxu0 0
      %2985 = vmatprep.subr.bf16.mxu0 0
      %2986 = vmatpush1.bf16.xpose.msra.mxu0 0
      %2987 = vmatprep.subr.bf16.mxu0 0
      %2988 = vmatpush1.bf16.xpose.msra.mxu0 0
      %2989 = vmatprep.subr.bf16.mxu0 0
      %2990 = vmatpush1.bf16.xpose.msra.mxu0 0
      %2991 = vmatprep.subr.bf16.mxu0 0
      %2992 = vmatpush1.bf16.xpose.msra.mxu0 %v1437
      %2993 = vmatprep.subr.bf16.mxu0 0
      %2994 = vmatpush2.bf16.xpose.msra.mxu0 0
      %2995 = vmatprep.subr.bf16.mxu0 0
      %2996 = vmatpush2.bf16.xpose.msra.mxu0 0
      %2997 = vmatprep.subr.bf16.mxu0 0
      %2998 = vmatpush2.bf16.xpose.msra.mxu0 0
      %2999 = vmatprep.subr.bf16.mxu0 0
      %3000 = vmatpush2.bf16.xpose.msra.mxu0 0
      %3001 = vmatprep.subr.bf16.mxu0 0
      %3002 = vmatpush2.bf16.xpose.msra.mxu0 0
      %3003 = vmatprep.subr.bf16.mxu0 0
      %3004 = vmatpush2.bf16.xpose.msra.mxu0 0
      %3005 = vmatprep.subr.bf16.mxu0 0
      %3006 = vmatpush2.bf16.xpose.msra.mxu0 0
      %3007 = vmatprep.subr.bf16.mxu0 0
      %3008 = vmatpush2.bf16.xpose.msra.mxu0 0
      %3009 = vmatprep.mubr.bf16.mxu0 0
      %3010 = vmatmul.mubr.bf16.gmra.mxu0 %v2975
      %v3011 = vpop.f32.mrf.mxu0
      %v3012 = vadd.f32 %v631, %v3011
      %v3013 = vpop.f32.mrf.mxu0
      %v3014 = vpop.f32.mrf.mxu0
      %v3015 = vpop.f32.mrf.mxu0
      %3016 = vdwg.mxu0
      %v3017 = vpack.i.b16 %v2774, %v2774
      %v3018 = vlaneseq
      %v3019 = vshrl.u32 %v3018, 7
      %v3020 = vsub.s32 0, %v3019
      %v3021 = vrot.slane %v3017, %v3020
      %v3023 = vsel %vm727, %v3021, 0
      %3025 = vmatprep.subr.bf16.mxu0 0
      %3026 = vmatpush1.bf16.xpose.msra.mxu0 0
      %3027 = vmatprep.subr.bf16.mxu0 0
      %3028 = vmatpush1.bf16.xpose.msra.mxu0 0
      %3029 = vmatprep.subr.bf16.mxu0 0
      %3030 = vmatpush1.bf16.xpose.msra.mxu0 0
      %3031 = vmatprep.subr.bf16.mxu0 0
      %3032 = vmatpush1.bf16.xpose.msra.mxu0 0
      %3033 = vmatprep.subr.bf16.mxu0 0
      %3034 = vmatpush1.bf16.xpose.msra.mxu0 0
      %3035 = vmatprep.subr.bf16.mxu0 0
      %3036 = vmatpush1.bf16.xpose.msra.mxu0 0
      %3037 = vmatprep.subr.bf16.mxu0 0
      %3038 = vmatpush1.bf16.xpose.msra.mxu0 0
      %3039 = vmatprep.subr.bf16.mxu0 0
      %3040 = vmatpush1.bf16.xpose.msra.mxu0 %v1488
      %3041 = vmatprep.subr.bf16.mxu0 0
      %3042 = vmatpush2.bf16.xpose.msra.mxu0 0
      %3043 = vmatprep.subr.bf16.mxu0 0
      %3044 = vmatpush2.bf16.xpose.msra.mxu0 0
      %3045 = vmatprep.subr.bf16.mxu0 0
      %3046 = vmatpush2.bf16.xpose.msra.mxu0 0
      %3047 = vmatprep.subr.bf16.mxu0 0
      %3048 = vmatpush2.bf16.xpose.msra.mxu0 0
      %3049 = vmatprep.subr.bf16.mxu0 0
      %3050 = vmatpush2.bf16.xpose.msra.mxu0 0
      %3051 = vmatprep.subr.bf16.mxu0 0
      %3052 = vmatpush2.bf16.xpose.msra.mxu0 0
      %3053 = vmatprep.subr.bf16.mxu0 0
      %3054 = vmatpush2.bf16.xpose.msra.mxu0 0
      %3055 = vmatprep.subr.bf16.mxu0 0
      %3056 = vmatpush2.bf16.xpose.msra.mxu0 0
      %3057 = vmatprep.mubr.bf16.mxu0 0
      %3058 = vmatmul.mubr.bf16.gmra.mxu0 %v3023
      %v3059 = vpop.f32.mrf.mxu0
      %v3060 = vadd.f32 %v632, %v3059
      %v3061 = vpop.f32.mrf.mxu0
      %v3062 = vpop.f32.mrf.mxu0
      %v3063 = vpop.f32.mrf.mxu0
      %3064 = vdwg.mxu0
      %v3065 = vpack.i.b16 %v2775, %v2775
      %v3066 = vlaneseq
      %v3067 = vshrl.u32 %v3066, 7
      %v3068 = vsub.s32 0, %v3067
      %v3069 = vrot.slane %v3065, %v3068
      %v3071 = vsel %vm727, %v3069, 0
      %3073 = vmatprep.subr.bf16.mxu0 0
      %3074 = vmatpush1.bf16.xpose.msra.mxu0 0
      %3075 = vmatprep.subr.bf16.mxu0 0
      %3076 = vmatpush1.bf16.xpose.msra.mxu0 0
      %3077 = vmatprep.subr.bf16.mxu0 0
      %3078 = vmatpush1.bf16.xpose.msra.mxu0 0
      %3079 = vmatprep.subr.bf16.mxu0 0
      %3080 = vmatpush1.bf16.xpose.msra.mxu0 0
      %3081 = vmatprep.subr.bf16.mxu0 0
      %3082 = vmatpush1.bf16.xpose.msra.mxu0 0
      %3083 = vmatprep.subr.bf16.mxu0 0
      %3084 = vmatpush1.bf16.xpose.msra.mxu0 0
      %3085 = vmatprep.subr.bf16.mxu0 0
      %3086 = vmatpush1.bf16.xpose.msra.mxu0 0
      %3087 = vmatprep.subr.bf16.mxu0 0
      %3088 = vmatpush1.bf16.xpose.msra.mxu0 %v1539
      %3089 = vmatprep.subr.bf16.mxu0 0
      %3090 = vmatpush2.bf16.xpose.msra.mxu0 0
      %3091 = vmatprep.subr.bf16.mxu0 0
      %3092 = vmatpush2.bf16.xpose.msra.mxu0 0
      %3093 = vmatprep.subr.bf16.mxu0 0
      %3094 = vmatpush2.bf16.xpose.msra.mxu0 0
      %3095 = vmatprep.subr.bf16.mxu0 0
      %3096 = vmatpush2.bf16.xpose.msra.mxu0 0
      %3097 = vmatprep.subr.bf16.mxu0 0
      %3098 = vmatpush2.bf16.xpose.msra.mxu0 0
      %3099 = vmatprep.subr.bf16.mxu0 0
      %3100 = vmatpush2.bf16.xpose.msra.mxu0 0
      %3101 = vmatprep.subr.bf16.mxu0 0
      %3102 = vmatpush2.bf16.xpose.msra.mxu0 0
      %3103 = vmatprep.subr.bf16.mxu0 0
      %3104 = vmatpush2.bf16.xpose.msra.mxu0 0
      %3105 = vmatprep.mubr.bf16.mxu0 0
      %3106 = vmatmul.mubr.bf16.gmra.mxu0 %v3071
      %v3107 = vpop.f32.mrf.mxu0
      %v3108 = vadd.f32 %v633, %v3107
      %v3109 = vpop.f32.mrf.mxu0
      %v3110 = vpop.f32.mrf.mxu0
      %v3111 = vpop.f32.mrf.mxu0
      %3112 = vdwg.mxu0
      %v3113 = vpack.i.b16 %v2776, %v2776
      %v3114 = vlaneseq
      %v3115 = vshrl.u32 %v3114, 7
      %v3116 = vsub.s32 0, %v3115
      %v3117 = vrot.slane %v3113, %v3116
      %v3119 = vsel %vm727, %v3117, 0
      %3121 = vmatprep.subr.bf16.mxu0 0
      %3122 = vmatpush1.bf16.xpose.msra.mxu0 0
      %3123 = vmatprep.subr.bf16.mxu0 0
      %3124 = vmatpush1.bf16.xpose.msra.mxu0 0
      %3125 = vmatprep.subr.bf16.mxu0 0
      %3126 = vmatpush1.bf16.xpose.msra.mxu0 0
      %3127 = vmatprep.subr.bf16.mxu0 0
      %3128 = vmatpush1.bf16.xpose.msra.mxu0 0
      %3129 = vmatprep.subr.bf16.mxu0 0
      %3130 = vmatpush1.bf16.xpose.msra.mxu0 0
      %3131 = vmatprep.subr.bf16.mxu0 0
      %3132 = vmatpush1.bf16.xpose.msra.mxu0 0
      %3133 = vmatprep.subr.bf16.mxu0 0
      %3134 = vmatpush1.bf16.xpose.msra.mxu0 0
      %3135 = vmatprep.subr.bf16.mxu0 0
      %3136 = vmatpush1.bf16.xpose.msra.mxu0 %v1590
      %3137 = vmatprep.subr.bf16.mxu0 0
      %3138 = vmatpush2.bf16.xpose.msra.mxu0 0
      %3139 = vmatprep.subr.bf16.mxu0 0
      %3140 = vmatpush2.bf16.xpose.msra.mxu0 0
      %3141 = vmatprep.subr.bf16.mxu0 0
      %3142 = vmatpush2.bf16.xpose.msra.mxu0 0
      %3143 = vmatprep.subr.bf16.mxu0 0
      %3144 = vmatpush2.bf16.xpose.msra.mxu0 0
      %3145 = vmatprep.subr.bf16.mxu0 0
      %3146 = vmatpush2.bf16.xpose.msra.mxu0 0
      %3147 = vmatprep.subr.bf16.mxu0 0
      %3148 = vmatpush2.bf16.xpose.msra.mxu0 0
      %3149 = vmatprep.subr.bf16.mxu0 0
      %3150 = vmatpush2.bf16.xpose.msra.mxu0 0
      %3151 = vmatprep.subr.bf16.mxu0 0
      %3152 = vmatpush2.bf16.xpose.msra.mxu0 0
      %3153 = vmatprep.mubr.bf16.mxu0 0
      %3154 = vmatmul.mubr.bf16.gmra.mxu0 %v3119
      %v3155 = vpop.f32.mrf.mxu0
      %v3156 = vadd.f32 %v634, %v3155
      %v3157 = vpop.f32.mrf.mxu0
      %v3158 = vpop.f32.mrf.mxu0
      %v3159 = vpop.f32.mrf.mxu0
      %3160 = vdwg.mxu0
      %v3161 = vsel %vm1632, %v2820, -inf
      %3162 = vmax.xlane.f32.xlu0 %v3161
      %v3163 = vpop.xlane.xlu0 %3162
      %v3164 = vsel %vm1632, %v2868, -inf
      %3165 = vmax.xlane.f32.xlu0 %v3164
      %v3166 = vpop.xlane.xlu0 %3165
      %v3167 = vsel %vm1632, %v2916, -inf
      %3168 = vmax.xlane.f32.xlu0 %v3167
      %v3169 = vpop.xlane.xlu0 %3168
      %v3170 = vsel %vm1632, %v2964, -inf
      %3171 = vmax.xlane.f32.xlu0 %v3170
      %v3172 = vpop.xlane.xlu0 %3171
      %v3173 = vsel %vm1632, %v3012, -inf
      %3174 = vmax.xlane.f32.xlu0 %v3173
      %v3175 = vpop.xlane.xlu0 %3174
      %v3176 = vsel %vm1632, %v3060, -inf
      %3177 = vmax.xlane.f32.xlu0 %v3176
      %v3178 = vpop.xlane.xlu0 %3177
      %v3179 = vsel %vm1632, %v3108, -inf
      %3180 = vmax.xlane.f32.xlu0 %v3179
      %v3181 = vpop.xlane.xlu0 %3180
      %v3182 = vsel %vm1632, %v3156, -inf
      %3183 = vmax.xlane.f32.xlu0 %v3182
      %v3184 = vpop.xlane.xlu0 %3183
      %v3185 = vsub.f32 %v2820, %v3163
      %v3186 = vsub.f32 %v2868, %v3166
      %v3187 = vsub.f32 %v2916, %v3169
      %v3188 = vsub.f32 %v2964, %v3172
      %v3189 = vsub.f32 %v3012, %v3175
      %v3190 = vsub.f32 %v3060, %v3178
      %v3191 = vsub.f32 %v3108, %v3181
      %v3192 = vsub.f32 %v3156, %v3184
      %v3193 = vmul.f32 %v3185, 1.442695
      %v3194 = vpow.pop %v3193
      %v3195 = vmul.f32 %v3186, 1.442695
      %v3196 = vpow.pop %v3195
      %v3197 = vmul.f32 %v3187, 1.442695
      %v3198 = vpow.pop %v3197
      %v3199 = vmul.f32 %v3188, 1.442695
      %v3200 = vpow.pop %v3199
      %v3201 = vmul.f32 %v3189, 1.442695
      %v3202 = vpow.pop %v3201
      %v3203 = vmul.f32 %v3190, 1.442695
      %v3204 = vpow.pop %v3203
      %v3205 = vmul.f32 %v3191, 1.442695
      %v3206 = vpow.pop %v3205
      %v3207 = vmul.f32 %v3192, 1.442695
      %v3208 = vpow.pop %v3207
      %v3209 = vsel %vm1632, %v3194, 0.0
      %3210 = vadd.xlane.f32.xlu0 %v3209
      %v3211 = vpop.xlane.xlu0 %3210
      %v3212 = vsel %vm1632, %v3196, 0.0
      %3213 = vadd.xlane.f32.xlu0 %v3212
      %v3214 = vpop.xlane.xlu0 %3213
      %v3215 = vsel %vm1632, %v3198, 0.0
      %3216 = vadd.xlane.f32.xlu0 %v3215
      %v3217 = vpop.xlane.xlu0 %3216
      %v3218 = vsel %vm1632, %v3200, 0.0
      %3219 = vadd.xlane.f32.xlu0 %v3218
      %v3220 = vpop.xlane.xlu0 %3219
      %v3221 = vsel %vm1632, %v3202, 0.0
      %3222 = vadd.xlane.f32.xlu0 %v3221
      %v3223 = vpop.xlane.xlu0 %3222
      %v3224 = vsel %vm1632, %v3204, 0.0
      %3225 = vadd.xlane.f32.xlu0 %v3224
      %v3226 = vpop.xlane.xlu0 %3225
      %v3227 = vsel %vm1632, %v3206, 0.0
      %3228 = vadd.xlane.f32.xlu0 %v3227
      %v3229 = vpop.xlane.xlu0 %3228
      %v3230 = vsel %vm1632, %v3208, 0.0
      %3231 = vadd.xlane.f32.xlu0 %v3230
      %v3232 = vpop.xlane.xlu0 %3231
      %v3233 = vrcp.pop %v3211
      %v3234 = vrcp.pop %v3214
      %v3235 = vrcp.pop %v3217
      %v3236 = vrcp.pop %v3220
      %v3237 = vrcp.pop %v3223
      %v3238 = vrcp.pop %v3226
      %v3239 = vrcp.pop %v3229
      %v3240 = vrcp.pop %v3232
      %v3241 = vmul.f32 %v3194, %v3233
      %v3242 = vmul.f32 %v3196, %v3234
      %v3243 = vmul.f32 %v3198, %v3235
      %v3244 = vmul.f32 %v3200, %v3236
      %v3245 = vmul.f32 %v3202, %v3237
      %v3246 = vmul.f32 %v3204, %v3238
      %v3247 = vmul.f32 %v3206, %v3239
      %v3248 = vmul.f32 %v3208, %v3240
      %v3249 = vpack.c.bf16 %v3241, %v3241
      %v3250 = vpack.c.bf16 %v3242, %v3242
      %v3251 = vpack.c.bf16 %v3243, %v3243
      %v3252 = vpack.c.bf16 %v3244, %v3244
      %v3253 = vpack.c.bf16 %v3245, %v3245
      %v3254 = vpack.c.bf16 %v3246, %v3246
      %v3255 = vpack.c.bf16 %v3247, %v3247
      %v3256 = vpack.c.bf16 %v3248, %v3248
      %v3258 = vsel %vm1729, %v3249, 0
      %3260 = vmatprep.subr.bf16.mxu0 0
      %3261 = vmatpush1.bf16.msra.mxu0 0
      %3262 = vmatprep.subr.bf16.mxu0 0
      %3263 = vmatpush1.bf16.msra.mxu0 0
      %3264 = vmatprep.subr.bf16.mxu0 0
      %3265 = vmatpush1.bf16.msra.mxu0 0
      %3266 = vmatprep.subr.bf16.mxu0 0
      %3267 = vmatpush1.bf16.msra.mxu0 0
      %3268 = vmatprep.subr.bf16.mxu0 0
      %3269 = vmatpush1.bf16.msra.mxu0 0
      %3270 = vmatprep.subr.bf16.mxu0 0
      %3271 = vmatpush1.bf16.msra.mxu0 0
      %3272 = vmatprep.subr.bf16.mxu0 0
      %3273 = vmatpush1.bf16.msra.mxu0 0
      %3274 = vmatprep.subr.bf16.mxu0 0
      %3275 = vmatpush1.bf16.msra.mxu0 %v1735
      %3276 = vmatprep.subr.bf16.mxu0 0
      %3277 = vmatpush2.bf16.msra.mxu0 0
      %3278 = vmatprep.subr.bf16.mxu0 0
      %3279 = vmatpush2.bf16.msra.mxu0 0
      %3280 = vmatprep.subr.bf16.mxu0 0
      %3281 = vmatpush2.bf16.msra.mxu0 0
      %3282 = vmatprep.subr.bf16.mxu0 0
      %3283 = vmatpush2.bf16.msra.mxu0 0
      %3284 = vmatprep.subr.bf16.mxu0 0
      %3285 = vmatpush2.bf16.msra.mxu0 0
      %3286 = vmatprep.subr.bf16.mxu0 0
      %3287 = vmatpush2.bf16.msra.mxu0 0
      %3288 = vmatprep.subr.bf16.mxu0 0
      %3289 = vmatpush2.bf16.msra.mxu0 0
      %3290 = vmatprep.subr.bf16.mxu0 0
      %3291 = vmatpush2.bf16.msra.mxu0 0
      %3292 = vmatprep.mubr.bf16.mxu0 0
      %3293 = vmatmul.mubr.bf16.gmra.mxu0 %v3258
      %v3294 = vpop.f32.mrf.mxu0
      %v3295 = vadd.f32 0.0, %v3294
      %v3296 = vpop.f32.mrf.mxu0
      %v3297 = vpop.f32.mrf.mxu0
      %v3298 = vpop.f32.mrf.mxu0
      %3299 = vdwg.mxu0
      %v3301 = vsel %vm1729, %v3250, 0
      %3303 = vmatprep.subr.bf16.mxu0 0
      %3304 = vmatpush1.bf16.msra.mxu0 0
      %3305 = vmatprep.subr.bf16.mxu0 0
      %3306 = vmatpush1.bf16.msra.mxu0 0
      %3307 = vmatprep.subr.bf16.mxu0 0
      %3308 = vmatpush1.bf16.msra.mxu0 0
      %3309 = vmatprep.subr.bf16.mxu0 0
      %3310 = vmatpush1.bf16.msra.mxu0 0
      %3311 = vmatprep.subr.bf16.mxu0 0
      %3312 = vmatpush1.bf16.msra.mxu0 0
      %3313 = vmatprep.subr.bf16.mxu0 0
      %3314 = vmatpush1.bf16.msra.mxu0 0
      %3315 = vmatprep.subr.bf16.mxu0 0
      %3316 = vmatpush1.bf16.msra.mxu0 0
      %3317 = vmatprep.subr.bf16.mxu0 0
      %3318 = vmatpush1.bf16.msra.mxu0 %v1781
      %3319 = vmatprep.subr.bf16.mxu0 0
      %3320 = vmatpush2.bf16.msra.mxu0 0
      %3321 = vmatprep.subr.bf16.mxu0 0
      %3322 = vmatpush2.bf16.msra.mxu0 0
      %3323 = vmatprep.subr.bf16.mxu0 0
      %3324 = vmatpush2.bf16.msra.mxu0 0
      %3325 = vmatprep.subr.bf16.mxu0 0
      %3326 = vmatpush2.bf16.msra.mxu0 0
      %3327 = vmatprep.subr.bf16.mxu0 0
      %3328 = vmatpush2.bf16.msra.mxu0 0
      %3329 = vmatprep.subr.bf16.mxu0 0
      %3330 = vmatpush2.bf16.msra.mxu0 0
      %3331 = vmatprep.subr.bf16.mxu0 0
      %3332 = vmatpush2.bf16.msra.mxu0 0
      %3333 = vmatprep.subr.bf16.mxu0 0
      %3334 = vmatpush2.bf16.msra.mxu0 0
      %3335 = vmatprep.mubr.bf16.mxu0 0
      %3336 = vmatmul.mubr.bf16.gmra.mxu0 %v3301
      %v3337 = vpop.f32.mrf.mxu0
      %v3338 = vadd.f32 0.0, %v3337
      %v3339 = vpop.f32.mrf.mxu0
      %v3340 = vpop.f32.mrf.mxu0
      %v3341 = vpop.f32.mrf.mxu0
      %3342 = vdwg.mxu0
      %v3344 = vsel %vm1729, %v3251, 0
      %3346 = vmatprep.subr.bf16.mxu0 0
      %3347 = vmatpush1.bf16.msra.mxu0 0
      %3348 = vmatprep.subr.bf16.mxu0 0
      %3349 = vmatpush1.bf16.msra.mxu0 0
      %3350 = vmatprep.subr.bf16.mxu0 0
      %3351 = vmatpush1.bf16.msra.mxu0 0
      %3352 = vmatprep.subr.bf16.mxu0 0
      %3353 = vmatpush1.bf16.msra.mxu0 0
      %3354 = vmatprep.subr.bf16.mxu0 0
      %3355 = vmatpush1.bf16.msra.mxu0 0
      %3356 = vmatprep.subr.bf16.mxu0 0
      %3357 = vmatpush1.bf16.msra.mxu0 0
      %3358 = vmatprep.subr.bf16.mxu0 0
      %3359 = vmatpush1.bf16.msra.mxu0 0
      %3360 = vmatprep.subr.bf16.mxu0 0
      %3361 = vmatpush1.bf16.msra.mxu0 %v1827
      %3362 = vmatprep.subr.bf16.mxu0 0
      %3363 = vmatpush2.bf16.msra.mxu0 0
      %3364 = vmatprep.subr.bf16.mxu0 0
      %3365 = vmatpush2.bf16.msra.mxu0 0
      %3366 = vmatprep.subr.bf16.mxu0 0
      %3367 = vmatpush2.bf16.msra.mxu0 0
      %3368 = vmatprep.subr.bf16.mxu0 0
      %3369 = vmatpush2.bf16.msra.mxu0 0
      %3370 = vmatprep.subr.bf16.mxu0 0
      %3371 = vmatpush2.bf16.msra.mxu0 0
      %3372 = vmatprep.subr.bf16.mxu0 0
      %3373 = vmatpush2.bf16.msra.mxu0 0
      %3374 = vmatprep.subr.bf16.mxu0 0
      %3375 = vmatpush2.bf16.msra.mxu0 0
      %3376 = vmatprep.subr.bf16.mxu0 0
      %3377 = vmatpush2.bf16.msra.mxu0 0
      %3378 = vmatprep.mubr.bf16.mxu0 0
      %3379 = vmatmul.mubr.bf16.gmra.mxu0 %v3344
      %v3380 = vpop.f32.mrf.mxu0
      %v3381 = vadd.f32 0.0, %v3380
      %v3382 = vpop.f32.mrf.mxu0
      %v3383 = vpop.f32.mrf.mxu0
      %v3384 = vpop.f32.mrf.mxu0
      %3385 = vdwg.mxu0
      %v3387 = vsel %vm1729, %v3252, 0
      %3389 = vmatprep.subr.bf16.mxu0 0
      %3390 = vmatpush1.bf16.msra.mxu0 0
      %3391 = vmatprep.subr.bf16.mxu0 0
      %3392 = vmatpush1.bf16.msra.mxu0 0
      %3393 = vmatprep.subr.bf16.mxu0 0
      %3394 = vmatpush1.bf16.msra.mxu0 0
      %3395 = vmatprep.subr.bf16.mxu0 0
      %3396 = vmatpush1.bf16.msra.mxu0 0
      %3397 = vmatprep.subr.bf16.mxu0 0
      %3398 = vmatpush1.bf16.msra.mxu0 0
      %3399 = vmatprep.subr.bf16.mxu0 0
      %3400 = vmatpush1.bf16.msra.mxu0 0
      %3401 = vmatprep.subr.bf16.mxu0 0
      %3402 = vmatpush1.bf16.msra.mxu0 0
      %3403 = vmatprep.subr.bf16.mxu0 0
      %3404 = vmatpush1.bf16.msra.mxu0 %v1873
      %3405 = vmatprep.subr.bf16.mxu0 0
      %3406 = vmatpush2.bf16.msra.mxu0 0
      %3407 = vmatprep.subr.bf16.mxu0 0
      %3408 = vmatpush2.bf16.msra.mxu0 0
      %3409 = vmatprep.subr.bf16.mxu0 0
      %3410 = vmatpush2.bf16.msra.mxu0 0
      %3411 = vmatprep.subr.bf16.mxu0 0
      %3412 = vmatpush2.bf16.msra.mxu0 0
      %3413 = vmatprep.subr.bf16.mxu0 0
      %3414 = vmatpush2.bf16.msra.mxu0 0
      %3415 = vmatprep.subr.bf16.mxu0 0
      %3416 = vmatpush2.bf16.msra.mxu0 0
      %3417 = vmatprep.subr.bf16.mxu0 0
      %3418 = vmatpush2.bf16.msra.mxu0 0
      %3419 = vmatprep.subr.bf16.mxu0 0
      %3420 = vmatpush2.bf16.msra.mxu0 0
      %3421 = vmatprep.mubr.bf16.mxu0 0
      %3422 = vmatmul.mubr.bf16.gmra.mxu0 %v3387
      %v3423 = vpop.f32.mrf.mxu0
      %v3424 = vadd.f32 0.0, %v3423
      %v3425 = vpop.f32.mrf.mxu0
      %v3426 = vpop.f32.mrf.mxu0
      %v3427 = vpop.f32.mrf.mxu0
      %3428 = vdwg.mxu0
      %v3430 = vsel %vm1729, %v3253, 0
      %3432 = vmatprep.subr.bf16.mxu0 0
      %3433 = vmatpush1.bf16.msra.mxu0 0
      %3434 = vmatprep.subr.bf16.mxu0 0
      %3435 = vmatpush1.bf16.msra.mxu0 0
      %3436 = vmatprep.subr.bf16.mxu0 0
      %3437 = vmatpush1.bf16.msra.mxu0 0
      %3438 = vmatprep.subr.bf16.mxu0 0
      %3439 = vmatpush1.bf16.msra.mxu0 0
      %3440 = vmatprep.subr.bf16.mxu0 0
      %3441 = vmatpush1.bf16.msra.mxu0 0
      %3442 = vmatprep.subr.bf16.mxu0 0
      %3443 = vmatpush1.bf16.msra.mxu0 0
      %3444 = vmatprep.subr.bf16.mxu0 0
      %3445 = vmatpush1.bf16.msra.mxu0 0
      %3446 = vmatprep.subr.bf16.mxu0 0
      %3447 = vmatpush1.bf16.msra.mxu0 %v1919
      %3448 = vmatprep.subr.bf16.mxu0 0
      %3449 = vmatpush2.bf16.msra.mxu0 0
      %3450 = vmatprep.subr.bf16.mxu0 0
      %3451 = vmatpush2.bf16.msra.mxu0 0
      %3452 = vmatprep.subr.bf16.mxu0 0
      %3453 = vmatpush2.bf16.msra.mxu0 0
      %3454 = vmatprep.subr.bf16.mxu0 0
      %3455 = vmatpush2.bf16.msra.mxu0 0
      %3456 = vmatprep.subr.bf16.mxu0 0
      %3457 = vmatpush2.bf16.msra.mxu0 0
      %3458 = vmatprep.subr.bf16.mxu0 0
      %3459 = vmatpush2.bf16.msra.mxu0 0
      %3460 = vmatprep.subr.bf16.mxu0 0
      %3461 = vmatpush2.bf16.msra.mxu0 0
      %3462 = vmatprep.subr.bf16.mxu0 0
      %3463 = vmatpush2.bf16.msra.mxu0 0
      %3464 = vmatprep.mubr.bf16.mxu0 0
      %3465 = vmatmul.mubr.bf16.gmra.mxu0 %v3430
      %v3466 = vpop.f32.mrf.mxu0
      %v3467 = vadd.f32 0.0, %v3466
      %v3468 = vpop.f32.mrf.mxu0
      %v3469 = vpop.f32.mrf.mxu0
      %v3470 = vpop.f32.mrf.mxu0
      %3471 = vdwg.mxu0
      %v3473 = vsel %vm1729, %v3254, 0
      %3475 = vmatprep.subr.bf16.mxu0 0
      %3476 = vmatpush1.bf16.msra.mxu0 0
      %3477 = vmatprep.subr.bf16.mxu0 0
      %3478 = vmatpush1.bf16.msra.mxu0 0
      %3479 = vmatprep.subr.bf16.mxu0 0
      %3480 = vmatpush1.bf16.msra.mxu0 0
      %3481 = vmatprep.subr.bf16.mxu0 0
      %3482 = vmatpush1.bf16.msra.mxu0 0
      %3483 = vmatprep.subr.bf16.mxu0 0
      %3484 = vmatpush1.bf16.msra.mxu0 0
      %3485 = vmatprep.subr.bf16.mxu0 0
      %3486 = vmatpush1.bf16.msra.mxu0 0
      %3487 = vmatprep.subr.bf16.mxu0 0
      %3488 = vmatpush1.bf16.msra.mxu0 0
      %3489 = vmatprep.subr.bf16.mxu0 0
      %3490 = vmatpush1.bf16.msra.mxu0 %v1965
      %3491 = vmatprep.subr.bf16.mxu0 0
      %3492 = vmatpush2.bf16.msra.mxu0 0
      %3493 = vmatprep.subr.bf16.mxu0 0
      %3494 = vmatpush2.bf16.msra.mxu0 0
      %3495 = vmatprep.subr.bf16.mxu0 0
      %3496 = vmatpush2.bf16.msra.mxu0 0
      %3497 = vmatprep.subr.bf16.mxu0 0
      %3498 = vmatpush2.bf16.msra.mxu0 0
      %3499 = vmatprep.subr.bf16.mxu0 0
      %3500 = vmatpush2.bf16.msra.mxu0 0
      %3501 = vmatprep.subr.bf16.mxu0 0
      %3502 = vmatpush2.bf16.msra.mxu0 0
      %3503 = vmatprep.subr.bf16.mxu0 0
      %3504 = vmatpush2.bf16.msra.mxu0 0
      %3505 = vmatprep.subr.bf16.mxu0 0
      %3506 = vmatpush2.bf16.msra.mxu0 0
      %3507 = vmatprep.mubr.bf16.mxu0 0
      %3508 = vmatmul.mubr.bf16.gmra.mxu0 %v3473
      %v3509 = vpop.f32.mrf.mxu0
      %v3510 = vadd.f32 0.0, %v3509
      %v3511 = vpop.f32.mrf.mxu0
      %v3512 = vpop.f32.mrf.mxu0
      %v3513 = vpop.f32.mrf.mxu0
      %3514 = vdwg.mxu0
      %v3516 = vsel %vm1729, %v3255, 0
      %3518 = vmatprep.subr.bf16.mxu0 0
      %3519 = vmatpush1.bf16.msra.mxu0 0
      %3520 = vmatprep.subr.bf16.mxu0 0
      %3521 = vmatpush1.bf16.msra.mxu0 0
      %3522 = vmatprep.subr.bf16.mxu0 0
      %3523 = vmatpush1.bf16.msra.mxu0 0
      %3524 = vmatprep.subr.bf16.mxu0 0
      %3525 = vmatpush1.bf16.msra.mxu0 0
      %3526 = vmatprep.subr.bf16.mxu0 0
      %3527 = vmatpush1.bf16.msra.mxu0 0
      %3528 = vmatprep.subr.bf16.mxu0 0
      %3529 = vmatpush1.bf16.msra.mxu0 0
      %3530 = vmatprep.subr.bf16.mxu0 0
      %3531 = vmatpush1.bf16.msra.mxu0 0
      %3532 = vmatprep.subr.bf16.mxu0 0
      %3533 = vmatpush1.bf16.msra.mxu0 %v2011
      %3534 = vmatprep.subr.bf16.mxu0 0
      %3535 = vmatpush2.bf16.msra.mxu0 0
      %3536 = vmatprep.subr.bf16.mxu0 0
      %3537 = vmatpush2.bf16.msra.mxu0 0
      %3538 = vmatprep.subr.bf16.mxu0 0
      %3539 = vmatpush2.bf16.msra.mxu0 0
      %3540 = vmatprep.subr.bf16.mxu0 0
      %3541 = vmatpush2.bf16.msra.mxu0 0
      %3542 = vmatprep.subr.bf16.mxu0 0
      %3543 = vmatpush2.bf16.msra.mxu0 0
      %3544 = vmatprep.subr.bf16.mxu0 0
      %3545 = vmatpush2.bf16.msra.mxu0 0
      %3546 = vmatprep.subr.bf16.mxu0 0
      %3547 = vmatpush2.bf16.msra.mxu0 0
      %3548 = vmatprep.subr.bf16.mxu0 0
      %3549 = vmatpush2.bf16.msra.mxu0 0
      %3550 = vmatprep.mubr.bf16.mxu0 0
      %3551 = vmatmul.mubr.bf16.gmra.mxu0 %v3516
      %v3552 = vpop.f32.mrf.mxu0
      %v3553 = vadd.f32 0.0, %v3552
      %v3554 = vpop.f32.mrf.mxu0
      %v3555 = vpop.f32.mrf.mxu0
      %v3556 = vpop.f32.mrf.mxu0
      %3557 = vdwg.mxu0
      %v3559 = vsel %vm1729, %v3256, 0
      %3561 = vmatprep.subr.bf16.mxu0 0
      %3562 = vmatpush1.bf16.msra.mxu0 0
      %3563 = vmatprep.subr.bf16.mxu0 0
      %3564 = vmatpush1.bf16.msra.mxu0 0
      %3565 = vmatprep.subr.bf16.mxu0 0
      %3566 = vmatpush1.bf16.msra.mxu0 0
      %3567 = vmatprep.subr.bf16.mxu0 0
      %3568 = vmatpush1.bf16.msra.mxu0 0
      %3569 = vmatprep.subr.bf16.mxu0 0
      %3570 = vmatpush1.bf16.msra.mxu0 0
      %3571 = vmatprep.subr.bf16.mxu0 0
      %3572 = vmatpush1.bf16.msra.mxu0 0
      %3573 = vmatprep.subr.bf16.mxu0 0
      %3574 = vmatpush1.bf16.msra.mxu0 0
      %3575 = vmatprep.subr.bf16.mxu0 0
      %3576 = vmatpush1.bf16.msra.mxu0 %v2057
      %3577 = vmatprep.subr.bf16.mxu0 0
      %3578 = vmatpush2.bf16.msra.mxu0 0
      %3579 = vmatprep.subr.bf16.mxu0 0
      %3580 = vmatpush2.bf16.msra.mxu0 0
      %3581 = vmatprep.subr.bf16.mxu0 0
      %3582 = vmatpush2.bf16.msra.mxu0 0
      %3583 = vmatprep.subr.bf16.mxu0 0
      %3584 = vmatpush2.bf16.msra.mxu0 0
      %3585 = vmatprep.subr.bf16.mxu0 0
      %3586 = vmatpush2.bf16.msra.mxu0 0
      %3587 = vmatprep.subr.bf16.mxu0 0
      %3588 = vmatpush2.bf16.msra.mxu0 0
      %3589 = vmatprep.subr.bf16.mxu0 0
      %3590 = vmatpush2.bf16.msra.mxu0 0
      %3591 = vmatprep.subr.bf16.mxu0 0
      %3592 = vmatpush2.bf16.msra.mxu0 0
      %3593 = vmatprep.mubr.bf16.mxu0 0
      %3594 = vmatmul.mubr.bf16.gmra.mxu0 %v3559
      %v3595 = vpop.f32.mrf.mxu0
      %v3596 = vadd.f32 0.0, %v3595
      %v3597 = vpop.f32.mrf.mxu0
      %v3598 = vpop.f32.mrf.mxu0
      %v3599 = vpop.f32.mrf.mxu0
      %3600 = vdwg.mxu0
      %v3601 = vadd.f32 %v3295, 0.0
      %v3602 = vadd.f32 %v3338, 0.0
      %v3603 = vadd.f32 %v3381, 0.0
      %v3604 = vadd.f32 %v3424, 0.0
      %v3605 = vadd.f32 %v3467, 0.0
      %v3606 = vadd.f32 %v3510, 0.0
      %v3607 = vadd.f32 %v3553, 0.0
      %v3608 = vadd.f32 %v3596, 0.0
      %v3609 = vpack.c.bf16 %v3601, %v3601
      %v3610 = vpack.c.bf16 %v3602, %v3602
      %v3611 = vpack.c.bf16 %v3603, %v3603
      %v3612 = vpack.c.bf16 %v3604, %v3604
      %v3613 = vpack.c.bf16 %v3605, %v3605
      %v3614 = vpack.c.bf16 %v3606, %v3606
      %v3615 = vpack.c.bf16 %v3607, %v3607
      %v3616 = vpack.c.bf16 %v3608, %v3608
      %v3625 = vunpack.c.l.b16 %v3609
      %v3626 = vunpack.c.l.b16 %v3610
      %v3627 = vunpack.c.l.b16 %v3611
      %v3628 = vunpack.c.l.b16 %v3612
      %v3629 = vunpack.c.l.b16 %v3613
      %v3630 = vunpack.c.l.b16 %v3614
      %v3631 = vunpack.c.l.b16 %v3615
      %v3632 = vunpack.c.l.b16 %v3616
      %v3633 = vrot.slane %v3626, 7
      %v3634 = vsel %vm2132, %v3633, %v3625
      %v3635 = vrot.slane %v3627, 6
      %v3636 = vsel %vm2135, %v3635, %v3634
      %v3637 = vrot.slane %v3628, 5
      %v3638 = vsel %vm2138, %v3637, %v3636
      %v3639 = vrot.slane %v3629, 4
      %v3640 = vsel %vm2141, %v3639, %v3638
      %v3641 = vrot.slane %v3630, 3
      %v3642 = vsel %vm2144, %v3641, %v3640
      %v3643 = vrot.slane %v3631, 2
      %v3644 = vsel %vm2147, %v3643, %v3642
      %v3645 = vrot.slane %v3632, 1
      %v3646 = vsel %vm2150, %v3645, %v3644
      %v3647 = vpack.c.b16 %v3646, %v3646
      %v3649 = vsel %vm727, %v3647, 0
      %3651 = vmatprep.subr.bf16.mxu0 0
      %3652 = vmatpush1.bf16.msra.mxu0 0
      %3653 = vmatprep.subr.bf16.mxu0 0
      %3654 = vmatpush1.bf16.msra.mxu0 0
      %3655 = vmatprep.subr.bf16.mxu0 0
      %3656 = vmatpush1.bf16.msra.mxu0 0
      %3657 = vmatprep.subr.bf16.mxu0 0
      %3658 = vmatpush1.bf16.msra.mxu0 0
      %3659 = vmatprep.subr.bf16.mxu0 0
      %3660 = vmatpush1.bf16.msra.mxu0 0
      %3661 = vmatprep.subr.bf16.mxu0 0
      %3662 = vmatpush1.bf16.msra.mxu0 0
      %3663 = vmatprep.subr.bf16.mxu0 0
      %3664 = vmatpush1.bf16.msra.mxu0 %v2162
      %3665 = vmatprep.subr.bf16.mxu0 0
      %3666 = vmatpush1.bf16.msra.mxu0 %v2161
      %3667 = vmatprep.subr.bf16.mxu0 0
      %3668 = vmatpush2.bf16.msra.mxu0 0
      %3669 = vmatprep.subr.bf16.mxu0 0
      %3670 = vmatpush2.bf16.msra.mxu0 0
      %3671 = vmatprep.subr.bf16.mxu0 0
      %3672 = vmatpush2.bf16.msra.mxu0 0
      %3673 = vmatprep.subr.bf16.mxu0 0
      %3674 = vmatpush2.bf16.msra.mxu0 0
      %3675 = vmatprep.subr.bf16.mxu0 0
      %3676 = vmatpush2.bf16.msra.mxu0 0
      %3677 = vmatprep.subr.bf16.mxu0 0
      %3678 = vmatpush2.bf16.msra.mxu0 0
      %3679 = vmatprep.subr.bf16.mxu0 0
      %3680 = vmatpush2.bf16.msra.mxu0 0
      %3681 = vmatprep.subr.bf16.mxu0 0
      %3682 = vmatpush2.bf16.msra.mxu0 0
      %3683 = vmatprep.mubr.bf16.mxu0 0
      %3684 = vmatmul.mubr.bf16.gmra.mxu0 %v3649
      %v3685 = vpop.f32.mrf.mxu0
      %v3686 = vadd.f32 0.0, %v3685
      %v3687 = vpop.f32.mrf.mxu0
      %v3688 = vpop.f32.mrf.mxu0
      %v3689 = vpop.f32.mrf.mxu0
      %3690 = vdwg.mxu0
      %v3692 = vsel %vm727, %v2743, 0
      %3694 = vmatprep.subr.bf16.mxu0 0
      %3695 = vmatpush1.bf16.msra.mxu0 0
      %3696 = vmatprep.subr.bf16.mxu0 0
      %3697 = vmatpush1.bf16.msra.mxu0 0
      %3698 = vmatprep.subr.bf16.mxu0 0
      %3699 = vmatpush1.bf16.msra.mxu0 0
      %3700 = vmatprep.subr.bf16.mxu0 0
      %3701 = vmatpush1.bf16.msra.mxu0 0
      %3702 = vmatprep.subr.bf16.mxu0 0
      %3703 = vmatpush1.bf16.msra.mxu0 0
      %3704 = vmatprep.subr.bf16.mxu0 0
      %3705 = vmatpush1.bf16.msra.mxu0 0
      %3706 = vmatprep.subr.bf16.mxu0 0
      %3707 = vmatpush1.bf16.msra.mxu0 %v2217
      %3708 = vmatprep.subr.bf16.mxu0 0
      %3709 = vmatpush1.bf16.msra.mxu0 %v2216
      %3710 = vmatprep.subr.bf16.mxu0 0
      %3711 = vmatpush2.bf16.msra.mxu0 0
      %3712 = vmatprep.subr.bf16.mxu0 0
      %3713 = vmatpush2.bf16.msra.mxu0 0
      %3714 = vmatprep.subr.bf16.mxu0 0
      %3715 = vmatpush2.bf16.msra.mxu0 0
      %3716 = vmatprep.subr.bf16.mxu0 0
      %3717 = vmatpush2.bf16.msra.mxu0 0
      %3718 = vmatprep.subr.bf16.mxu0 0
      %3719 = vmatpush2.bf16.msra.mxu0 0
      %3720 = vmatprep.subr.bf16.mxu0 0
      %3721 = vmatpush2.bf16.msra.mxu0 0
      %3722 = vmatprep.subr.bf16.mxu0 0
      %3723 = vmatpush2.bf16.msra.mxu0 0
      %3724 = vmatprep.subr.bf16.mxu0 0
      %3725 = vmatpush2.bf16.msra.mxu0 0
      %3726 = vmatprep.mubr.bf16.mxu0 0
      %3727 = vmatmul.mubr.bf16.gmra.mxu0 %v3692
      %v3728 = vpop.f32.mrf.mxu0
      %v3729 = vadd.f32 %v3686, %v3728
      %v3730 = vpop.f32.mrf.mxu0
      %v3731 = vpop.f32.mrf.mxu0
      %v3732 = vpop.f32.mrf.mxu0
      %3733 = vdwg.mxu0
      %v3734 = vtanh.pop %v3729
      %v3735 = vpack.c.bf16 %v3734, %v3734
      %v3737 = vsel %vm727, %v3735, 0
      %3739 = vmatprep.subr.bf16.mxu0 0
      %3740 = vmatpush1.bf16.msra.mxu0 0
      %3741 = vmatprep.subr.bf16.mxu0 0
      %3742 = vmatpush1.bf16.msra.mxu0 0
      %3743 = vmatprep.subr.bf16.mxu0 0
      %3744 = vmatpush1.bf16.msra.mxu0 0
      %3745 = vmatprep.subr.bf16.mxu0 0
      %3746 = vmatpush1.bf16.msra.mxu0 0
      %3747 = vmatprep.subr.bf16.mxu0 0
      %3748 = vmatpush1.bf16.msra.mxu0 0
      %3749 = vmatprep.subr.bf16.mxu0 0
      %3750 = vmatpush1.bf16.msra.mxu0 0
      %3751 = vmatprep.subr.bf16.mxu0 0
      %3752 = vmatpush1.bf16.msra.mxu0 %v2280
      %3753 = vmatprep.subr.bf16.mxu0 0
      %3754 = vmatpush1.bf16.msra.mxu0 %v2279
      %3755 = vmatprep.subr.bf16.mxu0 0
      %3756 = vmatpush2.bf16.msra.mxu0 0
      %3757 = vmatprep.subr.bf16.mxu0 0
      %3758 = vmatpush2.bf16.msra.mxu0 0
      %3759 = vmatprep.subr.bf16.mxu0 0
      %3760 = vmatpush2.bf16.msra.mxu0 0
      %3761 = vmatprep.subr.bf16.mxu0 0
      %3762 = vmatpush2.bf16.msra.mxu0 0
      %3763 = vmatprep.subr.bf16.mxu0 0
      %3764 = vmatpush2.bf16.msra.mxu0 0
      %3765 = vmatprep.subr.bf16.mxu0 0
      %3766 = vmatpush2.bf16.msra.mxu0 0
      %3767 = vmatprep.subr.bf16.mxu0 0
      %3768 = vmatpush2.bf16.msra.mxu0 0
      %3769 = vmatprep.subr.bf16.mxu0 0
      %3770 = vmatpush2.bf16.msra.mxu0 0
      %3771 = vmatprep.mubr.bf16.mxu0 0
      %3772 = vmatmul.mubr.bf16.gmra.mxu0 %v3737
      %v3773 = vpop.f32.mrf.mxu0
      %v3774 = vadd.f32 %v2269, %v3773
      %v3775 = vpop.f32.mrf.mxu0
      %v3776 = vpop.f32.mrf.mxu0
      %v3777 = vpop.f32.mrf.mxu0
      %3778 = vdwg.mxu0
      %3779 = vmax.xlane.f32.xlu0 %v3774
      %v3780 = vpop.xlane.xlu0 %3779
      %v3781 = vsub.f32 %v3774, %v3780
      %v3782 = vmul.f32 %v3781, 1.442695
      %v3783 = vpow.pop %v3782
      %3784 = vadd.xlane.f32.xlu0 %v3783
      %v3785 = vpop.xlane.xlu0 %3784
      %v3786 = vlog2.pop %v3785
      %v3787 = vmul.f32 %v3786, 0.6931472
      %v3788 = vadd.f32 %v3780, %v3787
      %v3789 = vsub.f32 %v3774, %v3788
      %s3790 = scalar_lea.vmem %s472, 8
      %3791 = vst [vmem:[%s3790] sm:$0xff] %v3789
      %v3792 = vsub.f32 %v3734, %v2342
      %v3793 = vand.u32 2147483647, %v3792
      %vm3794 = vcmp.le.f32.partialorder %v3793, %v2353
      %v3795 = vsel %vm3794, 1, 0
      %v3796 = vsel %vm727, %v3795, 2147483647
      %v3797 = vand.u32 %v3796, 65535
      %v3798 = vshra.s32 %v3796, 16
      %v3799 = vcvt.s32.f32 %v3797
      %v3800 = vcvt.s32.f32 %v3798
      %3801 = vmin.xlane.f32.xlu0 %v3800
      %v3802 = vpop.xlane.xlu0 %3801
      %vm3803 = vcmp.eq.f32.partialorder %v3800, %v3802
      %v3804 = vsel %vm3803, %v3799, inf
      %3805 = vmin.xlane.f32.xlu0 %v3804
      %v3806 = vpop.xlane.xlu0 %3805
      %v3807 = vcvt.f32.s32 %v3806
      %v3808 = vcvt.f32.s32 %v3802
      %v3809 = vshll.u32 %v3808, 16
      %v3810 = vadd.s32 %v3809, %v3807
      %v3811 = vld [vmem:[#allocation6] sm:$0xff]
      %vm3812 = vcmp.eq.s32.totalorder %v3811, 0
      %vm3813 = vcmp.ne.s32.totalorder %v3810, 0
      %vm3814 = vmand %vm3812, %vm3813
      %s3815 = sadd.s32 %s709, 2
      %v3816 = vstv %s3815
      %v3817 = vsel %vm3814, %v3816, %v3811
      %3818 = vst.msk [vmem:[#allocation6] sm:$0xff] %vm2379, %v3817
      %3819 = vst.msk [vmem:[#allocation3] sm:$0xff] %vm727, %v3734
      %3820 = vst.msk [vmem:[#allocation4] sm:$0xff] %vm727, %v2742
      %3821 = vst.msk [vmem:[#allocation5] sm:$0xff] %vm727, %v2740
      %p3822 = scmp.eq.s32.totalorder %s27, 49
      // Predicated region
      $region81: #{my_decoder_ver_3_forward.1} parent=75 // pred_check
        %p3823 = pneg %p3822
      $region82: #{my_decoder_ver_3_forward.1} parent=75 // pred_check_branch
        %3825 = sbr.rel (%p3823) target = $region84
      $region83: #{my_decoder_ver_3_forward.1} parent=75 // pred_region
        %v3826 = vld [vmem:[#allocation6] sm:$0xff]
        %v3827 = vcvt.s32.f32 %v3826
        %v3828 = vsel %vm2379, %v3827, inf
        %v3829 = vrot.slane %v3828, 4
        %v3830 = vmin.f32 %v3828, %v3829
        %v3831 = vrot.slane %v3830, 2
        %v3832 = vmin.f32 %v3830, %v3831
        %v3833 = vrot.slane %v3832, 1
        %v3834 = vmin.f32 %v3832, %v3833
        %vm3835 = vcmp.gt.f32.partialorder %v3834, 0.0
        %v3836 = vsel %vm2379, %v3827, -inf
        %v3837 = vrot.slane %v3836, 4
        %v3838 = vmax.f32 %v3836, %v3837
        %v3839 = vrot.slane %v3838, 2
        %v3840 = vmax.f32 %v3838, %v3839
        %v3841 = vrot.slane %v3840, 1
        %v3842 = vmax.f32 %v3840, %v3841
        %v3843 = vsel %vm3835, %v3842, 100.0
        %v3844 = vadd.f32 %v3843, 0.0
        %v3845 = vcvt.f32.s32.to.zero.pseudo %v3844
        %3846 = vst.msk [vmem:[%s15] sm:$0xff] %vm2379, %v3845
      $region84: #{my_decoder_ver_3_forward.1} parent=75 // pred_fallthru
        _
      %s3847 = smul.u32 2, %s27
      %p3848 = scmp.lt.s32.totalorder %s3847, 99
      %s3849 = scalar_select %p3848, %s3847, 99
      %s3850 = smul.addr %s3849, 8
      %s3851 = scalar_lea.vmem %s14, %s3850
      // Predicated region
      $region85: #{my_decoder_ver_3_forward.1} parent=75 // pred_check
        %p3852 = pneg %p339
      $region86: #{my_decoder_ver_3_forward.1} parent=75 // pred_check_branch
        %3854 = sbr.rel (%p3852) target = $region88
      $region87: #{my_decoder_ver_3_forward.1} parent=75 // pred_region
        %s3855 = smul.u32 2, %s27
      $region88: #{my_decoder_ver_3_forward.1} parent=75 // pred_fallthru
        _
      // Predicated region
      $region89: #{my_decoder_ver_3_forward.1} parent=75 // pred_check
        %p3856 = pneg %p360
      $region90: #{my_decoder_ver_3_forward.1} parent=75 // pred_check_branch
        %3858 = sbr.rel (%p3856) target = $region92
      $region91: #{my_decoder_ver_3_forward.1} parent=75 // pred_region
        _
      $region92: #{my_decoder_ver_3_forward.1} parent=75 // pred_fallthru
        _
      // Predicated region
      $region93: #{my_decoder_ver_3_forward.1} parent=75 // pred_check
        %p3859 = pneg %p360
      $region94: #{my_decoder_ver_3_forward.1} parent=75 // pred_check_branch
        %3861 = sbr.rel (%p3859) target = $region96
      $region95: #{my_decoder_ver_3_forward.1} parent=75 // pred_region
        _
      $region96: #{my_decoder_ver_3_forward.1} parent=75 // pred_fallthru
        _
    $region76: #{my_decoder_ver_3_forward.1} parent=5 // pred_fallthru
      _
    %p3862 = scmp.le.s32.totalorder 2, %s22
    // Predicated region
    $region97: #{my_decoder_ver_3_forward.1} parent=5 // pred_check
      %p3863 = pneg %p3862
    $region98: #{my_decoder_ver_3_forward.1} parent=5 // pred_check_branch
      %3865 = sbr.rel (%p3863) target = $region100
    $region99: #{my_decoder_ver_3_forward.1} parent=5 // pred_region
      %s3866 = ssub.s32 %s22, 2
      // Predicated region
      $region101: #{my_decoder_ver_3_forward.1} parent=99 // pred_check
        %p3867 = pneg %p345
      $region102: #{my_decoder_ver_3_forward.1} parent=99 // pred_check_branch
        %3869 = sbr.rel (%p3867) target = $region104
      $region103: #{my_decoder_ver_3_forward.1} parent=99 // pred_region
        %s3870 = smul.u32 2, %s28
        %p3871 = scmp.lt.s32.totalorder %s3870, 99
        %s3872 = scalar_select %p3871, %s3870, 99
        %s3873 = smul.addr %s3872, 8
        %s3874 = scalar_lea.vmem %s14, %s3873
      $region104: #{my_decoder_ver_3_forward.1} parent=99 // pred_fallthru
        _
    $region100: #{my_decoder_ver_3_forward.1} parent=5 // pred_fallthru
      _
  $region6: #{my_decoder_ver_3_forward.1} parent=0 // loop_footer
    %s26 = sadd.s32 1, %s22
  $region7: #{my_decoder_ver_3_forward.1} parent=0 // loop_footer_branch
    %21 = sbr.rel target = $region3
  $region8: #{my_decoder_ver_3_forward.1} parent=0 // loop_exit
    _

</llo_original>
